<compile_context>
chip_gen: v7x
topology: tpu7x:2x2x1
jax: 0.10.0
libtpu: 0.0.40
codegen_flags: <defaults>
</compile_context>

<pallas_src>
import functools

import jax
import jax.numpy as jnp
from jax.experimental import pallas as pl
from jax.experimental.pallas import tpu as pltpu

PAD = 0
MATMUL_DTYPE = jnp.bfloat16   # MXU operand dtype; accumulation + gate math stay f32.


def _round_up(a, b):
    return (a + b - 1) // b * b


def _pad_gate_cols(w, H, Hp):
    """Pad [..., 3H] -> [..., 3Hp], zero-padding each of the r/z/n gate blocks."""
    if Hp == H:
        return w
    pad = [(0, 0)] * (w.ndim - 1) + [(0, Hp - H)]
    gates = [jnp.pad(w[..., g * H:(g + 1) * H], pad) for g in range(3)]
    return jnp.concatenate(gates, axis=-1)


def _encoder_kernel(emb_f_ref, emb_b_ref, vld_f_ref, vld_b_ref,
                    wih_f_ref, whh_f_ref, bih_f_ref, bhh_f_ref,
                    wih_b_ref, whh_b_ref, bih_b_ref, bhh_b_ref,
                    ctx_f_ref, ctx_b_ref,
                    xg_f_ref, xg_b_ref, h_f_ref, h_b_ref):
    rows, E = emb_f_ref.shape                 # rows = Tc * Bp (time-major flat chunk)
    Bp, Hp = h_f_ref.shape
    Tc = rows // Bp
    f32 = jnp.float32

    c = pl.program_id(0)                      # time-chunk axis (sequential)

    # Reset the carried hidden states at the start of the sequence.
    @pl.when(c == 0)
    def _():
        h_f_ref[...] = jnp.zeros_like(h_f_ref)
        h_b_ref[...] = jnp.zeros_like(h_b_ref)

    # Chunk-level input-to-hidden projections for both directions:
    # one dense MXU matmul each (bf16 operands, f32 accumulation), bias folded in.
    xg_f_ref[...] = (jnp.dot(emb_f_ref[...], wih_f_ref[...],
                             preferred_element_type=f32) + bih_f_ref[...])
    xg_b_ref[...] = (jnp.dot(emb_b_ref[...], wih_b_ref[...],
                             preferred_element_type=f32) + bih_b_ref[...])

    def gru_cell(xg, h, whh_ref, bhh_ref):
        hg = (jnp.dot(h.astype(whh_ref.dtype), whh_ref[...],
                      preferred_element_type=f32) + bhh_ref[...])
        r = jax.nn.sigmoid(xg[:, 0:Hp] + hg[:, 0:Hp])
        z = jax.nn.sigmoid(xg[:, Hp:2 * Hp] + hg[:, Hp:2 * Hp])
        n = jnp.tanh(xg[:, 2 * Hp:3 * Hp] + r * hg[:, 2 * Hp:3 * Hp])
        return (1.0 - z) * n + z * h

    h_f = h_f_ref[...]
    h_b = h_b_ref[...]

    # Fused fwd/bwd recurrence over the chunk, fully unrolled (Tc kept small):
    # the two h@Whh matmuls per step are independent and overlap on the MXU.
    for i in range(Tc):
        # --- forward direction: local step i (global time c*Tc + i) ---
        xg = xg_f_ref[i * Bp:(i + 1) * Bp, :]
        hf_new = gru_cell(xg, h_f, whh_f_ref, bhh_f_ref)
        v = vld_f_ref[i * Bp:(i + 1) * Bp, :]          # [Bp, 1] in {0, 1}
        hf_out = v * hf_new                            # zero output at pads
        ctx_f_ref[i * Bp:(i + 1) * Bp, :] = hf_out     # dense (8,128)-tiled store
        h_f = hf_out + (1.0 - v) * h_f                 # freeze h at pads

        # --- backward direction: local step Tc-1-i (global reverse order) ---
        j = Tc - 1 - i
        xg = xg_b_ref[j * Bp:(j + 1) * Bp, :]
        hb_new = gru_cell(xg, h_b, whh_b_ref, bhh_b_ref)
        v = vld_b_ref[j * Bp:(j + 1) * Bp, :]
        hb_out = v * hb_new
        ctx_b_ref[j * Bp:(j + 1) * Bp, :] = hb_out
        h_b = hb_out + (1.0 - v) * h_b

    h_f_ref[...] = h_f
    h_b_ref[...] = h_b


def make_params(key, n_words, input_size, hidden_size):
    E, H = input_size, hidden_size
    ks = jax.random.split(key, 9)
    scale = 1.0 / jnp.sqrt(jnp.float32(H))

    tbl = jax.random.normal(ks[0], (n_words, E), jnp.float32) * 0.1
    tbl = tbl.at[PAD].set(0.0)  # padding_idx=PAD

    def u(k, shape):
        return jax.random.uniform(k, shape, jnp.float32, -scale, scale)

    # PyTorch GRU stores W_ih [3H, E], W_hh [3H, H]; keep them transposed so the
    # kernel can matmul without in-kernel transposes.
    return dict(
        tbl=tbl,
        wih_f=u(ks[1], (3 * H, E)).T, whh_f=u(ks[2], (3 * H, H)).T,
        bih_f=u(ks[3], (1, 3 * H)),   bhh_f=u(ks[4], (1, 3 * H)),
        wih_b=u(ks[5], (3 * H, E)).T, whh_b=u(ks[6], (3 * H, H)).T,
        bih_b=u(ks[7], (1, 3 * H)),   bhh_b=u(ks[8], (1, 3 * H)),
    )


@functools.partial(jax.jit, static_argnames=("time_chunk",))
def encoder_forward(x, params, *, time_chunk=4):
    B, S = x.shape
    E = params["wih_f"].shape[0]
    H = params["whh_f"].shape[0]

    Hp = _round_up(H, 128)        # lane-aligned hidden (gate slices at 128 multiples)
    Bp = _round_up(B, 8)          # sublane-aligned batch
    Tc = int(time_chunk)          # unrolled steps per grid iteration (keep modest)
    Sp = _round_up(S, Tc)
    nc = Sp // Tc
    rows = Tc * Bp                # time-major flat rows per chunk

    x_mask = (x == PAD)                                              # [B, S] bool
    lengths = jnp.sum((~x_mask).astype(jnp.int32), axis=1)           # [B]

    # Pad ids to [Bp, Sp] with PAD (extra rows/steps get validity 0).
    x_p = jnp.full((Bp, Sp), PAD, jnp.int32).at[:B, :S].set(x.astype(jnp.int32))

    # Embedding gather in XLA: the vocab table stays in HBM, PAD row is zero.
    emb = jnp.take(params["tbl"], x_p, axis=0)                       # [Bp, Sp, E] f32
    emb_flat = (emb.transpose(1, 0, 2)                               # time-major [Sp, Bp, E]
                   .reshape(Sp * Bp, E)
                   .astype(MATMUL_DTYPE))                            # bf16 MXU operand

    # Time-major {0,1} validity mask (replaces per-step integer compares / SMEM lengths).
    len_p = jnp.zeros((Bp,), jnp.int32).at[:B].set(lengths)
    valid = (jnp.arange(Sp, dtype=jnp.int32)[:, None] < len_p[None, :]).astype(jnp.float32)
    valid_flat = valid.reshape(Sp * Bp, 1)                           # [Sp*Bp, 1]

    # Weights: zero-pad hidden dim to Hp per gate block; bf16 matmul operands,
    # f32 biases (padded hidden units provably stay exactly zero).
    def prep(d):
        wih = _pad_gate_cols(params[f"wih_{d}"], H, Hp).astype(MATMUL_DTYPE)
        whh = _pad_gate_cols(jnp.pad(params[f"whh_{d}"], ((0, Hp - H), (0, 0))),
                             H, Hp).astype(MATMUL_DTYPE)
        bih = _pad_gate_cols(params[f"bih_{d}"], H, Hp)
        bhh = _pad_gate_cols(params[f"bhh_{d}"], H, Hp)
        return wih, whh, bih, bhh

    wih_f, whh_f, bih_f, bhh_f = prep("f")
    wih_b, whh_b, bih_b, bhh_b = prep("b")

    stream_f = lambda w: pl.BlockSpec((rows, w), lambda c: (c, 0))
    stream_b = lambda w: pl.BlockSpec((rows, w), lambda c: (nc - 1 - c, 0))
    resident = lambda shp: pl.BlockSpec(shp, lambda c: (0,) * len(shp))

    # Explicit scoped-VMEM budget: double-buffered streams + resident weights + scratch.
    mm = jnp.dtype(MATMUL_DTYPE).itemsize
    est = (2 * 2 * rows * (E * mm + 4 + Hp * 4)                        # emb/valid/ctx streams
           + 2 * 2 * ((E + Hp) * 3 * Hp * mm + 2 * 3 * Hp * 4)          # weights + biases
           + 2 * rows * 3 * Hp * 4 + 2 * Bp * Hp * 4)                   # xg + h scratch
    vmem_limit = int(min(max(2 * est, 16 * 1024 * 1024), 64 * 1024 * 1024))

    # TODO(synk): on multi-TensorCore chips (v7x / v5p), add a leading "parallel" grid
    # axis over batch blocks (or put the two directions on separate cores) so both
    # cores are used; on single-TC v5e/v6e the fused fwd+bwd step below is preferred.
    ctx_f, ctx_b = pl.pallas_call(
        _encoder_kernel,
        out_shape=(jax.ShapeDtypeStruct((Sp * Bp, Hp), jnp.float32),
                   jax.ShapeDtypeStruct((Sp * Bp, Hp), jnp.float32)),
        grid=(nc,),
        in_specs=[
            stream_f(E), stream_b(E),          # emb chunks (fwd order, reverse order)
            stream_f(1), stream_b(1),          # validity chunks
            resident((E, 3 * Hp)), resident((Hp, 3 * Hp)),
            resident((1, 3 * Hp)), resident((1, 3 * Hp)),
            resident((E, 3 * Hp)), resident((Hp, 3 * Hp)),
            resident((1, 3 * Hp)), resident((1, 3 * Hp)),
        ],
        out_specs=(stream_f(Hp), stream_b(Hp)),
        scratch_shapes=[
            pltpu.VMEM((rows, 3 * Hp), jnp.float32),   # fwd chunk input gates
            pltpu.VMEM((rows, 3 * Hp), jnp.float32),   # bwd chunk input gates
            pltpu.VMEM((Bp, Hp), jnp.float32),         # fwd hidden carry
            pltpu.VMEM((Bp, Hp), jnp.float32),         # bwd hidden carry
        ],
        compiler_params=pltpu.CompilerParams(
            dimension_semantics=("arbitrary",),        # recurrence carried across chunks
            vmem_limit_bytes=vmem_limit),
    )(emb_flat, emb_flat, valid_flat, valid_flat,
      wih_f, whh_f, bih_f, bhh_f,
      wih_b, whh_b, bih_b, bhh_b)

    ctx_f = ctx_f.reshape(Sp, Bp, Hp)[:S, :B, :H]
    ctx_b = ctx_b.reshape(Sp, Bp, Hp)[:S, :B, :H]
    ctx = jnp.concatenate([ctx_f, ctx_b], axis=-1).transpose(1, 0, 2)   # [B, S, 2H]
    return ctx, x_mask


def _reference_forward(x, params, matmul_dtype=jnp.float32):
    """Pure-JAX reference (lax.scan). matmul_dtype=bf16 mirrors the kernel's MXU path."""
    B, S = x.shape
    H = params["whh_f"].shape[0]
    mask = (x == PAD)
    lengths = jnp.sum((~mask).astype(jnp.int32), axis=1)
    emb = params["tbl"][x]                                            # [B, S, E]

    def run_dir(wih, whh, bih, bhh, reverse):
        wih = wih.astype(matmul_dtype)
        whh = whh.astype(matmul_dtype)

        def step(h, t):
            xt = emb[:, t, :].astype(matmul_dtype)
            xg = jnp.dot(xt, wih, preferred_element_type=jnp.float32) + bih
            hg = jnp.dot(h.astype(matmul_dtype), whh, preferred_element_type=jnp.float32) + bhh
            r = jax.nn.sigmoid(xg[:, :H] + hg[:, :H])
            z = jax.nn.sigmoid(xg[:, H:2 * H] + hg[:, H:2 * H])
            n = jnp.tanh(xg[:, 2 * H:] + r * hg[:, 2 * H:])
            h_new = (1.0 - z) * n + z * h
            valid = (t < lengths)[:, None]
            h_out = jnp.where(valid, h_new, 0.0)
            return jnp.where(valid, h_new, h), h_out

        ts = jnp.arange(S)
        if reverse:
            ts = ts[::-1]
        _, outs = jax.lax.scan(step, jnp.zeros((B, H), jnp.float32), ts)   # [S, B, H]
        outs = jnp.transpose(outs, (1, 0, 2))
        if reverse:
            outs = outs[:, ::-1, :]
        return outs

    fwd = run_dir(params["wih_f"], params["whh_f"], params["bih_f"], params["bhh_f"], False)
    bwd = run_dir(params["wih_b"], params["whh_b"], params["bih_b"], params["bhh_b"], True)
    return jnp.concatenate([fwd, bwd], axis=-1), mask


if __name__ == "__main__":
    # Small shapes consistent with the module: batch=2, seq=8, vocab=32, emb=16, hidden=32.
    B, S = 2, 8
    n_words, input_size, hidden_size = 32, 16, 32

    key = jax.random.PRNGKey(0)
    k_x, k_p = jax.random.split(key)
    params = make_params(k_p, n_words, input_size, hidden_size)

    x = jax.random.randint(k_x, (B, S), 1, n_words, dtype=jnp.int32)
    # Right-pad sequence 0 to length 5 (sequence 1 stays full length).
    x = x.at[0, 5:].set(PAD)

    ctx, x_mask = encoder_forward(x, params)
    ctx = jax.block_until_ready(ctx)
    x_mask = jax.block_until_ready(x_mask)

    # Verification: tight check vs a reference using the same bf16 MXU operands,
    # loose check vs the pure-f32 reference (PyTorch-equivalent math).
    ctx_ref_mm, mask_ref = _reference_forward(x, params, matmul_dtype=MATMUL_DTYPE)
    ctx_ref_f32, _ = _reference_forward(x, params, matmul_dtype=jnp.float32)

    assert ctx.shape == (B, S, 2 * hidden_size)
    assert x_mask.shape == (B, S) and x_mask.dtype == jnp.bool_
    assert bool(jnp.all(x_mask == mask_ref))
    assert bool(jnp.all(ctx[0, 5:, :] == 0.0))                 # padded steps -> exact zeros
    assert bool(jnp.allclose(ctx, ctx_ref_mm, atol=2e-3, rtol=2e-3))
    assert bool(jnp.allclose(ctx, ctx_ref_f32, atol=5e-2, rtol=5e-2))

    print("KERNEL_OK")
</pallas_src>

<mosaic_0001>
module attributes {stable_mosaic.version = 11 : i64} {
  func.func @_encoder_kernel(%arg0: i32, %arg1: memref<32x16xbf16, #tpu.memory_space<vmem>>, %arg2: memref<32x16xbf16, #tpu.memory_space<vmem>>, %arg3: memref<32x1xf32, #tpu.memory_space<vmem>>, %arg4: memref<32x1xf32, #tpu.memory_space<vmem>>, %arg5: memref<16x384xbf16, #tpu.memory_space<vmem>>, %arg6: memref<128x384xbf16, #tpu.memory_space<vmem>>, %arg7: memref<1x384xf32, #tpu.memory_space<vmem>>, %arg8: memref<1x384xf32, #tpu.memory_space<vmem>>, %arg9: memref<16x384xbf16, #tpu.memory_space<vmem>>, %arg10: memref<128x384xbf16, #tpu.memory_space<vmem>>, %arg11: memref<1x384xf32, #tpu.memory_space<vmem>>, %arg12: memref<1x384xf32, #tpu.memory_space<vmem>>, %arg13: memref<32x128xf32, #tpu.memory_space<vmem>>, %arg14: memref<32x128xf32, #tpu.memory_space<vmem>>, %arg15: memref<32x384xf32, #tpu.memory_space<vmem>>, %arg16: memref<32x384xf32, #tpu.memory_space<vmem>>, %arg17: memref<8x128xf32, #tpu.memory_space<vmem>>, %arg18: memref<8x128xf32, #tpu.memory_space<vmem>>) attributes {dimension_semantics = [#tpu.dimension_semantics<arbitrary>], iteration_bounds = array<i64: 2>, scalar_prefetch = 0 : i64, scratch_operands = 4 : i64, tpu.core_type = #tpu.core_type<tc>, window_params = [{transform_indices = @transform_0, window_bounds = array<i64: 32, 16>}, {transform_indices = @transform_1, window_bounds = array<i64: 32, 16>}, {transform_indices = @transform_2, window_bounds = array<i64: 32, 1>}, {transform_indices = @transform_3, window_bounds = array<i64: 32, 1>}, {pipeline_mode = #tpu.pipeline_mode<synchronous>, transform_indices = @transform_4, window_bounds = array<i64: 16, 384>}, {pipeline_mode = #tpu.pipeline_mode<synchronous>, transform_indices = @transform_5, window_bounds = array<i64: 128, 384>}, {pipeline_mode = #tpu.pipeline_mode<synchronous>, transform_indices = @transform_6, window_bounds = array<i64: 1, 384>}, {pipeline_mode = #tpu.pipeline_mode<synchronous>, transform_indices = @transform_7, window_bounds = array<i64: 1, 384>}, {pipeline_mode = #tpu.pipeline_mode<synchronous>, transform_indices = @transform_8, window_bounds = array<i64: 16, 384>}, {pipeline_mode = #tpu.pipeline_mode<synchronous>, transform_indices = @transform_9, window_bounds = array<i64: 128, 384>}, {pipeline_mode = #tpu.pipeline_mode<synchronous>, transform_indices = @transform_10, window_bounds = array<i64: 1, 384>}, {pipeline_mode = #tpu.pipeline_mode<synchronous>, transform_indices = @transform_11, window_bounds = array<i64: 1, 384>}, {transform_indices = @transform_12, window_bounds = array<i64: 32, 128>}, {transform_indices = @transform_13, window_bounds = array<i64: 32, 128>}]} {
    %c0_i32 = arith.constant 0 : i32
    %0 = arith.cmpi eq, %arg0, %c0_i32 : i32
    %1 = arith.extui %0 : i1 to i32
    %c0_i32_0 = arith.constant 0 : i32
    %2 = arith.cmpi ne, %1, %c0_i32_0 : i32
    scf.if %2 {
      %cst_142 = arith.constant 0.000000e+00 : f32
      %357 = vector.broadcast %cst_142 : f32 to vector<8x128xf32>
      %c0_143 = arith.constant 0 : index
      %c0_144 = arith.constant 0 : index
      %358 = vector.load %arg17[%c0_143, %c0_144] : memref<8x128xf32, #tpu.memory_space<vmem>>, vector<8x128xf32>
      tpu.vector_store %arg17[%c0_143, %c0_144], %357 {strides = array<i32>} : memref<8x128xf32, #tpu.memory_space<vmem>>, vector<8x128xf32>,
      %cst_145 = arith.constant 0.000000e+00 : f32
      %359 = vector.broadcast %cst_145 : f32 to vector<8x128xf32>
      %c0_146 = arith.constant 0 : index
      %c0_147 = arith.constant 0 : index
      %360 = vector.load %arg18[%c0_146, %c0_147] : memref<8x128xf32, #tpu.memory_space<vmem>>, vector<8x128xf32>
      tpu.vector_store %arg18[%c0_146, %c0_147], %359 {strides = array<i32>} : memref<8x128xf32, #tpu.memory_space<vmem>>, vector<8x128xf32>,
    } else {
    }
    %c0 = arith.constant 0 : index
    %c0_1 = arith.constant 0 : index
    %3 = vector.load %arg1[%c0, %c0_1] : memref<32x16xbf16, #tpu.memory_space<vmem>>, vector<32x16xbf16>
    %c0_2 = arith.constant 0 : index
    %c0_3 = arith.constant 0 : index
    %4 = vector.load %arg5[%c0_2, %c0_3] : memref<16x384xbf16, #tpu.memory_space<vmem>>, vector<16x384xbf16>
    %cst = arith.constant dense<0.000000e+00> : vector<32x384xf32>
    %5 = tpu.matmul %3, %4, %cst {dimension_numbers = #tpu.dot_dimension_numbers<[1], [0], [0], [1], [0, 0, 1, 1], [], []>} : vector<32x16xbf16>, vector<16x384xbf16>, vector<32x384xf32> -> vector<32x384xf32>
    %c0_4 = arith.constant 0 : index
    %c0_5 = arith.constant 0 : index
    %6 = vector.load %arg7[%c0_4, %c0_5] : memref<1x384xf32, #tpu.memory_space<vmem>>, vector<1x384xf32>
    %7 = vector.broadcast %6 : vector<1x384xf32> to vector<32x384xf32>
    %8 = arith.addf %5, %7 : vector<32x384xf32>
    %c0_6 = arith.constant 0 : index
    %c0_7 = arith.constant 0 : index
    %9 = vector.load %arg15[%c0_6, %c0_7] : memref<32x384xf32, #tpu.memory_space<vmem>>, vector<32x384xf32>
    tpu.vector_store %arg15[%c0_6, %c0_7], %8 {strides = array<i32>} : memref<32x384xf32, #tpu.memory_space<vmem>>, vector<32x384xf32>,
    %c0_8 = arith.constant 0 : index
    %c0_9 = arith.constant 0 : index
    %10 = vector.load %arg2[%c0_8, %c0_9] : memref<32x16xbf16, #tpu.memory_space<vmem>>, vector<32x16xbf16>
    %c0_10 = arith.constant 0 : index
    %c0_11 = arith.constant 0 : index
    %11 = vector.load %arg9[%c0_10, %c0_11] : memref<16x384xbf16, #tpu.memory_space<vmem>>, vector<16x384xbf16>
    %cst_12 = arith.constant dense<0.000000e+00> : vector<32x384xf32>
    %12 = tpu.matmul %10, %11, %cst_12 {dimension_numbers = #tpu.dot_dimension_numbers<[1], [0], [0], [1], [0, 0, 1, 1], [], []>} : vector<32x16xbf16>, vector<16x384xbf16>, vector<32x384xf32> -> vector<32x384xf32>
    %c0_13 = arith.constant 0 : index
    %c0_14 = arith.constant 0 : index
    %13 = vector.load %arg11[%c0_13, %c0_14] : memref<1x384xf32, #tpu.memory_space<vmem>>, vector<1x384xf32>
    %14 = vector.broadcast %13 : vector<1x384xf32> to vector<32x384xf32>
    %15 = arith.addf %12, %14 : vector<32x384xf32>
    %c0_15 = arith.constant 0 : index
    %c0_16 = arith.constant 0 : index
    %16 = vector.load %arg16[%c0_15, %c0_16] : memref<32x384xf32, #tpu.memory_space<vmem>>, vector<32x384xf32>
    tpu.vector_store %arg16[%c0_15, %c0_16], %15 {strides = array<i32>} : memref<32x384xf32, #tpu.memory_space<vmem>>, vector<32x384xf32>,
    %c0_17 = arith.constant 0 : index
    %c0_18 = arith.constant 0 : index
    %17 = vector.load %arg17[%c0_17, %c0_18] : memref<8x128xf32, #tpu.memory_space<vmem>>, vector<8x128xf32>
    %c0_19 = arith.constant 0 : index
    %c0_20 = arith.constant 0 : index
    %18 = vector.load %arg18[%c0_19, %c0_20] : memref<8x128xf32, #tpu.memory_space<vmem>>, vector<8x128xf32>
    %c0_21 = arith.constant 0 : index
    %c0_22 = arith.constant 0 : index
    %19 = vector.load %arg15[%c0_21, %c0_22] : memref<32x384xf32, #tpu.memory_space<vmem>>, vector<8x384xf32>
    %20 = arith.truncf %17 : vector<8x128xf32> to vector<8x128xbf16>
    %c0_23 = arith.constant 0 : index
    %c0_24 = arith.constant 0 : index
    %21 = vector.load %arg6[%c0_23, %c0_24] : memref<128x384xbf16, #tpu.memory_space<vmem>>, vector<128x384xbf16>
    %cst_25 = arith.constant dense<0.000000e+00> : vector<8x384xf32>
    %22 = tpu.matmul %20, %21, %cst_25 {dimension_numbers = #tpu.dot_dimension_numbers<[1], [0], [0], [1], [0, 0, 1, 1], [], []>} : vector<8x128xbf16>, vector<128x384xbf16>, vector<8x384xf32> -> vector<8x384xf32>
    %c0_26 = arith.constant 0 : index
    %c0_27 = arith.constant 0 : index
    %23 = vector.load %arg8[%c0_26, %c0_27] : memref<1x384xf32, #tpu.memory_space<vmem>>, vector<1x384xf32>
    %24 = vector.broadcast %23 : vector<1x384xf32> to vector<8x384xf32>
    %25 = arith.addf %22, %24 : vector<8x384xf32>
    %26 = vector.extract_strided_slice %19 {offsets = [0, 0], sizes = [8, 128], strides = [1, 1]} : vector<8x384xf32> to vector<8x128xf32>
    %27 = vector.extract_strided_slice %25 {offsets = [0, 0], sizes = [8, 128], strides = [1, 1]} : vector<8x384xf32> to vector<8x128xf32>
    %28 = arith.addf %26, %27 : vector<8x128xf32>
    %29 = arith.negf %28 : vector<8x128xf32>
    %30 = math.exp %29 : vector<8x128xf32>
    %cst_28 = arith.constant 1.000000e+00 : f32
    %31 = vector.broadcast %cst_28 : f32 to vector<8x128xf32>
    %32 = arith.addf %31, %30 : vector<8x128xf32>
    %33 = arith.divf %31, %32 : vector<8x128xf32>
    %34 = vector.extract_strided_slice %19 {offsets = [0, 128], sizes = [8, 128], strides = [1, 1]} : vector<8x384xf32> to vector<8x128xf32>
    %35 = vector.extract_strided_slice %25 {offsets = [0, 128], sizes = [8, 128], strides = [1, 1]} : vector<8x384xf32> to vector<8x128xf32>
    %36 = arith.addf %34, %35 : vector<8x128xf32>
    %37 = arith.negf %36 : vector<8x128xf32>
    %38 = math.exp %37 : vector<8x128xf32>
    %cst_29 = arith.constant 1.000000e+00 : f32
    %39 = vector.broadcast %cst_29 : f32 to vector<8x128xf32>
    %40 = arith.addf %39, %38 : vector<8x128xf32>
    %41 = arith.divf %39, %40 : vector<8x128xf32>
    %42 = vector.extract_strided_slice %19 {offsets = [0, 256], sizes = [8, 128], strides = [1, 1]} : vector<8x384xf32> to vector<8x128xf32>
    %43 = vector.extract_strided_slice %25 {offsets = [0, 256], sizes = [8, 128], strides = [1, 1]} : vector<8x384xf32> to vector<8x128xf32>
    %44 = arith.mulf %33, %43 : vector<8x128xf32>
    %45 = arith.addf %42, %44 : vector<8x128xf32>
    %46 = math.tanh %45 : vector<8x128xf32>
    %cst_30 = arith.constant 1.000000e+00 : f32
    %47 = vector.broadcast %cst_30 : f32 to vector<8x128xf32>
    %48 = arith.subf %47, %41 : vector<8x128xf32>
    %49 = arith.mulf %48, %46 : vector<8x128xf32>
    %50 = arith.mulf %41, %17 : vector<8x128xf32>
    %51 = arith.addf %49, %50 : vector<8x128xf32>
    %c0_31 = arith.constant 0 : index
    %c0_32 = arith.constant 0 : index
    %52 = vector.load %arg3[%c0_31, %c0_32] : memref<32x1xf32, #tpu.memory_space<vmem>>, vector<8x1xf32>
    %53 = vector.broadcast %52 : vector<8x1xf32> to vector<8x128xf32>
    %54 = arith.mulf %53, %51 : vector<8x128xf32>
    %c0_33 = arith.constant 0 : index
    %c0_34 = arith.constant 0 : index
    %55 = vector.load %arg13[%c0_33, %c0_34] : memref<32x128xf32, #tpu.memory_space<vmem>>, vector<8x128xf32>
    tpu.vector_store %arg13[%c0_33, %c0_34], %54 {strides = array<i32>} : memref<32x128xf32, #tpu.memory_space<vmem>>, vector<8x128xf32>,
    %cst_35 = arith.constant 1.000000e+00 : f32
    %56 = vector.broadcast %cst_35 : f32 to vector<8x1xf32>
    %57 = arith.subf %56, %52 : vector<8x1xf32>
    %58 = vector.broadcast %57 : vector<8x1xf32> to vector<8x128xf32>
    %59 = arith.mulf %58, %17 : vector<8x128xf32>
    %60 = arith.addf %54, %59 : vector<8x128xf32>
    %c24 = arith.constant 24 : index
    %c0_36 = arith.constant 0 : index
    %61 = vector.load %arg16[%c24, %c0_36] : memref<32x384xf32, #tpu.memory_space<vmem>>, vector<8x384xf32>
    %62 = arith.truncf %18 : vector<8x128xf32> to vector<8x128xbf16>
    %c0_37 = arith.constant 0 : index
    %c0_38 = arith.constant 0 : index
    %63 = vector.load %arg10[%c0_37, %c0_38] : memref<128x384xbf16, #tpu.memory_space<vmem>>, vector<128x384xbf16>
    %cst_39 = arith.constant dense<0.000000e+00> : vector<8x384xf32>
    %64 = tpu.matmul %62, %63, %cst_39 {dimension_numbers = #tpu.dot_dimension_numbers<[1], [0], [0], [1], [0, 0, 1, 1], [], []>} : vector<8x128xbf16>, vector<128x384xbf16>, vector<8x384xf32> -> vector<8x384xf32>
    %c0_40 = arith.constant 0 : index
    %c0_41 = arith.constant 0 : index
    %65 = vector.load %arg12[%c0_40, %c0_41] : memref<1x384xf32, #tpu.memory_space<vmem>>, vector<1x384xf32>
    %66 = vector.broadcast %65 : vector<1x384xf32> to vector<8x384xf32>
    %67 = arith.addf %64, %66 : vector<8x384xf32>
    %68 = vector.extract_strided_slice %61 {offsets = [0, 0], sizes = [8, 128], strides = [1, 1]} : vector<8x384xf32> to vector<8x128xf32>
    %69 = vector.extract_strided_slice %67 {offsets = [0, 0], sizes = [8, 128], strides = [1, 1]} : vector<8x384xf32> to vector<8x128xf32>
    %70 = arith.addf %68, %69 : vector<8x128xf32>
    %71 = arith.negf %70 : vector<8x128xf32>
    %72 = math.exp %71 : vector<8x128xf32>
    %cst_42 = arith.constant 1.000000e+00 : f32
    %73 = vector.broadcast %cst_42 : f32 to vector<8x128xf32>
    %74 = arith.addf %73, %72 : vector<8x128xf32>
    %75 = arith.divf %73, %74 : vector<8x128xf32>
    %76 = vector.extract_strided_slice %61 {offsets = [0, 128], sizes = [8, 128], strides = [1, 1]} : vector<8x384xf32> to vector<8x128xf32>
    %77 = vector.extract_strided_slice %67 {offsets = [0, 128], sizes = [8, 128], strides = [1, 1]} : vector<8x384xf32> to vector<8x128xf32>
    %78 = arith.addf %76, %77 : vector<8x128xf32>
    %79 = arith.negf %78 : vector<8x128xf32>
    %80 = math.exp %79 : vector<8x128xf32>
    %cst_43 = arith.constant 1.000000e+00 : f32
    %81 = vector.broadcast %cst_43 : f32 to vector<8x128xf32>
    %82 = arith.addf %81, %80 : vector<8x128xf32>
    %83 = arith.divf %81, %82 : vector<8x128xf32>
    %84 = vector.extract_strided_slice %61 {offsets = [0, 256], sizes = [8, 128], strides = [1, 1]} : vector<8x384xf32> to vector<8x128xf32>
    %85 = vector.extract_strided_slice %67 {offsets = [0, 256], sizes = [8, 128], strides = [1, 1]} : vector<8x384xf32> to vector<8x128xf32>
    %86 = arith.mulf %75, %85 : vector<8x128xf32>
    %87 = arith.addf %84, %86 : vector<8x128xf32>
    %88 = math.tanh %87 : vector<8x128xf32>
    %cst_44 = arith.constant 1.000000e+00 : f32
    %89 = vector.broadcast %cst_44 : f32 to vector<8x128xf32>
    %90 = arith.subf %89, %83 : vector<8x128xf32>
    %91 = arith.mulf %90, %88 : vector<8x128xf32>
    %92 = arith.mulf %83, %18 : vector<8x128xf32>
    %93 = arith.addf %91, %92 : vector<8x128xf32>
    %c24_45 = arith.constant 24 : index
    %c0_46 = arith.constant 0 : index
    %94 = vector.load %arg4[%c24_45, %c0_46] : memref<32x1xf32, #tpu.memory_space<vmem>>, vector<8x1xf32>
    %95 = vector.broadcast %94 : vector<8x1xf32> to vector<8x128xf32>
    %96 = arith.mulf %95, %93 : vector<8x128xf32>
    %c24_47 = arith.constant 24 : index
    %c0_48 = arith.constant 0 : index
    %97 = vector.load %arg14[%c24_47, %c0_48] : memref<32x128xf32, #tpu.memory_space<vmem>>, vector<8x128xf32>
    tpu.vector_store %arg14[%c24_47, %c0_48], %96 {strides = array<i32>} : memref<32x128xf32, #tpu.memory_space<vmem>>, vector<8x128xf32>,
    %cst_49 = arith.constant 1.000000e+00 : f32
    %98 = vector.broadcast %cst_49 : f32 to vector<8x1xf32>
    %99 = arith.subf %98, %94 : vector<8x1xf32>
    %100 = vector.broadcast %99 : vector<8x1xf32> to vector<8x128xf32>
    %101 = arith.mulf %100, %18 : vector<8x128xf32>
    %102 = arith.addf %96, %101 : vector<8x128xf32>
    %c8 = arith.constant 8 : index
    %c0_50 = arith.constant 0 : index
    %103 = vector.load %arg15[%c8, %c0_50] : memref<32x384xf32, #tpu.memory_space<vmem>>, vector<8x384xf32>
    %104 = arith.truncf %60 : vector<8x128xf32> to vector<8x128xbf16>
    %c0_51 = arith.constant 0 : index
    %c0_52 = arith.constant 0 : index
    %105 = vector.load %arg6[%c0_51, %c0_52] : memref<128x384xbf16, #tpu.memory_space<vmem>>, vector<128x384xbf16>
    %cst_53 = arith.constant dense<0.000000e+00> : vector<8x384xf32>
    %106 = tpu.matmul %104, %105, %cst_53 {dimension_numbers = #tpu.dot_dimension_numbers<[1], [0], [0], [1], [0, 0, 1, 1], [], []>} : vector<8x128xbf16>, vector<128x384xbf16>, vector<8x384xf32> -> vector<8x384xf32>
    %c0_54 = arith.constant 0 : index
    %c0_55 = arith.constant 0 : index
    %107 = vector.load %arg8[%c0_54, %c0_55] : memref<1x384xf32, #tpu.memory_space<vmem>>, vector<1x384xf32>
    %108 = vector.broadcast %107 : vector<1x384xf32> to vector<8x384xf32>
    %109 = arith.addf %106, %108 : vector<8x384xf32>
    %110 = vector.extract_strided_slice %103 {offsets = [0, 0], sizes = [8, 128], strides = [1, 1]} : vector<8x384xf32> to vector<8x128xf32>
    %111 = vector.extract_strided_slice %109 {offsets = [0, 0], sizes = [8, 128], strides = [1, 1]} : vector<8x384xf32> to vector<8x128xf32>
    %112 = arith.addf %110, %111 : vector<8x128xf32>
    %113 = arith.negf %112 : vector<8x128xf32>
    %114 = math.exp %113 : vector<8x128xf32>
    %cst_56 = arith.constant 1.000000e+00 : f32
    %115 = vector.broadcast %cst_56 : f32 to vector<8x128xf32>
    %116 = arith.addf %115, %114 : vector<8x128xf32>
    %117 = arith.divf %115, %116 : vector<8x128xf32>
    %118 = vector.extract_strided_slice %103 {offsets = [0, 128], sizes = [8, 128], strides = [1, 1]} : vector<8x384xf32> to vector<8x128xf32>
    %119 = vector.extract_strided_slice %109 {offsets = [0, 128], sizes = [8, 128], strides = [1, 1]} : vector<8x384xf32> to vector<8x128xf32>
    %120 = arith.addf %118, %119 : vector<8x128xf32>
    %121 = arith.negf %120 : vector<8x128xf32>
    %122 = math.exp %121 : vector<8x128xf32>
    %cst_57 = arith.constant 1.000000e+00 : f32
    %123 = vector.broadcast %cst_57 : f32 to vector<8x128xf32>
    %124 = arith.addf %123, %122 : vector<8x128xf32>
    %125 = arith.divf %123, %124 : vector<8x128xf32>
    %126 = vector.extract_strided_slice %103 {offsets = [0, 256], sizes = [8, 128], strides = [1, 1]} : vector<8x384xf32> to vector<8x128xf32>
    %127 = vector.extract_strided_slice %109 {offsets = [0, 256], sizes = [8, 128], strides = [1, 1]} : vector<8x384xf32> to vector<8x128xf32>
    %128 = arith.mulf %117, %127 : vector<8x128xf32>
    %129 = arith.addf %126, %128 : vector<8x128xf32>
    %130 = math.tanh %129 : vector<8x128xf32>
    %cst_58 = arith.constant 1.000000e+00 : f32
    %131 = vector.broadcast %cst_58 : f32 to vector<8x128xf32>
    %132 = arith.subf %131, %125 : vector<8x128xf32>
    %133 = arith.mulf %132, %130 : vector<8x128xf32>
    %134 = arith.mulf %125, %60 : vector<8x128xf32>
    %135 = arith.addf %133, %134 : vector<8x128xf32>
    %c8_59 = arith.constant 8 : index
    %c0_60 = arith.constant 0 : index
    %136 = vector.load %arg3[%c8_59, %c0_60] : memref<32x1xf32, #tpu.memory_space<vmem>>, vector<8x1xf32>
    %137 = vector.broadcast %136 : vector<8x1xf32> to vector<8x128xf32>
    %138 = arith.mulf %137, %135 : vector<8x128xf32>
    %c8_61 = arith.constant 8 : index
    %c0_62 = arith.constant 0 : index
    %139 = vector.load %arg13[%c8_61, %c0_62] : memref<32x128xf32, #tpu.memory_space<vmem>>, vector<8x128xf32>
    tpu.vector_store %arg13[%c8_61, %c0_62], %138 {strides = array<i32>} : memref<32x128xf32, #tpu.memory_space<vmem>>, vector<8x128xf32>,
    %cst_63 = arith.constant 1.000000e+00 : f32
    %140 = vector.broadcast %cst_63 : f32 to vector<8x1xf32>
    %141 = arith.subf %140, %136 : vector<8x1xf32>
    %142 = vector.broadcast %141 : vector<8x1xf32> to vector<8x128xf32>
    %143 = arith.mulf %142, %60 : vector<8x128xf32>
    %144 = arith.addf %138, %143 : vector<8x128xf32>
    %c16 = arith.constant 16 : index
    %c0_64 = arith.constant 0 : index
    %145 = vector.load %arg16[%c16, %c0_64] : memref<32x384xf32, #tpu.memory_space<vmem>>, vector<8x384xf32>
    %146 = arith.truncf %102 : vector<8x128xf32> to vector<8x128xbf16>
    %c0_65 = arith.constant 0 : index
    %c0_66 = arith.constant 0 : index
    %147 = vector.load %arg10[%c0_65, %c0_66] : memref<128x384xbf16, #tpu.memory_space<vmem>>, vector<128x384xbf16>
    %cst_67 = arith.constant dense<0.000000e+00> : vector<8x384xf32>
    %148 = tpu.matmul %146, %147, %cst_67 {dimension_numbers = #tpu.dot_dimension_numbers<[1], [0], [0], [1], [0, 0, 1, 1], [], []>} : vector<8x128xbf16>, vector<128x384xbf16>, vector<8x384xf32> -> vector<8x384xf32>
    %c0_68 = arith.constant 0 : index
    %c0_69 = arith.constant 0 : index
    %149 = vector.load %arg12[%c0_68, %c0_69] : memref<1x384xf32, #tpu.memory_space<vmem>>, vector<1x384xf32>
    %150 = vector.broadcast %149 : vector<1x384xf32> to vector<8x384xf32>
    %151 = arith.addf %148, %150 : vector<8x384xf32>
    %152 = vector.extract_strided_slice %145 {offsets = [0, 0], sizes = [8, 128], strides = [1, 1]} : vector<8x384xf32> to vector<8x128xf32>
    %153 = vector.extract_strided_slice %151 {offsets = [0, 0], sizes = [8, 128], strides = [1, 1]} : vector<8x384xf32> to vector<8x128xf32>
    %154 = arith.addf %152, %153 : vector<8x128xf32>
    %155 = arith.negf %154 : vector<8x128xf32>
    %156 = math.exp %155 : vector<8x128xf32>
    %cst_70 = arith.constant 1.000000e+00 : f32
    %157 = vector.broadcast %cst_70 : f32 to vector<8x128xf32>
    %158 = arith.addf %157, %156 : vector<8x128xf32>
    %159 = arith.divf %157, %158 : vector<8x128xf32>
    %160 = vector.extract_strided_slice %145 {offsets = [0, 128], sizes = [8, 128], strides = [1, 1]} : vector<8x384xf32> to vector<8x128xf32>
    %161 = vector.extract_strided_slice %151 {offsets = [0, 128], sizes = [8, 128], strides = [1, 1]} : vector<8x384xf32> to vector<8x128xf32>
    %162 = arith.addf %160, %161 : vector<8x128xf32>
    %163 = arith.negf %162 : vector<8x128xf32>
    %164 = math.exp %163 : vector<8x128xf32>
    %cst_71 = arith.constant 1.000000e+00 : f32
    %165 = vector.broadcast %cst_71 : f32 to vector<8x128xf32>
    %166 = arith.addf %165, %164 : vector<8x128xf32>
    %167 = arith.divf %165, %166 : vector<8x128xf32>
    %168 = vector.extract_strided_slice %145 {offsets = [0, 256], sizes = [8, 128], strides = [1, 1]} : vector<8x384xf32> to vector<8x128xf32>
    %169 = vector.extract_strided_slice %151 {offsets = [0, 256], sizes = [8, 128], strides = [1, 1]} : vector<8x384xf32> to vector<8x128xf32>
    %170 = arith.mulf %159, %169 : vector<8x128xf32>
    %171 = arith.addf %168, %170 : vector<8x128xf32>
    %172 = math.tanh %171 : vector<8x128xf32>
    %cst_72 = arith.constant 1.000000e+00 : f32
    %173 = vector.broadcast %cst_72 : f32 to vector<8x128xf32>
    %174 = arith.subf %173, %167 : vector<8x128xf32>
    %175 = arith.mulf %174, %172 : vector<8x128xf32>
    %176 = arith.mulf %167, %102 : vector<8x128xf32>
    %177 = arith.addf %175, %176 : vector<8x128xf32>
    %c16_73 = arith.constant 16 : index
    %c0_74 = arith.constant 0 : index
    %178 = vector.load %arg4[%c16_73, %c0_74] : memref<32x1xf32, #tpu.memory_space<vmem>>, vector<8x1xf32>
    %179 = vector.broadcast %178 : vector<8x1xf32> to vector<8x128xf32>
    %180 = arith.mulf %179, %177 : vector<8x128xf32>
    %c16_75 = arith.constant 16 : index
    %c0_76 = arith.constant 0 : index
    %181 = vector.load %arg14[%c16_75, %c0_76] : memref<32x128xf32, #tpu.memory_space<vmem>>, vector<8x128xf32>
    tpu.vector_store %arg14[%c16_75, %c0_76], %180 {strides = array<i32>} : memref<32x128xf32, #tpu.memory_space<vmem>>, vector<8x128xf32>,
    %cst_77 = arith.constant 1.000000e+00 : f32
    %182 = vector.broadcast %cst_77 : f32 to vector<8x1xf32>
    %183 = arith.subf %182, %178 : vector<8x1xf32>
    %184 = vector.broadcast %183 : vector<8x1xf32> to vector<8x128xf32>
    %185 = arith.mulf %184, %102 : vector<8x128xf32>
    %186 = arith.addf %180, %185 : vector<8x128xf32>
    %c16_78 = arith.constant 16 : index
    %c0_79 = arith.constant 0 : index
    %187 = vector.load %arg15[%c16_78, %c0_79] : memref<32x384xf32, #tpu.memory_space<vmem>>, vector<8x384xf32>
    %188 = arith.truncf %144 : vector<8x128xf32> to vector<8x128xbf16>
    %c0_80 = arith.constant 0 : index
    %c0_81 = arith.constant 0 : index
    %189 = vector.load %arg6[%c0_80, %c0_81] : memref<128x384xbf16, #tpu.memory_space<vmem>>, vector<128x384xbf16>
    %cst_82 = arith.constant dense<0.000000e+00> : vector<8x384xf32>
    %190 = tpu.matmul %188, %189, %cst_82 {dimension_numbers = #tpu.dot_dimension_numbers<[1], [0], [0], [1], [0, 0, 1, 1], [], []>} : vector<8x128xbf16>, vector<128x384xbf16>, vector<8x384xf32> -> vector<8x384xf32>
    %c0_83 = arith.constant 0 : index
    %c0_84 = arith.constant 0 : index
    %191 = vector.load %arg8[%c0_83, %c0_84] : memref<1x384xf32, #tpu.memory_space<vmem>>, vector<1x384xf32>
    %192 = vector.broadcast %191 : vector<1x384xf32> to vector<8x384xf32>
    %193 = arith.addf %190, %192 : vector<8x384xf32>
    %194 = vector.extract_strided_slice %187 {offsets = [0, 0], sizes = [8, 128], strides = [1, 1]} : vector<8x384xf32> to vector<8x128xf32>
    %195 = vector.extract_strided_slice %193 {offsets = [0, 0], sizes = [8, 128], strides = [1, 1]} : vector<8x384xf32> to vector<8x128xf32>
    %196 = arith.addf %194, %195 : vector<8x128xf32>
    %197 = arith.negf %196 : vector<8x128xf32>
    %198 = math.exp %197 : vector<8x128xf32>
    %cst_85 = arith.constant 1.000000e+00 : f32
    %199 = vector.broadcast %cst_85 : f32 to vector<8x128xf32>
    %200 = arith.addf %199, %198 : vector<8x128xf32>
    %201 = arith.divf %199, %200 : vector<8x128xf32>
    %202 = vector.extract_strided_slice %187 {offsets = [0, 128], sizes = [8, 128], strides = [1, 1]} : vector<8x384xf32> to vector<8x128xf32>
    %203 = vector.extract_strided_slice %193 {offsets = [0, 128], sizes = [8, 128], strides = [1, 1]} : vector<8x384xf32> to vector<8x128xf32>
    %204 = arith.addf %202, %203 : vector<8x128xf32>
    %205 = arith.negf %204 : vector<8x128xf32>
    %206 = math.exp %205 : vector<8x128xf32>
    %cst_86 = arith.constant 1.000000e+00 : f32
    %207 = vector.broadcast %cst_86 : f32 to vector<8x128xf32>
    %208 = arith.addf %207, %206 : vector<8x128xf32>
    %209 = arith.divf %207, %208 : vector<8x128xf32>
    %210 = vector.extract_strided_slice %187 {offsets = [0, 256], sizes = [8, 128], strides = [1, 1]} : vector<8x384xf32> to vector<8x128xf32>
    %211 = vector.extract_strided_slice %193 {offsets = [0, 256], sizes = [8, 128], strides = [1, 1]} : vector<8x384xf32> to vector<8x128xf32>
    %212 = arith.mulf %201, %211 : vector<8x128xf32>
    %213 = arith.addf %210, %212 : vector<8x128xf32>
    %214 = math.tanh %213 : vector<8x128xf32>
    %cst_87 = arith.constant 1.000000e+00 : f32
    %215 = vector.broadcast %cst_87 : f32 to vector<8x128xf32>
    %216 = arith.subf %215, %209 : vector<8x128xf32>
    %217 = arith.mulf %216, %214 : vector<8x128xf32>
    %218 = arith.mulf %209, %144 : vector<8x128xf32>
    %219 = arith.addf %217, %218 : vector<8x128xf32>
    %c16_88 = arith.constant 16 : index
    %c0_89 = arith.constant 0 : index
    %220 = vector.load %arg3[%c16_88, %c0_89] : memref<32x1xf32, #tpu.memory_space<vmem>>, vector<8x1xf32>
    %221 = vector.broadcast %220 : vector<8x1xf32> to vector<8x128xf32>
    %222 = arith.mulf %221, %219 : vector<8x128xf32>
    %c16_90 = arith.constant 16 : index
    %c0_91 = arith.constant 0 : index
    %223 = vector.load %arg13[%c16_90, %c0_91] : memref<32x128xf32, #tpu.memory_space<vmem>>, vector<8x128xf32>
    tpu.vector_store %arg13[%c16_90, %c0_91], %222 {strides = array<i32>} : memref<32x128xf32, #tpu.memory_space<vmem>>, vector<8x128xf32>,
    %cst_92 = arith.constant 1.000000e+00 : f32
    %224 = vector.broadcast %cst_92 : f32 to vector<8x1xf32>
    %225 = arith.subf %224, %220 : vector<8x1xf32>
    %226 = vector.broadcast %225 : vector<8x1xf32> to vector<8x128xf32>
    %227 = arith.mulf %226, %144 : vector<8x128xf32>
    %228 = arith.addf %222, %227 : vector<8x128xf32>
    %c8_93 = arith.constant 8 : index
    %c0_94 = arith.constant 0 : index
    %229 = vector.load %arg16[%c8_93, %c0_94] : memref<32x384xf32, #tpu.memory_space<vmem>>, vector<8x384xf32>
    %230 = arith.truncf %186 : vector<8x128xf32> to vector<8x128xbf16>
    %c0_95 = arith.constant 0 : index
    %c0_96 = arith.constant 0 : index
    %231 = vector.load %arg10[%c0_95, %c0_96] : memref<128x384xbf16, #tpu.memory_space<vmem>>, vector<128x384xbf16>
    %cst_97 = arith.constant dense<0.000000e+00> : vector<8x384xf32>
    %232 = tpu.matmul %230, %231, %cst_97 {dimension_numbers = #tpu.dot_dimension_numbers<[1], [0], [0], [1], [0, 0, 1, 1], [], []>} : vector<8x128xbf16>, vector<128x384xbf16>, vector<8x384xf32> -> vector<8x384xf32>
    %c0_98 = arith.constant 0 : index
    %c0_99 = arith.constant 0 : index
    %233 = vector.load %arg12[%c0_98, %c0_99] : memref<1x384xf32, #tpu.memory_space<vmem>>, vector<1x384xf32>
    %234 = vector.broadcast %233 : vector<1x384xf32> to vector<8x384xf32>
    %235 = arith.addf %232, %234 : vector<8x384xf32>
    %236 = vector.extract_strided_slice %229 {offsets = [0, 0], sizes = [8, 128], strides = [1, 1]} : vector<8x384xf32> to vector<8x128xf32>
    %237 = vector.extract_strided_slice %235 {offsets = [0, 0], sizes = [8, 128], strides = [1, 1]} : vector<8x384xf32> to vector<8x128xf32>
    %238 = arith.addf %236, %237 : vector<8x128xf32>
    %239 = arith.negf %238 : vector<8x128xf32>
    %240 = math.exp %239 : vector<8x128xf32>
    %cst_100 = arith.constant 1.000000e+00 : f32
    %241 = vector.broadcast %cst_100 : f32 to vector<8x128xf32>
    %242 = arith.addf %241, %240 : vector<8x128xf32>
    %243 = arith.divf %241, %242 : vector<8x128xf32>
    %244 = vector.extract_strided_slice %229 {offsets = [0, 128], sizes = [8, 128], strides = [1, 1]} : vector<8x384xf32> to vector<8x128xf32>
    %245 = vector.extract_strided_slice %235 {offsets = [0, 128], sizes = [8, 128], strides = [1, 1]} : vector<8x384xf32> to vector<8x128xf32>
    %246 = arith.addf %244, %245 : vector<8x128xf32>
    %247 = arith.negf %246 : vector<8x128xf32>
    %248 = math.exp %247 : vector<8x128xf32>
    %cst_101 = arith.constant 1.000000e+00 : f32
    %249 = vector.broadcast %cst_101 : f32 to vector<8x128xf32>
    %250 = arith.addf %249, %248 : vector<8x128xf32>
    %251 = arith.divf %249, %250 : vector<8x128xf32>
    %252 = vector.extract_strided_slice %229 {offsets = [0, 256], sizes = [8, 128], strides = [1, 1]} : vector<8x384xf32> to vector<8x128xf32>
    %253 = vector.extract_strided_slice %235 {offsets = [0, 256], sizes = [8, 128], strides = [1, 1]} : vector<8x384xf32> to vector<8x128xf32>
    %254 = arith.mulf %243, %253 : vector<8x128xf32>
    %255 = arith.addf %252, %254 : vector<8x128xf32>
    %256 = math.tanh %255 : vector<8x128xf32>
    %cst_102 = arith.constant 1.000000e+00 : f32
    %257 = vector.broadcast %cst_102 : f32 to vector<8x128xf32>
    %258 = arith.subf %257, %251 : vector<8x128xf32>
    %259 = arith.mulf %258, %256 : vector<8x128xf32>
    %260 = arith.mulf %251, %186 : vector<8x128xf32>
    %261 = arith.addf %259, %260 : vector<8x128xf32>
    %c8_103 = arith.constant 8 : index
    %c0_104 = arith.constant 0 : index
    %262 = vector.load %arg4[%c8_103, %c0_104] : memref<32x1xf32, #tpu.memory_space<vmem>>, vector<8x1xf32>
    %263 = vector.broadcast %262 : vector<8x1xf32> to vector<8x128xf32>
    %264 = arith.mulf %263, %261 : vector<8x128xf32>
    %c8_105 = arith.constant 8 : index
    %c0_106 = arith.constant 0 : index
    %265 = vector.load %arg14[%c8_105, %c0_106] : memref<32x128xf32, #tpu.memory_space<vmem>>, vector<8x128xf32>
    tpu.vector_store %arg14[%c8_105, %c0_106], %264 {strides = array<i32>} : memref<32x128xf32, #tpu.memory_space<vmem>>, vector<8x128xf32>,
    %cst_107 = arith.constant 1.000000e+00 : f32
    %266 = vector.broadcast %cst_107 : f32 to vector<8x1xf32>
    %267 = arith.subf %266, %262 : vector<8x1xf32>
    %268 = vector.broadcast %267 : vector<8x1xf32> to vector<8x128xf32>
    %269 = arith.mulf %268, %186 : vector<8x128xf32>
    %270 = arith.addf %264, %269 : vector<8x128xf32>
    %c24_108 = arith.constant 24 : index
    %c0_109 = arith.constant 0 : index
    %271 = vector.load %arg15[%c24_108, %c0_109] : memref<32x384xf32, #tpu.memory_space<vmem>>, vector<8x384xf32>
    %272 = arith.truncf %228 : vector<8x128xf32> to vector<8x128xbf16>
    %c0_110 = arith.constant 0 : index
    %c0_111 = arith.constant 0 : index
    %273 = vector.load %arg6[%c0_110, %c0_111] : memref<128x384xbf16, #tpu.memory_space<vmem>>, vector<128x384xbf16>
    %cst_112 = arith.constant dense<0.000000e+00> : vector<8x384xf32>
    %274 = tpu.matmul %272, %273, %cst_112 {dimension_numbers = #tpu.dot_dimension_numbers<[1], [0], [0], [1], [0, 0, 1, 1], [], []>} : vector<8x128xbf16>, vector<128x384xbf16>, vector<8x384xf32> -> vector<8x384xf32>
    %c0_113 = arith.constant 0 : index
    %c0_114 = arith.constant 0 : index
    %275 = vector.load %arg8[%c0_113, %c0_114] : memref<1x384xf32, #tpu.memory_space<vmem>>, vector<1x384xf32>
    %276 = vector.broadcast %275 : vector<1x384xf32> to vector<8x384xf32>
    %277 = arith.addf %274, %276 : vector<8x384xf32>
    %278 = vector.extract_strided_slice %271 {offsets = [0, 0], sizes = [8, 128], strides = [1, 1]} : vector<8x384xf32> to vector<8x128xf32>
    %279 = vector.extract_strided_slice %277 {offsets = [0, 0], sizes = [8, 128], strides = [1, 1]} : vector<8x384xf32> to vector<8x128xf32>
    %280 = arith.addf %278, %279 : vector<8x128xf32>
    %281 = arith.negf %280 : vector<8x128xf32>
    %282 = math.exp %281 : vector<8x128xf32>
    %cst_115 = arith.constant 1.000000e+00 : f32
    %283 = vector.broadcast %cst_115 : f32 to vector<8x128xf32>
    %284 = arith.addf %283, %282 : vector<8x128xf32>
    %285 = arith.divf %283, %284 : vector<8x128xf32>
    %286 = vector.extract_strided_slice %271 {offsets = [0, 128], sizes = [8, 128], strides = [1, 1]} : vector<8x384xf32> to vector<8x128xf32>
    %287 = vector.extract_strided_slice %277 {offsets = [0, 128], sizes = [8, 128], strides = [1, 1]} : vector<8x384xf32> to vector<8x128xf32>
    %288 = arith.addf %286, %287 : vector<8x128xf32>
    %289 = arith.negf %288 : vector<8x128xf32>
    %290 = math.exp %289 : vector<8x128xf32>
    %cst_116 = arith.constant 1.000000e+00 : f32
    %291 = vector.broadcast %cst_116 : f32 to vector<8x128xf32>
    %292 = arith.addf %291, %290 : vector<8x128xf32>
    %293 = arith.divf %291, %292 : vector<8x128xf32>
    %294 = vector.extract_strided_slice %271 {offsets = [0, 256], sizes = [8, 128], strides = [1, 1]} : vector<8x384xf32> to vector<8x128xf32>
    %295 = vector.extract_strided_slice %277 {offsets = [0, 256], sizes = [8, 128], strides = [1, 1]} : vector<8x384xf32> to vector<8x128xf32>
    %296 = arith.mulf %285, %295 : vector<8x128xf32>
    %297 = arith.addf %294, %296 : vector<8x128xf32>
    %298 = math.tanh %297 : vector<8x128xf32>
    %cst_117 = arith.constant 1.000000e+00 : f32
    %299 = vector.broadcast %cst_117 : f32 to vector<8x128xf32>
    %300 = arith.subf %299, %293 : vector<8x128xf32>
    %301 = arith.mulf %300, %298 : vector<8x128xf32>
    %302 = arith.mulf %293, %228 : vector<8x128xf32>
    %303 = arith.addf %301, %302 : vector<8x128xf32>
    %c24_118 = arith.constant 24 : index
    %c0_119 = arith.constant 0 : index
    %304 = vector.load %arg3[%c24_118, %c0_119] : memref<32x1xf32, #tpu.memory_space<vmem>>, vector<8x1xf32>
    %305 = vector.broadcast %304 : vector<8x1xf32> to vector<8x128xf32>
    %306 = arith.mulf %305, %303 : vector<8x128xf32>
    %c24_120 = arith.constant 24 : index
    %c0_121 = arith.constant 0 : index
    %307 = vector.load %arg13[%c24_120, %c0_121] : memref<32x128xf32, #tpu.memory_space<vmem>>, vector<8x128xf32>
    tpu.vector_store %arg13[%c24_120, %c0_121], %306 {strides = array<i32>} : memref<32x128xf32, #tpu.memory_space<vmem>>, vector<8x128xf32>,
    %cst_122 = arith.constant 1.000000e+00 : f32
    %308 = vector.broadcast %cst_122 : f32 to vector<8x1xf32>
    %309 = arith.subf %308, %304 : vector<8x1xf32>
    %310 = vector.broadcast %309 : vector<8x1xf32> to vector<8x128xf32>
    %311 = arith.mulf %310, %228 : vector<8x128xf32>
    %312 = arith.addf %306, %311 : vector<8x128xf32>
    %c0_123 = arith.constant 0 : index
    %c0_124 = arith.constant 0 : index
    %313 = vector.load %arg16[%c0_123, %c0_124] : memref<32x384xf32, #tpu.memory_space<vmem>>, vector<8x384xf32>
    %314 = arith.truncf %270 : vector<8x128xf32> to vector<8x128xbf16>
    %c0_125 = arith.constant 0 : index
    %c0_126 = arith.constant 0 : index
    %315 = vector.load %arg10[%c0_125, %c0_126] : memref<128x384xbf16, #tpu.memory_space<vmem>>, vector<128x384xbf16>
    %cst_127 = arith.constant dense<0.000000e+00> : vector<8x384xf32>
    %316 = tpu.matmul %314, %315, %cst_127 {dimension_numbers = #tpu.dot_dimension_numbers<[1], [0], [0], [1], [0, 0, 1, 1], [], []>} : vector<8x128xbf16>, vector<128x384xbf16>, vector<8x384xf32> -> vector<8x384xf32>
    %c0_128 = arith.constant 0 : index
    %c0_129 = arith.constant 0 : index
    %317 = vector.load %arg12[%c0_128, %c0_129] : memref<1x384xf32, #tpu.memory_space<vmem>>, vector<1x384xf32>
    %318 = vector.broadcast %317 : vector<1x384xf32> to vector<8x384xf32>
    %319 = arith.addf %316, %318 : vector<8x384xf32>
    %320 = vector.extract_strided_slice %313 {offsets = [0, 0], sizes = [8, 128], strides = [1, 1]} : vector<8x384xf32> to vector<8x128xf32>
    %321 = vector.extract_strided_slice %319 {offsets = [0, 0], sizes = [8, 128], strides = [1, 1]} : vector<8x384xf32> to vector<8x128xf32>
    %322 = arith.addf %320, %321 : vector<8x128xf32>
    %323 = arith.negf %322 : vector<8x128xf32>
    %324 = math.exp %323 : vector<8x128xf32>
    %cst_130 = arith.constant 1.000000e+00 : f32
    %325 = vector.broadcast %cst_130 : f32 to vector<8x128xf32>
    %326 = arith.addf %325, %324 : vector<8x128xf32>
    %327 = arith.divf %325, %326 : vector<8x128xf32>
    %328 = vector.extract_strided_slice %313 {offsets = [0, 128], sizes = [8, 128], strides = [1, 1]} : vector<8x384xf32> to vector<8x128xf32>
    %329 = vector.extract_strided_slice %319 {offsets = [0, 128], sizes = [8, 128], strides = [1, 1]} : vector<8x384xf32> to vector<8x128xf32>
    %330 = arith.addf %328, %329 : vector<8x128xf32>
    %331 = arith.negf %330 : vector<8x128xf32>
    %332 = math.exp %331 : vector<8x128xf32>
    %cst_131 = arith.constant 1.000000e+00 : f32
    %333 = vector.broadcast %cst_131 : f32 to vector<8x128xf32>
    %334 = arith.addf %333, %332 : vector<8x128xf32>
    %335 = arith.divf %333, %334 : vector<8x128xf32>
    %336 = vector.extract_strided_slice %313 {offsets = [0, 256], sizes = [8, 128], strides = [1, 1]} : vector<8x384xf32> to vector<8x128xf32>
    %337 = vector.extract_strided_slice %319 {offsets = [0, 256], sizes = [8, 128], strides = [1, 1]} : vector<8x384xf32> to vector<8x128xf32>
    %338 = arith.mulf %327, %337 : vector<8x128xf32>
    %339 = arith.addf %336, %338 : vector<8x128xf32>
    %340 = math.tanh %339 : vector<8x128xf32>
    %cst_132 = arith.constant 1.000000e+00 : f32
    %341 = vector.broadcast %cst_132 : f32 to vector<8x128xf32>
    %342 = arith.subf %341, %335 : vector<8x128xf32>
    %343 = arith.mulf %342, %340 : vector<8x128xf32>
    %344 = arith.mulf %335, %270 : vector<8x128xf32>
    %345 = arith.addf %343, %344 : vector<8x128xf32>
    %c0_133 = arith.constant 0 : index
    %c0_134 = arith.constant 0 : index
    %346 = vector.load %arg4[%c0_133, %c0_134] : memref<32x1xf32, #tpu.memory_space<vmem>>, vector<8x1xf32>
    %347 = vector.broadcast %346 : vector<8x1xf32> to vector<8x128xf32>
    %348 = arith.mulf %347, %345 : vector<8x128xf32>
    %c0_135 = arith.constant 0 : index
    %c0_136 = arith.constant 0 : index
    %349 = vector.load %arg14[%c0_135, %c0_136] : memref<32x128xf32, #tpu.memory_space<vmem>>, vector<8x128xf32>
    tpu.vector_store %arg14[%c0_135, %c0_136], %348 {strides = array<i32>} : memref<32x128xf32, #tpu.memory_space<vmem>>, vector<8x128xf32>,
    %cst_137 = arith.constant 1.000000e+00 : f32
    %350 = vector.broadcast %cst_137 : f32 to vector<8x1xf32>
    %351 = arith.subf %350, %346 : vector<8x1xf32>
    %352 = vector.broadcast %351 : vector<8x1xf32> to vector<8x128xf32>
    %353 = arith.mulf %352, %270 : vector<8x128xf32>
    %354 = arith.addf %348, %353 : vector<8x128xf32>
    %c0_138 = arith.constant 0 : index
    %c0_139 = arith.constant 0 : index
    %355 = vector.load %arg17[%c0_138, %c0_139] : memref<8x128xf32, #tpu.memory_space<vmem>>, vector<8x128xf32>
    tpu.vector_store %arg17[%c0_138, %c0_139], %312 {strides = array<i32>} : memref<8x128xf32, #tpu.memory_space<vmem>>, vector<8x128xf32>,
    %c0_140 = arith.constant 0 : index
    %c0_141 = arith.constant 0 : index
    %356 = vector.load %arg18[%c0_140, %c0_141] : memref<8x128xf32, #tpu.memory_space<vmem>>, vector<8x128xf32>
    tpu.vector_store %arg18[%c0_140, %c0_141], %354 {strides = array<i32>} : memref<8x128xf32, #tpu.memory_space<vmem>>, vector<8x128xf32>,
    return
  }
  func.func @transform_0(%arg0: i32) -> (i32, i32) {
    %c0_i32 = arith.constant 0 : i32
    %c0_i32_0 = arith.constant 0 : i32
    return %arg0, %c0_i32 : i32, i32
  }
  func.func @transform_1(%arg0: i32) -> (i32, i32) {
    %c1_i32 = arith.constant 1 : i32
    %0 = arith.subi %c1_i32, %arg0 : i32
    %c0_i32 = arith.constant 0 : i32
    %c0_i32_0 = arith.constant 0 : i32
    return %0, %c0_i32 : i32, i32
  }
  func.func @transform_2(%arg0: i32) -> (i32, i32) {
    %c0_i32 = arith.constant 0 : i32
    %c0_i32_0 = arith.constant 0 : i32
    return %arg0, %c0_i32 : i32, i32
  }
  func.func @transform_3(%arg0: i32) -> (i32, i32) {
    %c1_i32 = arith.constant 1 : i32
    %0 = arith.subi %c1_i32, %arg0 : i32
    %c0_i32 = arith.constant 0 : i32
    %c0_i32_0 = arith.constant 0 : i32
    return %0, %c0_i32 : i32, i32
  }
  func.func @transform_4(%arg0: i32) -> (i32, i32) {
    %c0_i32 = arith.constant 0 : i32
    %c0_i32_0 = arith.constant 0 : i32
    %c0_i32_1 = arith.constant 0 : i32
    return %c0_i32, %c0_i32_0 : i32, i32
  }
  func.func @transform_5(%arg0: i32) -> (i32, i32) {
    %c0_i32 = arith.constant 0 : i32
    %c0_i32_0 = arith.constant 0 : i32
    %c0_i32_1 = arith.constant 0 : i32
    return %c0_i32, %c0_i32_0 : i32, i32
  }
  func.func @transform_6(%arg0: i32) -> (i32, i32) {
    %c0_i32 = arith.constant 0 : i32
    %c0_i32_0 = arith.constant 0 : i32
    %c0_i32_1 = arith.constant 0 : i32
    return %c0_i32, %c0_i32_0 : i32, i32
  }
  func.func @transform_7(%arg0: i32) -> (i32, i32) {
    %c0_i32 = arith.constant 0 : i32
    %c0_i32_0 = arith.constant 0 : i32
    %c0_i32_1 = arith.constant 0 : i32
    return %c0_i32, %c0_i32_0 : i32, i32
  }
  func.func @transform_8(%arg0: i32) -> (i32, i32) {
    %c0_i32 = arith.constant 0 : i32
    %c0_i32_0 = arith.constant 0 : i32
    %c0_i32_1 = arith.constant 0 : i32
    return %c0_i32, %c0_i32_0 : i32, i32
  }
  func.func @transform_9(%arg0: i32) -> (i32, i32) {
    %c0_i32 = arith.constant 0 : i32
    %c0_i32_0 = arith.constant 0 : i32
    %c0_i32_1 = arith.constant 0 : i32
    return %c0_i32, %c0_i32_0 : i32, i32
  }
  func.func @transform_10(%arg0: i32) -> (i32, i32) {
    %c0_i32 = arith.constant 0 : i32
    %c0_i32_0 = arith.constant 0 : i32
    %c0_i32_1 = arith.constant 0 : i32
    return %c0_i32, %c0_i32_0 : i32, i32
  }
  func.func @transform_11(%arg0: i32) -> (i32, i32) {
    %c0_i32 = arith.constant 0 : i32
    %c0_i32_0 = arith.constant 0 : i32
    %c0_i32_1 = arith.constant 0 : i32
    return %c0_i32, %c0_i32_0 : i32, i32
  }
  func.func @transform_12(%arg0: i32) -> (i32, i32) {
    %c0_i32 = arith.constant 0 : i32
    %c0_i32_0 = arith.constant 0 : i32
    return %arg0, %c0_i32 : i32, i32
  }
  func.func @transform_13(%arg0: i32) -> (i32, i32) {
    %c1_i32 = arith.constant 1 : i32
    %0 = arith.subi %c1_i32, %arg0 : i32
    %c0_i32 = arith.constant 0 : i32
    %c0_i32_0 = arith.constant 0 : i32
    return %0, %c0_i32 : i32, i32
  }
}

</mosaic_0001>

<llo_original>
// kernel: encoder_forward.1
$region0: #{encoder_forward.1}
  #allocation0 [shape = 'u32[]', space=smem, size = 0x4, offset = 0x4, fixed_abs, tag = 'smem constant byte address 0x4 - core index']
  #allocation1 [shape = 'u32[144,128]{1,0:T(1,128)}', space=vmem, size = 0x12000, scoped, tag = 'internal scratch']
  #allocation2 [shape = 'f32[32,384]{1,0:T(8,128)}', space=vmem, size = 0xc000, scoped, tag = 'scratch operand']
  #allocation3 [shape = 'f32[32,384]{1,0:T(8,128)}', space=vmem, size = 0xc000, scoped, tag = 'scratch operand']
  #allocation4 [shape = 'f32[8,128]{1,0:T(8,128)}', space=vmem, size = 0x1000, scoped, tag = 'scratch operand']
  #allocation5 [shape = 'f32[8,128]{1,0:T(8,128)}', space=vmem, size = 0x1000, scoped, tag = 'scratch operand']
  %s0 = inlined_call_operand.vmem [shape: bf16[64,16], index: 0, kind: input, shape index: {}, may-alias: {0,1}]
  %s1 = inlined_call_operand.vmem [shape: bf16[64,16], index: 1, kind: input, shape index: {}, may-alias: {0,1}]
  %s2 = inlined_call_operand.vmem [shape: f32[64,1], index: 2, kind: input, shape index: {}, may-alias: {2,3}]
  %s3 = inlined_call_operand.vmem [shape: f32[64,1], index: 3, kind: input, shape index: {}, may-alias: {2,3}]
  %s4 = inlined_call_operand.vmem [shape: bf16[16,384], index: 4, kind: input, shape index: {}]
  %s5 = inlined_call_operand.vmem [shape: bf16[128,384], index: 5, kind: input, shape index: {}]
  %s6 = inlined_call_operand.vmem [shape: f32[1,384], index: 6, kind: input, shape index: {}]
  %s7 = inlined_call_operand.vmem [shape: f32[1,384], index: 7, kind: input, shape index: {}]
  %s8 = inlined_call_operand.vmem [shape: bf16[16,384], index: 8, kind: input, shape index: {}]
  %s9 = inlined_call_operand.vmem [shape: bf16[128,384], index: 9, kind: input, shape index: {}]
  %s10 = inlined_call_operand.vmem [shape: f32[1,384], index: 10, kind: input, shape index: {}]
  %s11 = inlined_call_operand.vmem [shape: f32[1,384], index: 11, kind: input, shape index: {}]
  %s12 = inlined_call_operand.vmem [shape: f32[64,128], index: 12, kind: output, shape index: {0}]
  %s13 = inlined_call_operand.vmem [shape: f32[64,128], index: 13, kind: output, shape index: {1}]
  %14 = xla_tuple %s12, %s13
  %s15 = sld [smem:[#allocation0]]
  $region93: #{encoder_forward.1} parent=0
    _
  %s17 = ssub.s32 1, %s15
  %s18 = scalar_select 0, %s17, %s15
  loop: start=0, step=1, limit=4
  $region2: #{encoder_forward.1} parent=0 // loop_pre_header
    _
  $region3: #{encoder_forward.1} parent=0 // loop_header
    %s20 = sphi 0, %s24
    %p21 = scmp.ge.s32.totalorder %s20, 4
    %s30 = sphi 0, %s32
    %s33 = sphi 0, %s30
    %s34 = sphi 0, %s33
    %s50 = sphi 0, %s34
    %s58 = sphi 0, %s60
    %s61 = sphi 0, %s58
    %s62 = sphi 0, %s61
    %s78 = sphi 0, %s62
    %s84 = sphi 0, %s86
    %s87 = sphi 0, %s84
    %s88 = sphi 0, %s87
    %s104 = sphi 0, %s88
    %s112 = sphi 0, %s114
    %s115 = sphi 0, %s112
    %s116 = sphi 0, %s115
    %s132 = sphi 0, %s116
    %s136 = sphi 0, %s136
    %s138 = sphi 0, %s136
    %s139 = sphi 0, %s138
    %s153 = sphi 0, %s139
    %s157 = sphi 0, %s157
    %s159 = sphi 0, %s157
    %s160 = sphi 0, %s159
    %s174 = sphi 0, %s160
    %s178 = sphi 0, %s178
    %s180 = sphi 0, %s178
    %s181 = sphi 0, %s180
    %s195 = sphi 0, %s181
    %s199 = sphi 0, %s199
    %s201 = sphi 0, %s199
    %s202 = sphi 0, %s201
    %s216 = sphi 0, %s202
    %s220 = sphi 0, %s220
    %s222 = sphi 0, %s220
    %s223 = sphi 0, %s222
    %s237 = sphi 0, %s223
    %s241 = sphi 0, %s241
    %s243 = sphi 0, %s241
    %s244 = sphi 0, %s243
    %s258 = sphi 0, %s244
    %s262 = sphi 0, %s262
    %s264 = sphi 0, %s262
    %s265 = sphi 0, %s264
    %s279 = sphi 0, %s265
    %s283 = sphi 0, %s283
    %s285 = sphi 0, %s283
    %s286 = sphi 0, %s285
    %s300 = sphi 0, %s286
    %s306 = sphi 0, %s308
    %s309 = sphi 0, %s306
    %s310 = sphi 0, %s309
    %s326 = sphi 0, %s310
    %s334 = sphi 0, %s336
    %s337 = sphi 0, %s334
    %s338 = sphi 0, %s337
    %s354 = sphi 0, %s338
  $region4: #{encoder_forward.1} parent=0 // loop_header_branch
    %23 = sbr.rel (%p21) target = $region8
  $region5: #{encoder_forward.1} parent=0 // loop_body
    %s25 = ssub.s32 %s20, 1
    %s26 = ssub.s32 %s20, 2
    %s27 = sadd.s32 %s20, 1
    %s28 = ssub.s32 %s20, %s27
    %p29 = scmp.eq.s32.totalorder %s28, 0
    %s31 = sadd.s32 %s30, 1
    %s32 = scalar_select %p29, %s30, %s31
    %p35 = pneg %p29
    %p36 = scmp.eq.s32.totalorder %s20, 1
    %p37 = por %p35, %p36
    %p38 = scmp.ne.s32.totalorder %s30, %s33
    %p39 = scmp.eq.s32.totalorder %s20, 0
    %p40 = por %p38, %p39
    %p41 = scmp.ne.s32.totalorder %s30, %s33
    %p42 = scmp.eq.s32.totalorder %s25, 1
    %p43 = por %p41, %p42
    %p44 = scmp.ne.s32.totalorder %s33, %s34
    %p45 = scmp.eq.s32.totalorder %s25, 0
    %p46 = por %p44, %p45
    %p47 = scmp.ne.s32.totalorder %s33, %s34
    %p48 = scmp.eq.s32.totalorder %s26, 1
    %p49 = por %p47, %p48
    %p51 = scmp.ne.s32.totalorder %s34, %s50
    %p52 = scmp.eq.s32.totalorder %s26, 0
    %p53 = por %p51, %p52
    %s54 = ssub.s32 1, %s20
    %s55 = ssub.s32 1, %s27
    %s56 = ssub.s32 %s54, %s55
    %p57 = scmp.eq.s32.totalorder %s56, 0
    %s59 = sadd.s32 %s58, 1
    %s60 = scalar_select %p57, %s58, %s59
    %p63 = pneg %p57
    %p64 = scmp.eq.s32.totalorder %s20, 1
    %p65 = por %p63, %p64
    %p66 = scmp.ne.s32.totalorder %s58, %s61
    %p67 = scmp.eq.s32.totalorder %s20, 0
    %p68 = por %p66, %p67
    %p69 = scmp.ne.s32.totalorder %s58, %s61
    %p70 = scmp.eq.s32.totalorder %s25, 1
    %p71 = por %p69, %p70
    %p72 = scmp.ne.s32.totalorder %s61, %s62
    %p73 = scmp.eq.s32.totalorder %s25, 0
    %p74 = por %p72, %p73
    %p75 = scmp.ne.s32.totalorder %s61, %s62
    %p76 = scmp.eq.s32.totalorder %s26, 1
    %p77 = por %p75, %p76
    %p79 = scmp.ne.s32.totalorder %s62, %s78
    %p80 = scmp.eq.s32.totalorder %s26, 0
    %p81 = por %p79, %p80
    %s82 = ssub.s32 %s20, %s27
    %p83 = scmp.eq.s32.totalorder %s82, 0
    %s85 = sadd.s32 %s84, 1
    %s86 = scalar_select %p83, %s84, %s85
    %p89 = pneg %p83
    %p90 = scmp.eq.s32.totalorder %s20, 1
    %p91 = por %p89, %p90
    %p92 = scmp.ne.s32.totalorder %s84, %s87
    %p93 = scmp.eq.s32.totalorder %s20, 0
    %p94 = por %p92, %p93
    %p95 = scmp.ne.s32.totalorder %s84, %s87
    %p96 = scmp.eq.s32.totalorder %s25, 1
    %p97 = por %p95, %p96
    %p98 = scmp.ne.s32.totalorder %s87, %s88
    %p99 = scmp.eq.s32.totalorder %s25, 0
    %p100 = por %p98, %p99
    %p101 = scmp.ne.s32.totalorder %s87, %s88
    %p102 = scmp.eq.s32.totalorder %s26, 1
    %p103 = por %p101, %p102
    %p105 = scmp.ne.s32.totalorder %s88, %s104
    %p106 = scmp.eq.s32.totalorder %s26, 0
    %p107 = por %p105, %p106
    %s108 = ssub.s32 1, %s20
    %s109 = ssub.s32 1, %s27
    %s110 = ssub.s32 %s108, %s109
    %p111 = scmp.eq.s32.totalorder %s110, 0
    %s113 = sadd.s32 %s112, 1
    %s114 = scalar_select %p111, %s112, %s113
    %p117 = pneg %p111
    %p118 = scmp.eq.s32.totalorder %s20, 1
    %p119 = por %p117, %p118
    %p120 = scmp.ne.s32.totalorder %s112, %s115
    %p121 = scmp.eq.s32.totalorder %s20, 0
    %p122 = por %p120, %p121
    %p123 = scmp.ne.s32.totalorder %s112, %s115
    %p124 = scmp.eq.s32.totalorder %s25, 1
    %p125 = por %p123, %p124
    %p126 = scmp.ne.s32.totalorder %s115, %s116
    %p127 = scmp.eq.s32.totalorder %s25, 0
    %p128 = por %p126, %p127
    %p129 = scmp.ne.s32.totalorder %s115, %s116
    %p130 = scmp.eq.s32.totalorder %s26, 1
    %p131 = por %p129, %p130
    %p133 = scmp.ne.s32.totalorder %s116, %s132
    %p134 = scmp.eq.s32.totalorder %s26, 0
    %p135 = por %p133, %p134
    %s137 = sadd.s32 %s136, 1
    %p140 = scmp.eq.s32.totalorder %s20, 1
    %p141 = scmp.ne.s32.totalorder %s136, %s138
    %p142 = scmp.eq.s32.totalorder %s20, 0
    %p143 = por %p141, %p142
    %p144 = scmp.ne.s32.totalorder %s136, %s138
    %p145 = scmp.eq.s32.totalorder %s25, 1
    %p146 = por %p144, %p145
    %p147 = scmp.ne.s32.totalorder %s138, %s139
    %p148 = scmp.eq.s32.totalorder %s25, 0
    %p149 = por %p147, %p148
    %p150 = scmp.ne.s32.totalorder %s138, %s139
    %p151 = scmp.eq.s32.totalorder %s26, 1
    %p152 = por %p150, %p151
    %p154 = scmp.ne.s32.totalorder %s139, %s153
    %p155 = scmp.eq.s32.totalorder %s26, 0
    %p156 = por %p154, %p155
    %s158 = sadd.s32 %s157, 1
    %p161 = scmp.eq.s32.totalorder %s20, 1
    %p162 = scmp.ne.s32.totalorder %s157, %s159
    %p163 = scmp.eq.s32.totalorder %s20, 0
    %p164 = por %p162, %p163
    %p165 = scmp.ne.s32.totalorder %s157, %s159
    %p166 = scmp.eq.s32.totalorder %s25, 1
    %p167 = por %p165, %p166
    %p168 = scmp.ne.s32.totalorder %s159, %s160
    %p169 = scmp.eq.s32.totalorder %s25, 0
    %p170 = por %p168, %p169
    %p171 = scmp.ne.s32.totalorder %s159, %s160
    %p172 = scmp.eq.s32.totalorder %s26, 1
    %p173 = por %p171, %p172
    %p175 = scmp.ne.s32.totalorder %s160, %s174
    %p176 = scmp.eq.s32.totalorder %s26, 0
    %p177 = por %p175, %p176
    %s179 = sadd.s32 %s178, 1
    %p182 = scmp.eq.s32.totalorder %s20, 1
    %p183 = scmp.ne.s32.totalorder %s178, %s180
    %p184 = scmp.eq.s32.totalorder %s20, 0
    %p185 = por %p183, %p184
    %p186 = scmp.ne.s32.totalorder %s178, %s180
    %p187 = scmp.eq.s32.totalorder %s25, 1
    %p188 = por %p186, %p187
    %p189 = scmp.ne.s32.totalorder %s180, %s181
    %p190 = scmp.eq.s32.totalorder %s25, 0
    %p191 = por %p189, %p190
    %p192 = scmp.ne.s32.totalorder %s180, %s181
    %p193 = scmp.eq.s32.totalorder %s26, 1
    %p194 = por %p192, %p193
    %p196 = scmp.ne.s32.totalorder %s181, %s195
    %p197 = scmp.eq.s32.totalorder %s26, 0
    %p198 = por %p196, %p197
    %s200 = sadd.s32 %s199, 1
    %p203 = scmp.eq.s32.totalorder %s20, 1
    %p204 = scmp.ne.s32.totalorder %s199, %s201
    %p205 = scmp.eq.s32.totalorder %s20, 0
    %p206 = por %p204, %p205
    %p207 = scmp.ne.s32.totalorder %s199, %s201
    %p208 = scmp.eq.s32.totalorder %s25, 1
    %p209 = por %p207, %p208
    %p210 = scmp.ne.s32.totalorder %s201, %s202
    %p211 = scmp.eq.s32.totalorder %s25, 0
    %p212 = por %p210, %p211
    %p213 = scmp.ne.s32.totalorder %s201, %s202
    %p214 = scmp.eq.s32.totalorder %s26, 1
    %p215 = por %p213, %p214
    %p217 = scmp.ne.s32.totalorder %s202, %s216
    %p218 = scmp.eq.s32.totalorder %s26, 0
    %p219 = por %p217, %p218
    %s221 = sadd.s32 %s220, 1
    %p224 = scmp.eq.s32.totalorder %s20, 1
    %p225 = scmp.ne.s32.totalorder %s220, %s222
    %p226 = scmp.eq.s32.totalorder %s20, 0
    %p227 = por %p225, %p226
    %p228 = scmp.ne.s32.totalorder %s220, %s222
    %p229 = scmp.eq.s32.totalorder %s25, 1
    %p230 = por %p228, %p229
    %p231 = scmp.ne.s32.totalorder %s222, %s223
    %p232 = scmp.eq.s32.totalorder %s25, 0
    %p233 = por %p231, %p232
    %p234 = scmp.ne.s32.totalorder %s222, %s223
    %p235 = scmp.eq.s32.totalorder %s26, 1
    %p236 = por %p234, %p235
    %p238 = scmp.ne.s32.totalorder %s223, %s237
    %p239 = scmp.eq.s32.totalorder %s26, 0
    %p240 = por %p238, %p239
    %s242 = sadd.s32 %s241, 1
    %p245 = scmp.eq.s32.totalorder %s20, 1
    %p246 = scmp.ne.s32.totalorder %s241, %s243
    %p247 = scmp.eq.s32.totalorder %s20, 0
    %p248 = por %p246, %p247
    %p249 = scmp.ne.s32.totalorder %s241, %s243
    %p250 = scmp.eq.s32.totalorder %s25, 1
    %p251 = por %p249, %p250
    %p252 = scmp.ne.s32.totalorder %s243, %s244
    %p253 = scmp.eq.s32.totalorder %s25, 0
    %p254 = por %p252, %p253
    %p255 = scmp.ne.s32.totalorder %s243, %s244
    %p256 = scmp.eq.s32.totalorder %s26, 1
    %p257 = por %p255, %p256
    %p259 = scmp.ne.s32.totalorder %s244, %s258
    %p260 = scmp.eq.s32.totalorder %s26, 0
    %p261 = por %p259, %p260
    %s263 = sadd.s32 %s262, 1
    %p266 = scmp.eq.s32.totalorder %s20, 1
    %p267 = scmp.ne.s32.totalorder %s262, %s264
    %p268 = scmp.eq.s32.totalorder %s20, 0
    %p269 = por %p267, %p268
    %p270 = scmp.ne.s32.totalorder %s262, %s264
    %p271 = scmp.eq.s32.totalorder %s25, 1
    %p272 = por %p270, %p271
    %p273 = scmp.ne.s32.totalorder %s264, %s265
    %p274 = scmp.eq.s32.totalorder %s25, 0
    %p275 = por %p273, %p274
    %p276 = scmp.ne.s32.totalorder %s264, %s265
    %p277 = scmp.eq.s32.totalorder %s26, 1
    %p278 = por %p276, %p277
    %p280 = scmp.ne.s32.totalorder %s265, %s279
    %p281 = scmp.eq.s32.totalorder %s26, 0
    %p282 = por %p280, %p281
    %s284 = sadd.s32 %s283, 1
    %p287 = scmp.eq.s32.totalorder %s20, 1
    %p288 = scmp.ne.s32.totalorder %s283, %s285
    %p289 = scmp.eq.s32.totalorder %s20, 0
    %p290 = por %p288, %p289
    %p291 = scmp.ne.s32.totalorder %s283, %s285
    %p292 = scmp.eq.s32.totalorder %s25, 1
    %p293 = por %p291, %p292
    %p294 = scmp.ne.s32.totalorder %s285, %s286
    %p295 = scmp.eq.s32.totalorder %s25, 0
    %p296 = por %p294, %p295
    %p297 = scmp.ne.s32.totalorder %s285, %s286
    %p298 = scmp.eq.s32.totalorder %s26, 1
    %p299 = por %p297, %p298
    %p301 = scmp.ne.s32.totalorder %s286, %s300
    %p302 = scmp.eq.s32.totalorder %s26, 0
    %p303 = por %p301, %p302
    %s304 = ssub.s32 %s20, %s27
    %p305 = scmp.eq.s32.totalorder %s304, 0
    %s307 = sadd.s32 %s306, 1
    %s308 = scalar_select %p305, %s306, %s307
    %p311 = pneg %p305
    %p312 = scmp.eq.s32.totalorder %s20, 1
    %p313 = por %p311, %p312
    %p314 = scmp.ne.s32.totalorder %s306, %s309
    %p315 = scmp.eq.s32.totalorder %s20, 0
    %p316 = por %p314, %p315
    %p317 = scmp.ne.s32.totalorder %s306, %s309
    %p318 = scmp.eq.s32.totalorder %s25, 1
    %p319 = por %p317, %p318
    %p320 = scmp.ne.s32.totalorder %s309, %s310
    %p321 = scmp.eq.s32.totalorder %s25, 0
    %p322 = por %p320, %p321
    %p323 = scmp.ne.s32.totalorder %s309, %s310
    %p324 = scmp.eq.s32.totalorder %s26, 1
    %p325 = por %p323, %p324
    %p327 = scmp.ne.s32.totalorder %s310, %s326
    %p328 = scmp.eq.s32.totalorder %s26, 0
    %p329 = por %p327, %p328
    %s330 = ssub.s32 1, %s20
    %s331 = ssub.s32 1, %s27
    %s332 = ssub.s32 %s330, %s331
    %p333 = scmp.eq.s32.totalorder %s332, 0
    %s335 = sadd.s32 %s334, 1
    %s336 = scalar_select %p333, %s334, %s335
    %p339 = pneg %p333
    %p340 = scmp.eq.s32.totalorder %s20, 1
    %p341 = por %p339, %p340
    %p342 = scmp.ne.s32.totalorder %s334, %s337
    %p343 = scmp.eq.s32.totalorder %s20, 0
    %p344 = por %p342, %p343
    %p345 = scmp.ne.s32.totalorder %s334, %s337
    %p346 = scmp.eq.s32.totalorder %s25, 1
    %p347 = por %p345, %p346
    %p348 = scmp.ne.s32.totalorder %s337, %s338
    %p349 = scmp.eq.s32.totalorder %s25, 0
    %p350 = por %p348, %p349
    %p351 = scmp.ne.s32.totalorder %s337, %s338
    %p352 = scmp.eq.s32.totalorder %s26, 1
    %p353 = por %p351, %p352
    %p355 = scmp.ne.s32.totalorder %s338, %s354
    %p356 = scmp.eq.s32.totalorder %s26, 0
    %p357 = por %p355, %p356
    %p358 = scmp.le.s32.totalorder 1, %s20
    %p359 = scmp.lt.s32.totalorder %s20, 3
    %p360 = pnand %p358, %p359
    %p361 = pneg %p360
    // Predicated region
    $region9: #{encoder_forward.1} parent=5 // pred_check
      _
    $region10: #{encoder_forward.1} parent=5 // pred_check_branch
      %363 = sbr.rel (%p360) target = $region12
    $region11: #{encoder_forward.1} parent=5 // pred_region
      %s364 = ssub.s32 %s20, 1
      // Predicated region
      $region13: #{encoder_forward.1} parent=11 // pred_check
        %p365 = pneg %p149
      $region14: #{encoder_forward.1} parent=11 // pred_check_branch
        %367 = sbr.rel (%p365) target = $region16
      $region15: #{encoder_forward.1} parent=11 // pred_region
        _
      $region16: #{encoder_forward.1} parent=11 // pred_fallthru
        _
      // Predicated region
      $region17: #{encoder_forward.1} parent=11 // pred_check
        %p368 = pneg %p170
      $region18: #{encoder_forward.1} parent=11 // pred_check_branch
        %370 = sbr.rel (%p368) target = $region20
      $region19: #{encoder_forward.1} parent=11 // pred_region
        _
      $region20: #{encoder_forward.1} parent=11 // pred_fallthru
        _
      // Predicated region
      $region21: #{encoder_forward.1} parent=11 // pred_check
        %p371 = pneg %p191
      $region22: #{encoder_forward.1} parent=11 // pred_check_branch
        %373 = sbr.rel (%p371) target = $region24
      $region23: #{encoder_forward.1} parent=11 // pred_region
        _
      $region24: #{encoder_forward.1} parent=11 // pred_fallthru
        _
      // Predicated region
      $region25: #{encoder_forward.1} parent=11 // pred_check
        %p374 = pneg %p212
      $region26: #{encoder_forward.1} parent=11 // pred_check_branch
        %376 = sbr.rel (%p374) target = $region28
      $region27: #{encoder_forward.1} parent=11 // pred_region
        _
      $region28: #{encoder_forward.1} parent=11 // pred_fallthru
        _
      // Predicated region
      $region29: #{encoder_forward.1} parent=11 // pred_check
        %p377 = pneg %p233
      $region30: #{encoder_forward.1} parent=11 // pred_check_branch
        %379 = sbr.rel (%p377) target = $region32
      $region31: #{encoder_forward.1} parent=11 // pred_region
        _
      $region32: #{encoder_forward.1} parent=11 // pred_fallthru
        _
      // Predicated region
      $region33: #{encoder_forward.1} parent=11 // pred_check
        %p380 = pneg %p254
      $region34: #{encoder_forward.1} parent=11 // pred_check_branch
        %382 = sbr.rel (%p380) target = $region36
      $region35: #{encoder_forward.1} parent=11 // pred_region
        _
      $region36: #{encoder_forward.1} parent=11 // pred_fallthru
        _
      // Predicated region
      $region37: #{encoder_forward.1} parent=11 // pred_check
        %p383 = pneg %p275
      $region38: #{encoder_forward.1} parent=11 // pred_check_branch
        %385 = sbr.rel (%p383) target = $region40
      $region39: #{encoder_forward.1} parent=11 // pred_region
        _
      $region40: #{encoder_forward.1} parent=11 // pred_fallthru
        _
      // Predicated region
      $region41: #{encoder_forward.1} parent=11 // pred_check
        %p386 = pneg %p296
      $region42: #{encoder_forward.1} parent=11 // pred_check_branch
        %388 = sbr.rel (%p386) target = $region44
      $region43: #{encoder_forward.1} parent=11 // pred_region
        _
      $region44: #{encoder_forward.1} parent=11 // pred_fallthru
        _
    $region12: #{encoder_forward.1} parent=5 // pred_fallthru
      _
    %p389 = scmp.lt.s32.totalorder %s20, 2
    // Predicated region
    $region45: #{encoder_forward.1} parent=5 // pred_check
      %p390 = pneg %p389
    $region46: #{encoder_forward.1} parent=5 // pred_check_branch
      %392 = sbr.rel (%p390) target = $region48
    $region47: #{encoder_forward.1} parent=5 // pred_region
      // Predicated region
      $region49: #{encoder_forward.1} parent=47 // pred_check
        %p393 = pneg %p40
      $region50: #{encoder_forward.1} parent=47 // pred_check_branch
        %395 = sbr.rel (%p393) target = $region52
      $region51: #{encoder_forward.1} parent=47 // pred_region
        %s396 = smul.u32 4, %s20
        %p397 = scmp.lt.s32.totalorder %s396, 7
        %s398 = scalar_select %p397, %s396, 7
        %s399 = smul.addr %s398, 4
        %s400 = scalar_lea.vmem %s0, %s399
        %s401 = smul.u32 4, %s20
      $region52: #{encoder_forward.1} parent=47 // pred_fallthru
        _
      // Predicated region
      $region53: #{encoder_forward.1} parent=47 // pred_check
        %p402 = pneg %p68
      $region54: #{encoder_forward.1} parent=47 // pred_check_branch
        %404 = sbr.rel (%p402) target = $region56
      $region55: #{encoder_forward.1} parent=47 // pred_region
        %s405 = ssub.s32 1, %s20
        %s406 = smul.u32 4, %s405
        %p407 = scmp.lt.s32.totalorder %s406, 7
        %s408 = scalar_select %p407, %s406, 7
        %s409 = smul.addr %s408, 4
        %s410 = scalar_lea.vmem %s1, %s409
        %s411 = ssub.s32 1, %s20
        %s412 = smul.u32 4, %s411
      $region56: #{encoder_forward.1} parent=47 // pred_fallthru
        _
      // Predicated region
      $region57: #{encoder_forward.1} parent=47 // pred_check
        %p413 = pneg %p94
      $region58: #{encoder_forward.1} parent=47 // pred_check_branch
        %415 = sbr.rel (%p413) target = $region60
      $region59: #{encoder_forward.1} parent=47 // pred_region
        %s416 = smul.u32 4, %s20
        %p417 = scmp.lt.s32.totalorder %s416, 7
        %s418 = scalar_select %p417, %s416, 7
        %s419 = smul.addr %s418, 8
        %s420 = scalar_lea.vmem %s2, %s419
        %s421 = smul.u32 4, %s20
      $region60: #{encoder_forward.1} parent=47 // pred_fallthru
        _
      // Predicated region
      $region61: #{encoder_forward.1} parent=47 // pred_check
        %p422 = pneg %p122
      $region62: #{encoder_forward.1} parent=47 // pred_check_branch
        %424 = sbr.rel (%p422) target = $region64
      $region63: #{encoder_forward.1} parent=47 // pred_region
        %s425 = ssub.s32 1, %s20
        %s426 = smul.u32 4, %s425
        %p427 = scmp.lt.s32.totalorder %s426, 7
        %s428 = scalar_select %p427, %s426, 7
        %s429 = smul.addr %s428, 8
        %s430 = scalar_lea.vmem %s3, %s429
        %s431 = ssub.s32 1, %s20
        %s432 = smul.u32 4, %s431
      $region64: #{encoder_forward.1} parent=47 // pred_fallthru
        _
    $region48: #{encoder_forward.1} parent=5 // pred_fallthru
      _
    %p433 = scmp.le.s32.totalorder 1, %s20
    %p434 = scmp.lt.s32.totalorder %s20, 3
    %p435 = pnand %p433, %p434
    %p436 = pneg %p435
    // Predicated region
    $region65: #{encoder_forward.1} parent=5 // pred_check
      _
    $region66: #{encoder_forward.1} parent=5 // pred_check_branch
      %438 = sbr.rel (%p435) target = $region68
    $region67: #{encoder_forward.1} parent=5 // pred_region
      %s439 = ssub.s32 %s20, 1
      %s440 = smul.u32 4, %s25
      %p441 = scmp.lt.s32.totalorder %s440, 7
      %s442 = scalar_select %p441, %s440, 7
      %s443 = smul.addr %s442, 4
      %s444 = scalar_lea.vmem %s0, %s443
      %p445 = pneg %p46
      %p446 = pneg %p43
      %s447 = ssub.s32 1, %s25
      %s448 = smul.u32 4, %s447
      %p449 = scmp.lt.s32.totalorder %s448, 7
      %s450 = scalar_select %p449, %s448, 7
      %s451 = smul.addr %s450, 4
      %s452 = scalar_lea.vmem %s1, %s451
      %p453 = pneg %p74
      %p454 = pneg %p71
      %s455 = smul.u32 4, %s25
      %p456 = scmp.lt.s32.totalorder %s455, 7
      %s457 = scalar_select %p456, %s455, 7
      %s458 = smul.addr %s457, 8
      %s459 = scalar_lea.vmem %s2, %s458
      %p460 = pneg %p100
      %p461 = pneg %p97
      %s462 = ssub.s32 1, %s25
      %s463 = smul.u32 4, %s462
      %p464 = scmp.lt.s32.totalorder %s463, 7
      %s465 = scalar_select %p464, %s463, 7
      %s466 = smul.addr %s465, 8
      %s467 = scalar_lea.vmem %s3, %s466
      %p468 = pneg %p128
      %p469 = pneg %p125
      %p470 = pneg %p149
      %p471 = pneg %p146
      %p472 = pneg %p170
      %p473 = pneg %p167
      %p474 = pneg %p191
      %p475 = pneg %p188
      %p476 = pneg %p212
      %p477 = pneg %p209
      %p478 = pneg %p233
      %p479 = pneg %p230
      %p480 = pneg %p254
      %p481 = pneg %p251
      %p482 = pneg %p275
      %p483 = pneg %p272
      %p484 = pneg %p296
      %p485 = pneg %p293
      %p486 = pneg %p322
      %p487 = pneg %p319
      %s488 = smul.u32 4, %s25
      %p489 = scmp.lt.s32.totalorder %s488, 7
      %s490 = scalar_select %p489, %s488, 7
      %s491 = smul.addr %s490, 8
      %s492 = scalar_lea.vmem %s12, %s491
      %p493 = pneg %p350
      %p494 = pneg %p347
      %s495 = ssub.s32 1, %s25
      %s496 = smul.u32 4, %s495
      %p497 = scmp.lt.s32.totalorder %s496, 7
      %s498 = scalar_select %p497, %s496, 7
      %s499 = smul.addr %s498, 8
      %s500 = scalar_lea.vmem %s13, %s499
      %s501 = smul.u32 4, %s25
      %p502 = scmp.lt.s32.totalorder %s501, 7
      %s503 = scalar_select %p502, %s501, 7
      %s504 = smul.addr %s503, 4
      %s505 = scalar_lea.vmem %s0, %s504
      %s506 = smul.u32 4, %s25
      %s507 = ssub.s32 1, %s25
      %s508 = smul.u32 4, %s507
      %p509 = scmp.lt.s32.totalorder %s508, 7
      %s510 = scalar_select %p509, %s508, 7
      %s511 = smul.addr %s510, 4
      %s512 = scalar_lea.vmem %s1, %s511
      %s513 = ssub.s32 1, %s25
      %s514 = smul.u32 4, %s513
      %s515 = smul.u32 4, %s25
      %p516 = scmp.lt.s32.totalorder %s515, 7
      %s517 = scalar_select %p516, %s515, 7
      %s518 = smul.addr %s517, 8
      %s519 = scalar_lea.vmem %s2, %s518
      %s520 = smul.u32 4, %s25
      %s521 = ssub.s32 1, %s25
      %s522 = smul.u32 4, %s521
      %p523 = scmp.lt.s32.totalorder %s522, 7
      %s524 = scalar_select %p523, %s522, 7
      %s525 = smul.addr %s524, 8
      %s526 = scalar_lea.vmem %s3, %s525
      %s527 = ssub.s32 1, %s25
      %s528 = smul.u32 4, %s527
      %s529 = smul.u32 4, %s25
      %p530 = scmp.lt.s32.totalorder %s529, 7
      %s531 = scalar_select %p530, %s529, 7
      %s532 = smul.addr %s531, 8
      %s533 = scalar_lea.vmem %s12, %s532
      %s534 = smul.u32 4, %s25
      %s535 = ssub.s32 1, %s25
      %s536 = smul.u32 4, %s535
      %p537 = scmp.lt.s32.totalorder %s536, 7
      %s538 = scalar_select %p537, %s536, 7
      %s539 = smul.addr %s538, 8
      %s540 = scalar_lea.vmem %s13, %s539
      %s541 = ssub.s32 1, %s25
      %s542 = smul.u32 4, %s541
      %p544 = scmp.eq.s32.totalorder %s25, 0
      // Predicated region
      $region69: #{encoder_forward.1} parent=67 // pred_check
        %p545 = pneg %p544
      $region70: #{encoder_forward.1} parent=67 // pred_check_branch
        %547 = sbr.rel (%p545) target = $region72
      $region71: #{encoder_forward.1} parent=67 // pred_region
        %548 = vst [vmem:[#allocation4] sm:$0xff] 0.0
        %549 = vst [vmem:[#allocation5] sm:$0xff] 0.0
      $region72: #{encoder_forward.1} parent=67 // pred_fallthru
        _
      %v550 = vld [vmem:[%s505] sm:$0xf]
      %v551 = vld [vmem:[%s505 + $0x4] sm:$0xf]
      %v552 = vld [vmem:[%s505 + $0x8] sm:$0xf]
      %v553 = vld [vmem:[%s505 + $0xc] sm:$0xf]
      %v554 = vld [vmem:[%s4] sm:$0xff]
      %v555 = vld [vmem:[%s4 + $0x8] sm:$0xf]
      %v556 = vld [vmem:[%s4 + $0xc] sm:$0xff]
      %v557 = vld [vmem:[%s4 + $0x14] sm:$0xf]
      %v558 = vld [vmem:[%s6] sm:$0x7]
      %v560 = vlaneseq
      %v561 = vshrl.u32 %v560, 7
      %v562 = vsub.s32 0, %v561
      %v563 = vrot.slane %v558, %v562
      %v564 = vlaneseq
      %v565 = vshrl.u32 %v564, 7
      %v566 = vsub.s32 1, %v565
      %v567 = vrot.slane %v558, %v566
      %v568 = vlaneseq
      %v569 = vshrl.u32 %v568, 7
      %v570 = vsub.s32 2, %v569
      %v571 = vrot.slane %v558, %v570
      %v579 = vunpack.c.l.b16 %v550
      %v580 = vunpack.c.l.b16 %v551
      %v581 = vunpack.c.l.b16 %v552
      %v582 = vunpack.c.l.b16 %v553
      %v583 = vpack.c.b16 %v580, %v579
      %v584 = vpack.c.b16 %v582, %v581
      %v589 = vunpack.c.l.b16 %v554
      %v590 = vunpack.c.h.b16 %v554
      %v591 = vunpack.c.l.b16 %v555
      %v592 = vunpack.c.l.b16 %v556
      %v593 = vunpack.c.h.b16 %v556
      %v594 = vunpack.c.l.b16 %v557
      %v595 = vpack.c.b16 %v592, %v589
      %v596 = vpack.c.b16 %v593, %v590
      %v597 = vpack.c.b16 %v594, %v591
      %vm601 = vcmask 130048
      %v603 = vsel %vm601, %v583, 0
      %v606 = vsel %vm601, %v584, 0
      %608 = vmatprep.subr.bf16.mxu0 %v596
      %609 = vmatpush1.bf16.msra.mxu0 %v595
      %610 = vmatprep.subr.bf16.mxu0 0
      %611 = vmatpush1.bf16.msra.mxu0 0
      %612 = vmatprep.subr.bf16.mxu0 0
      %613 = vmatpush1.bf16.msra.mxu0 0
      %614 = vmatprep.subr.bf16.mxu0 0
      %615 = vmatpush1.bf16.msra.mxu0 0
      %616 = vmatprep.subr.bf16.mxu0 0
      %617 = vmatpush1.bf16.msra.mxu0 0
      %618 = vmatprep.subr.bf16.mxu0 0
      %619 = vmatpush1.bf16.msra.mxu0 0
      %620 = vmatprep.subr.bf16.mxu0 0
      %621 = vmatpush1.bf16.msra.mxu0 0
      %622 = vmatprep.subr.bf16.mxu0 0
      %623 = vmatpush1.bf16.msra.mxu0 0
      %624 = vmatprep.subr.bf16.mxu0 0
      %625 = vmatpush1.bf16.msra.mxu0 0
      %626 = vmatprep.subr.bf16.mxu0 0
      %627 = vmatpush1.bf16.msra.mxu0 0
      %628 = vmatprep.subr.bf16.mxu0 0
      %629 = vmatpush1.bf16.msra.mxu0 0
      %630 = vmatprep.subr.bf16.mxu0 0
      %631 = vmatpush1.bf16.msra.mxu0 0
      %632 = vmatprep.subr.bf16.mxu0 0
      %633 = vmatpush1.bf16.msra.mxu0 0
      %634 = vmatprep.subr.bf16.mxu0 0
      %635 = vmatpush1.bf16.msra.mxu0 0
      %636 = vmatprep.subr.bf16.mxu0 0
      %637 = vmatpush1.bf16.msra.mxu0 0
      %638 = vmatprep.subr.bf16.mxu0 0
      %639 = vmatpush1.bf16.msra.mxu0 0
      %640 = vmatprep.mubr.bf16.mxu0 0
      %641 = vmatmul.mubr.bf16.gmra.mrb[0].mxu0 %v603
      %v642 = vpop.f32.mrb[0].mxu0
      %v643 = vadd.f32 %v563, %v642
      %v644 = vpop.f32.mrb[0].mxu0
      %v645 = vadd.f32 %v567, %v644
      %v646 = vpop.f32.mrb[0].mxu0
      %v647 = vadd.f32 %v563, %v646
      %v648 = vpop.f32.mrb[0].mxu0
      %v649 = vadd.f32 %v567, %v648
      %650 = vmatprep.mubr.bf16.mxu0 0
      %651 = vmatmul.mubr.bf16.gmra.mrb[0].mxu0 %v606
      %v652 = vpop.f32.mrb[0].mxu0
      %v653 = vadd.f32 %v563, %v652
      %v654 = vpop.f32.mrb[0].mxu0
      %v655 = vadd.f32 %v567, %v654
      %v656 = vpop.f32.mrb[0].mxu0
      %v657 = vadd.f32 %v563, %v656
      %v658 = vpop.f32.mrb[0].mxu0
      %v659 = vadd.f32 %v567, %v658
      %660 = vdwg.mxu0
      %661 = vmatprep.subr.bf16.mxu0 0
      %662 = vmatpush1.bf16.msra.mxu0 %v597
      %663 = vmatprep.subr.bf16.mxu0 0
      %664 = vmatpush1.bf16.msra.mxu0 0
      %665 = vmatprep.subr.bf16.mxu0 0
      %666 = vmatpush1.bf16.msra.mxu0 0
      %667 = vmatprep.subr.bf16.mxu0 0
      %668 = vmatpush1.bf16.msra.mxu0 0
      %669 = vmatprep.subr.bf16.mxu0 0
      %670 = vmatpush1.bf16.msra.mxu0 0
      %671 = vmatprep.subr.bf16.mxu0 0
      %672 = vmatpush1.bf16.msra.mxu0 0
      %673 = vmatprep.subr.bf16.mxu0 0
      %674 = vmatpush1.bf16.msra.mxu0 0
      %675 = vmatprep.subr.bf16.mxu0 0
      %676 = vmatpush1.bf16.msra.mxu0 0
      %677 = vmatprep.subr.bf16.mxu0 0
      %678 = vmatpush1.bf16.msra.mxu0 0
      %679 = vmatprep.subr.bf16.mxu0 0
      %680 = vmatpush1.bf16.msra.mxu0 0
      %681 = vmatprep.subr.bf16.mxu0 0
      %682 = vmatpush1.bf16.msra.mxu0 0
      %683 = vmatprep.subr.bf16.mxu0 0
      %684 = vmatpush1.bf16.msra.mxu0 0
      %685 = vmatprep.subr.bf16.mxu0 0
      %686 = vmatpush1.bf16.msra.mxu0 0
      %687 = vmatprep.subr.bf16.mxu0 0
      %688 = vmatpush1.bf16.msra.mxu0 0
      %689 = vmatprep.subr.bf16.mxu0 0
      %690 = vmatpush1.bf16.msra.mxu0 0
      %691 = vmatprep.subr.bf16.mxu0 0
      %692 = vmatpush1.bf16.msra.mxu0 0
      %693 = vmatprep.mubr.bf16.mxu0 0
      %694 = vmatmul.mubr.bf16.gmra.mrb[0].mxu0 %v603
      %v695 = vpop.f32.mrb[0].mxu0
      %v696 = vadd.f32 %v571, %v695
      %v697 = vpop.f32.mrb[0].mxu0
      %v698 = vpop.f32.mrb[0].mxu0
      %v699 = vadd.f32 %v571, %v698
      %v700 = vpop.f32.mrb[0].mxu0
      %701 = vmatprep.mubr.bf16.mxu0 0
      %702 = vmatmul.mubr.bf16.gmra.mrb[0].mxu0 %v606
      %v703 = vpop.f32.mrb[0].mxu0
      %v704 = vadd.f32 %v571, %v703
      %v705 = vpop.f32.mrb[0].mxu0
      %v706 = vpop.f32.mrb[0].mxu0
      %v707 = vadd.f32 %v571, %v706
      %v708 = vpop.f32.mrb[0].mxu0
      %709 = vdwg.mxu0
      %710 = vst [vmem:[#allocation2] sm:$0xff] %v643
      %711 = vst [vmem:[#allocation2 + $0x8] sm:$0xff] %v645
      %712 = vst [vmem:[#allocation2 + $0x10] sm:$0xff] %v696
      %713 = vst [vmem:[#allocation2 + $0x18] sm:$0xff] %v647
      %714 = vst [vmem:[#allocation2 + $0x20] sm:$0xff] %v649
      %715 = vst [vmem:[#allocation2 + $0x28] sm:$0xff] %v699
      %716 = vst [vmem:[#allocation2 + $0x30] sm:$0xff] %v653
      %717 = vst [vmem:[#allocation2 + $0x38] sm:$0xff] %v655
      %718 = vst [vmem:[#allocation2 + $0x40] sm:$0xff] %v704
      %719 = vst [vmem:[#allocation2 + $0x48] sm:$0xff] %v657
      %720 = vst [vmem:[#allocation2 + $0x50] sm:$0xff] %v659
      %721 = vst [vmem:[#allocation2 + $0x58] sm:$0xff] %v707
      %v722 = vld [vmem:[%s512] sm:$0xf]
      %v723 = vld [vmem:[%s512 + $0x4] sm:$0xf]
      %v724 = vld [vmem:[%s512 + $0x8] sm:$0xf]
      %v725 = vld [vmem:[%s512 + $0xc] sm:$0xf]
      %v726 = vld [vmem:[%s8] sm:$0xff]
      %v727 = vld [vmem:[%s8 + $0x8] sm:$0xf]
      %v728 = vld [vmem:[%s8 + $0xc] sm:$0xff]
      %v729 = vld [vmem:[%s8 + $0x14] sm:$0xf]
      %v730 = vld [vmem:[%s10] sm:$0x7]
      %v732 = vlaneseq
      %v733 = vshrl.u32 %v732, 7
      %v734 = vsub.s32 0, %v733
      %v735 = vrot.slane %v730, %v734
      %v736 = vlaneseq
      %v737 = vshrl.u32 %v736, 7
      %v738 = vsub.s32 1, %v737
      %v739 = vrot.slane %v730, %v738
      %v740 = vlaneseq
      %v741 = vshrl.u32 %v740, 7
      %v742 = vsub.s32 2, %v741
      %v743 = vrot.slane %v730, %v742
      %v751 = vunpack.c.l.b16 %v722
      %v752 = vunpack.c.l.b16 %v723
      %v753 = vunpack.c.l.b16 %v724
      %v754 = vunpack.c.l.b16 %v725
      %v755 = vpack.c.b16 %v752, %v751
      %v756 = vpack.c.b16 %v754, %v753
      %v761 = vunpack.c.l.b16 %v726
      %v762 = vunpack.c.h.b16 %v726
      %v763 = vunpack.c.l.b16 %v727
      %v764 = vunpack.c.l.b16 %v728
      %v765 = vunpack.c.h.b16 %v728
      %v766 = vunpack.c.l.b16 %v729
      %v767 = vpack.c.b16 %v764, %v761
      %v768 = vpack.c.b16 %v765, %v762
      %v769 = vpack.c.b16 %v766, %v763
      %v774 = vsel %vm601, %v755, 0
      %v777 = vsel %vm601, %v756, 0
      %779 = vmatprep.subr.bf16.mxu0 %v768
      %780 = vmatpush1.bf16.msra.mxu0 %v767
      %781 = vmatprep.subr.bf16.mxu0 0
      %782 = vmatpush1.bf16.msra.mxu0 0
      %783 = vmatprep.subr.bf16.mxu0 0
      %784 = vmatpush1.bf16.msra.mxu0 0
      %785 = vmatprep.subr.bf16.mxu0 0
      %786 = vmatpush1.bf16.msra.mxu0 0
      %787 = vmatprep.subr.bf16.mxu0 0
      %788 = vmatpush1.bf16.msra.mxu0 0
      %789 = vmatprep.subr.bf16.mxu0 0
      %790 = vmatpush1.bf16.msra.mxu0 0
      %791 = vmatprep.subr.bf16.mxu0 0
      %792 = vmatpush1.bf16.msra.mxu0 0
      %793 = vmatprep.subr.bf16.mxu0 0
      %794 = vmatpush1.bf16.msra.mxu0 0
      %795 = vmatprep.subr.bf16.mxu0 0
      %796 = vmatpush1.bf16.msra.mxu0 0
      %797 = vmatprep.subr.bf16.mxu0 0
      %798 = vmatpush1.bf16.msra.mxu0 0
      %799 = vmatprep.subr.bf16.mxu0 0
      %800 = vmatpush1.bf16.msra.mxu0 0
      %801 = vmatprep.subr.bf16.mxu0 0
      %802 = vmatpush1.bf16.msra.mxu0 0
      %803 = vmatprep.subr.bf16.mxu0 0
      %804 = vmatpush1.bf16.msra.mxu0 0
      %805 = vmatprep.subr.bf16.mxu0 0
      %806 = vmatpush1.bf16.msra.mxu0 0
      %807 = vmatprep.subr.bf16.mxu0 0
      %808 = vmatpush1.bf16.msra.mxu0 0
      %809 = vmatprep.subr.bf16.mxu0 0
      %810 = vmatpush1.bf16.msra.mxu0 0
      %811 = vmatprep.mubr.bf16.mxu0 0
      %812 = vmatmul.mubr.bf16.gmra.mrb[0].mxu0 %v774
      %v813 = vpop.f32.mrb[0].mxu0
      %v814 = vadd.f32 %v735, %v813
      %v815 = vpop.f32.mrb[0].mxu0
      %v816 = vadd.f32 %v739, %v815
      %v817 = vpop.f32.mrb[0].mxu0
      %v818 = vadd.f32 %v735, %v817
      %v819 = vpop.f32.mrb[0].mxu0
      %v820 = vadd.f32 %v739, %v819
      %821 = vmatprep.mubr.bf16.mxu0 0
      %822 = vmatmul.mubr.bf16.gmra.mrb[0].mxu0 %v777
      %v823 = vpop.f32.mrb[0].mxu0
      %v824 = vadd.f32 %v735, %v823
      %v825 = vpop.f32.mrb[0].mxu0
      %v826 = vadd.f32 %v739, %v825
      %v827 = vpop.f32.mrb[0].mxu0
      %v828 = vadd.f32 %v735, %v827
      %v829 = vpop.f32.mrb[0].mxu0
      %v830 = vadd.f32 %v739, %v829
      %831 = vdwg.mxu0
      %832 = vmatprep.subr.bf16.mxu0 0
      %833 = vmatpush1.bf16.msra.mxu0 %v769
      %834 = vmatprep.subr.bf16.mxu0 0
      %835 = vmatpush1.bf16.msra.mxu0 0
      %836 = vmatprep.subr.bf16.mxu0 0
      %837 = vmatpush1.bf16.msra.mxu0 0
      %838 = vmatprep.subr.bf16.mxu0 0
      %839 = vmatpush1.bf16.msra.mxu0 0
      %840 = vmatprep.subr.bf16.mxu0 0
      %841 = vmatpush1.bf16.msra.mxu0 0
      %842 = vmatprep.subr.bf16.mxu0 0
      %843 = vmatpush1.bf16.msra.mxu0 0
      %844 = vmatprep.subr.bf16.mxu0 0
      %845 = vmatpush1.bf16.msra.mxu0 0
      %846 = vmatprep.subr.bf16.mxu0 0
      %847 = vmatpush1.bf16.msra.mxu0 0
      %848 = vmatprep.subr.bf16.mxu0 0
      %849 = vmatpush1.bf16.msra.mxu0 0
      %850 = vmatprep.subr.bf16.mxu0 0
      %851 = vmatpush1.bf16.msra.mxu0 0
      %852 = vmatprep.subr.bf16.mxu0 0
      %853 = vmatpush1.bf16.msra.mxu0 0
      %854 = vmatprep.subr.bf16.mxu0 0
      %855 = vmatpush1.bf16.msra.mxu0 0
      %856 = vmatprep.subr.bf16.mxu0 0
      %857 = vmatpush1.bf16.msra.mxu0 0
      %858 = vmatprep.subr.bf16.mxu0 0
      %859 = vmatpush1.bf16.msra.mxu0 0
      %860 = vmatprep.subr.bf16.mxu0 0
      %861 = vmatpush1.bf16.msra.mxu0 0
      %862 = vmatprep.subr.bf16.mxu0 0
      %863 = vmatpush1.bf16.msra.mxu0 0
      %864 = vmatprep.mubr.bf16.mxu0 0
      %865 = vmatmul.mubr.bf16.gmra.mrb[0].mxu0 %v774
      %v866 = vpop.f32.mrb[0].mxu0
      %v867 = vadd.f32 %v743, %v866
      %v868 = vpop.f32.mrb[0].mxu0
      %v869 = vpop.f32.mrb[0].mxu0
      %v870 = vadd.f32 %v743, %v869
      %v871 = vpop.f32.mrb[0].mxu0
      %872 = vmatprep.mubr.bf16.mxu0 0
      %873 = vmatmul.mubr.bf16.gmra.mrb[0].mxu0 %v777
      %v874 = vpop.f32.mrb[0].mxu0
      %v875 = vadd.f32 %v743, %v874
      %v876 = vpop.f32.mrb[0].mxu0
      %v877 = vpop.f32.mrb[0].mxu0
      %v878 = vadd.f32 %v743, %v877
      %v879 = vpop.f32.mrb[0].mxu0
      %880 = vdwg.mxu0
      %881 = vst [vmem:[#allocation3] sm:$0xff] %v814
      %882 = vst [vmem:[#allocation3 + $0x8] sm:$0xff] %v816
      %883 = vst [vmem:[#allocation3 + $0x10] sm:$0xff] %v867
      %884 = vst [vmem:[#allocation3 + $0x18] sm:$0xff] %v818
      %885 = vst [vmem:[#allocation3 + $0x20] sm:$0xff] %v820
      %886 = vst [vmem:[#allocation3 + $0x28] sm:$0xff] %v870
      %887 = vst [vmem:[#allocation3 + $0x30] sm:$0xff] %v824
      %888 = vst [vmem:[#allocation3 + $0x38] sm:$0xff] %v826
      %889 = vst [vmem:[#allocation3 + $0x40] sm:$0xff] %v875
      %890 = vst [vmem:[#allocation3 + $0x48] sm:$0xff] %v828
      %891 = vst [vmem:[#allocation3 + $0x50] sm:$0xff] %v830
      %892 = vst [vmem:[#allocation3 + $0x58] sm:$0xff] %v878
      %v893 = vld [vmem:[#allocation4] sm:$0xff]
      %v894 = vld [vmem:[#allocation5] sm:$0xff]
      %v895 = vld [vmem:[#allocation2] sm:$0xff]
      %v896 = vld [vmem:[#allocation2 + $0x8] sm:$0xff]
      %v897 = vld [vmem:[#allocation2 + $0x10] sm:$0xff]
      %v898 = vpack.c.bf16 %v893, %v893
      %v899 = vld [vmem:[%s5] sm:$0xff]
      %v900 = vld [vmem:[%s5 + $0x8] sm:$0xf]
      %v901 = vld [vmem:[%s5 + $0xc] sm:$0xff]
      %v902 = vld [vmem:[%s5 + $0x14] sm:$0xf]
      %v903 = vld [vmem:[%s5 + $0x18] sm:$0xff]
      %v904 = vld [vmem:[%s5 + $0x20] sm:$0xf]
      %v905 = vld [vmem:[%s5 + $0x24] sm:$0xff]
      %v906 = vld [vmem:[%s5 + $0x2c] sm:$0xf]
      %v907 = vld [vmem:[%s5 + $0x30] sm:$0xff]
      %v908 = vld [vmem:[%s5 + $0x38] sm:$0xf]
      %v909 = vld [vmem:[%s5 + $0x3c] sm:$0xff]
      %v910 = vld [vmem:[%s5 + $0x44] sm:$0xf]
      %v911 = vld [vmem:[%s5 + $0x48] sm:$0xff]
      %v912 = vld [vmem:[%s5 + $0x50] sm:$0xf]
      %v913 = vld [vmem:[%s5 + $0x54] sm:$0xff]
      %v914 = vld [vmem:[%s5 + $0x5c] sm:$0xf]
      %v915 = vld [vmem:[%s5 + $0x60] sm:$0xff]
      %v916 = vld [vmem:[%s5 + $0x68] sm:$0xf]
      %v917 = vld [vmem:[%s5 + $0x6c] sm:$0xff]
      %v918 = vld [vmem:[%s5 + $0x74] sm:$0xf]
      %v919 = vld [vmem:[%s5 + $0x78] sm:$0xff]
      %v920 = vld [vmem:[%s5 + $0x80] sm:$0xf]
      %v921 = vld [vmem:[%s5 + $0x84] sm:$0xff]
      %v922 = vld [vmem:[%s5 + $0x8c] sm:$0xf]
      %v923 = vld [vmem:[%s5 + $0x90] sm:$0xff]
      %v924 = vld [vmem:[%s5 + $0x98] sm:$0xf]
      %v925 = vld [vmem:[%s5 + $0x9c] sm:$0xff]
      %v926 = vld [vmem:[%s5 + $0xa4] sm:$0xf]
      %v927 = vld [vmem:[%s5 + $0xa8] sm:$0xff]
      %v928 = vld [vmem:[%s5 + $0xb0] sm:$0xf]
      %v929 = vld [vmem:[%s5 + $0xb4] sm:$0xff]
      %v930 = vld [vmem:[%s5 + $0xbc] sm:$0xf]
      %v931 = vld [vmem:[%s7] sm:$0x7]
      %v933 = vlaneseq
      %v934 = vshrl.u32 %v933, 7
      %v935 = vsub.s32 0, %v934
      %v936 = vrot.slane %v931, %v935
      %v937 = vlaneseq
      %v938 = vshrl.u32 %v937, 7
      %v939 = vsub.s32 1, %v938
      %v940 = vrot.slane %v931, %v939
      %v941 = vlaneseq
      %v942 = vshrl.u32 %v941, 7
      %v943 = vsub.s32 2, %v942
      %v944 = vrot.slane %v931, %v943
      %v980 = vunpack.c.l.b16 %v899
      %v981 = vunpack.c.h.b16 %v899
      %v982 = vunpack.c.l.b16 %v900
      %v983 = vunpack.c.l.b16 %v901
      %v984 = vunpack.c.h.b16 %v901
      %v985 = vunpack.c.l.b16 %v902
      %v986 = vunpack.c.l.b16 %v903
      %v987 = vunpack.c.h.b16 %v903
      %v988 = vunpack.c.l.b16 %v904
      %v989 = vunpack.c.l.b16 %v905
      %v990 = vunpack.c.h.b16 %v905
      %v991 = vunpack.c.l.b16 %v906
      %v992 = vunpack.c.l.b16 %v907
      %v993 = vunpack.c.h.b16 %v907
      %v994 = vunpack.c.l.b16 %v908
      %v995 = vunpack.c.l.b16 %v909
      %v996 = vunpack.c.h.b16 %v909
      %v997 = vunpack.c.l.b16 %v910
      %v998 = vunpack.c.l.b16 %v911
      %v999 = vunpack.c.h.b16 %v911
      %v1000 = vunpack.c.l.b16 %v912
      %v1001 = vunpack.c.l.b16 %v913
      %v1002 = vunpack.c.h.b16 %v913
      %v1003 = vunpack.c.l.b16 %v914
      %v1004 = vunpack.c.l.b16 %v915
      %v1005 = vunpack.c.h.b16 %v915
      %v1006 = vunpack.c.l.b16 %v916
      %v1007 = vunpack.c.l.b16 %v917
      %v1008 = vunpack.c.h.b16 %v917
      %v1009 = vunpack.c.l.b16 %v918
      %v1010 = vunpack.c.l.b16 %v919
      %v1011 = vunpack.c.h.b16 %v919
      %v1012 = vunpack.c.l.b16 %v920
      %v1013 = vunpack.c.l.b16 %v921
      %v1014 = vunpack.c.h.b16 %v921
      %v1015 = vunpack.c.l.b16 %v922
      %v1016 = vunpack.c.l.b16 %v923
      %v1017 = vunpack.c.h.b16 %v923
      %v1018 = vunpack.c.l.b16 %v924
      %v1019 = vunpack.c.l.b16 %v925
      %v1020 = vunpack.c.h.b16 %v925
      %v1021 = vunpack.c.l.b16 %v926
      %v1022 = vunpack.c.l.b16 %v927
      %v1023 = vunpack.c.h.b16 %v927
      %v1024 = vunpack.c.l.b16 %v928
      %v1025 = vunpack.c.l.b16 %v929
      %v1026 = vunpack.c.h.b16 %v929
      %v1027 = vunpack.c.l.b16 %v930
      %v1028 = vpack.c.b16 %v983, %v980
      %v1029 = vpack.c.b16 %v984, %v981
      %v1030 = vpack.c.b16 %v985, %v982
      %v1031 = vpack.c.b16 %v989, %v986
      %v1032 = vpack.c.b16 %v990, %v987
      %v1033 = vpack.c.b16 %v991, %v988
      %v1034 = vpack.c.b16 %v995, %v992
      %v1035 = vpack.c.b16 %v996, %v993
      %v1036 = vpack.c.b16 %v997, %v994
      %v1037 = vpack.c.b16 %v1001, %v998
      %v1038 = vpack.c.b16 %v1002, %v999
      %v1039 = vpack.c.b16 %v1003, %v1000
      %v1040 = vpack.c.b16 %v1007, %v1004
      %v1041 = vpack.c.b16 %v1008, %v1005
      %v1042 = vpack.c.b16 %v1009, %v1006
      %v1043 = vpack.c.b16 %v1013, %v1010
      %v1044 = vpack.c.b16 %v1014, %v1011
      %v1045 = vpack.c.b16 %v1015, %v1012
      %v1046 = vpack.c.b16 %v1019, %v1016
      %v1047 = vpack.c.b16 %v1020, %v1017
      %v1048 = vpack.c.b16 %v1021, %v1018
      %v1049 = vpack.c.b16 %v1025, %v1022
      %v1050 = vpack.c.b16 %v1026, %v1023
      %v1051 = vpack.c.b16 %v1027, %v1024
      %1076 = vmatprep.subr.bf16.mxu0 %v1029
      %1077 = vmatpush1.bf16.msra.mxu0 %v1028
      %1078 = vmatprep.subr.bf16.mxu0 %v1032
      %1079 = vmatpush1.bf16.msra.mxu0 %v1031
      %1080 = vmatprep.subr.bf16.mxu0 %v1035
      %1081 = vmatpush1.bf16.msra.mxu0 %v1034
      %1082 = vmatprep.subr.bf16.mxu0 %v1038
      %1083 = vmatpush1.bf16.msra.mxu0 %v1037
      %1084 = vmatprep.subr.bf16.mxu0 %v1041
      %1085 = vmatpush1.bf16.msra.mxu0 %v1040
      %1086 = vmatprep.subr.bf16.mxu0 %v1044
      %1087 = vmatpush1.bf16.msra.mxu0 %v1043
      %1088 = vmatprep.subr.bf16.mxu0 %v1047
      %1089 = vmatpush1.bf16.msra.mxu0 %v1046
      %1090 = vmatprep.subr.bf16.mxu0 %v1050
      %1091 = vmatpush1.bf16.msra.mxu0 %v1049
      %1092 = vmatprep.subr.bf16.mxu0 0
      %1093 = vmatpush1.bf16.msra.mxu0 0
      %1094 = vmatprep.subr.bf16.mxu0 0
      %1095 = vmatpush1.bf16.msra.mxu0 0
      %1096 = vmatprep.subr.bf16.mxu0 0
      %1097 = vmatpush1.bf16.msra.mxu0 0
      %1098 = vmatprep.subr.bf16.mxu0 0
      %1099 = vmatpush1.bf16.msra.mxu0 0
      %1100 = vmatprep.subr.bf16.mxu0 0
      %1101 = vmatpush1.bf16.msra.mxu0 0
      %1102 = vmatprep.subr.bf16.mxu0 0
      %1103 = vmatpush1.bf16.msra.mxu0 0
      %1104 = vmatprep.subr.bf16.mxu0 0
      %1105 = vmatpush1.bf16.msra.mxu0 0
      %1106 = vmatprep.subr.bf16.mxu0 0
      %1107 = vmatpush1.bf16.msra.mxu0 0
      %1108 = vmatprep.mubr.bf16.mxu0 0
      %1109 = vmatmul.mubr.bf16.gmra.mrb[0].mxu0 %v898
      %v1110 = vpop.f32.mrb[0].mxu0
      %v1111 = vadd.f32 %v936, %v1110
      %v1112 = vpop.f32.mrb[0].mxu0
      %v1113 = vadd.f32 %v940, %v1112
      %v1114 = vpop.f32.mrb[0].mxu0
      %v1115 = vpop.f32.mrb[0].mxu0
      %1116 = vdwg.mxu0
      %1117 = vmatprep.subr.bf16.mxu0 0
      %1118 = vmatpush1.bf16.msra.mxu0 %v1030
      %1119 = vmatprep.subr.bf16.mxu0 0
      %1120 = vmatpush1.bf16.msra.mxu0 %v1033
      %1121 = vmatprep.subr.bf16.mxu0 0
      %1122 = vmatpush1.bf16.msra.mxu0 %v1036
      %1123 = vmatprep.subr.bf16.mxu0 0
      %1124 = vmatpush1.bf16.msra.mxu0 %v1039
      %1125 = vmatprep.subr.bf16.mxu0 0
      %1126 = vmatpush1.bf16.msra.mxu0 %v1042
      %1127 = vmatprep.subr.bf16.mxu0 0
      %1128 = vmatpush1.bf16.msra.mxu0 %v1045
      %1129 = vmatprep.subr.bf16.mxu0 0
      %1130 = vmatpush1.bf16.msra.mxu0 %v1048
      %1131 = vmatprep.subr.bf16.mxu0 0
      %1132 = vmatpush1.bf16.msra.mxu0 %v1051
      %1133 = vmatprep.subr.bf16.mxu0 0
      %1134 = vmatpush1.bf16.msra.mxu0 0
      %1135 = vmatprep.subr.bf16.mxu0 0
      %1136 = vmatpush1.bf16.msra.mxu0 0
      %1137 = vmatprep.subr.bf16.mxu0 0
      %1138 = vmatpush1.bf16.msra.mxu0 0
      %1139 = vmatprep.subr.bf16.mxu0 0
      %1140 = vmatpush1.bf16.msra.mxu0 0
      %1141 = vmatprep.subr.bf16.mxu0 0
      %1142 = vmatpush1.bf16.msra.mxu0 0
      %1143 = vmatprep.subr.bf16.mxu0 0
      %1144 = vmatpush1.bf16.msra.mxu0 0
      %1145 = vmatprep.subr.bf16.mxu0 0
      %1146 = vmatpush1.bf16.msra.mxu0 0
      %1147 = vmatprep.subr.bf16.mxu0 0
      %1148 = vmatpush1.bf16.msra.mxu0 0
      %1149 = vmatprep.mubr.bf16.mxu0 0
      %1150 = vmatmul.mubr.bf16.gmra.mrb[0].mxu0 %v898
      %v1151 = vpop.f32.mrb[0].mxu0
      %v1152 = vadd.f32 %v944, %v1151
      %v1153 = vpop.f32.mrb[0].mxu0
      %v1154 = vpop.f32.mrb[0].mxu0
      %v1155 = vpop.f32.mrb[0].mxu0
      %1156 = vdwg.mxu0
      %v1157 = vadd.f32 %v895, %v1111
      %v1158 = vxor.u32 %v1157, 2147483648
      %v1159 = vmul.f32 %v1158, 1.442695
      %v1160 = vpow.pop %v1159
      %v1161 = vadd.f32 %v1160, 1.0
      %v1162 = vrcp.pop %v1161
      %v1163 = vmul.f32 1.0, %v1162
      %v1164 = vadd.f32 %v896, %v1113
      %v1165 = vxor.u32 %v1164, 2147483648
      %v1166 = vmul.f32 %v1165, 1.442695
      %v1167 = vpow.pop %v1166
      %v1168 = vadd.f32 %v1167, 1.0
      %v1169 = vrcp.pop %v1168
      %v1170 = vmul.f32 1.0, %v1169
      %v1171 = vmul.f32 %v1163, %v1152
      %v1172 = vadd.f32 %v897, %v1171
      %v1173 = vtanh.pop %v1172
      %v1174 = vsub.f32 1.0, %v1170
      %v1175 = vmul.f32 %v1174, %v1173
      %v1176 = vmul.f32 %v1170, %v893
      %v1177 = vadd.f32 %v1175, %v1176
      %v1178 = vld [vmem:[%s519] sm:$0xff]
      %1180 = vset.pattern.permute.xlu0 0
      %1181 = vperm.xlu0 %1180, %v1178
      %v1182 = vpop.permute.xlu0 %1181
      %v1184 = vmul.f32 %v1182, %v1177
      %1185 = vst [vmem:[%s533] sm:$0xff] %v1184
      %v1186 = vsub.f32 1.0, %v1178
      %1188 = vset.pattern.permute.xlu0 0
      %1189 = vperm.xlu0 %1188, %v1186
      %v1190 = vpop.permute.xlu0 %1189
      %v1192 = vmul.f32 %v1190, %v893
      %v1193 = vadd.f32 %v1184, %v1192
      %v1194 = vld [vmem:[#allocation3 + $0x48] sm:$0xff]
      %v1195 = vld [vmem:[#allocation3 + $0x50] sm:$0xff]
      %v1196 = vld [vmem:[#allocation3 + $0x58] sm:$0xff]
      %v1197 = vpack.c.bf16 %v894, %v894
      %v1198 = vld [vmem:[%s9] sm:$0xff]
      %v1199 = vld [vmem:[%s9 + $0x8] sm:$0xf]
      %v1200 = vld [vmem:[%s9 + $0xc] sm:$0xff]
      %v1201 = vld [vmem:[%s9 + $0x14] sm:$0xf]
      %v1202 = vld [vmem:[%s9 + $0x18] sm:$0xff]
      %v1203 = vld [vmem:[%s9 + $0x20] sm:$0xf]
      %v1204 = vld [vmem:[%s9 + $0x24] sm:$0xff]
      %v1205 = vld [vmem:[%s9 + $0x2c] sm:$0xf]
      %v1206 = vld [vmem:[%s9 + $0x30] sm:$0xff]
      %v1207 = vld [vmem:[%s9 + $0x38] sm:$0xf]
      %v1208 = vld [vmem:[%s9 + $0x3c] sm:$0xff]
      %v1209 = vld [vmem:[%s9 + $0x44] sm:$0xf]
      %v1210 = vld [vmem:[%s9 + $0x48] sm:$0xff]
      %v1211 = vld [vmem:[%s9 + $0x50] sm:$0xf]
      %v1212 = vld [vmem:[%s9 + $0x54] sm:$0xff]
      %v1213 = vld [vmem:[%s9 + $0x5c] sm:$0xf]
      %v1214 = vld [vmem:[%s9 + $0x60] sm:$0xff]
      %v1215 = vld [vmem:[%s9 + $0x68] sm:$0xf]
      %v1216 = vld [vmem:[%s9 + $0x6c] sm:$0xff]
      %v1217 = vld [vmem:[%s9 + $0x74] sm:$0xf]
      %v1218 = vld [vmem:[%s9 + $0x78] sm:$0xff]
      %v1219 = vld [vmem:[%s9 + $0x80] sm:$0xf]
      %v1220 = vld [vmem:[%s9 + $0x84] sm:$0xff]
      %v1221 = vld [vmem:[%s9 + $0x8c] sm:$0xf]
      %v1222 = vld [vmem:[%s9 + $0x90] sm:$0xff]
      %v1223 = vld [vmem:[%s9 + $0x98] sm:$0xf]
      %v1224 = vld [vmem:[%s9 + $0x9c] sm:$0xff]
      %v1225 = vld [vmem:[%s9 + $0xa4] sm:$0xf]
      %v1226 = vld [vmem:[%s9 + $0xa8] sm:$0xff]
      %v1227 = vld [vmem:[%s9 + $0xb0] sm:$0xf]
      %v1228 = vld [vmem:[%s9 + $0xb4] sm:$0xff]
      %v1229 = vld [vmem:[%s9 + $0xbc] sm:$0xf]
      %v1230 = vld [vmem:[%s11] sm:$0x7]
      %v1232 = vlaneseq
      %v1233 = vshrl.u32 %v1232, 7
      %v1234 = vsub.s32 0, %v1233
      %v1235 = vrot.slane %v1230, %v1234
      %v1236 = vlaneseq
      %v1237 = vshrl.u32 %v1236, 7
      %v1238 = vsub.s32 1, %v1237
      %v1239 = vrot.slane %v1230, %v1238
      %v1240 = vlaneseq
      %v1241 = vshrl.u32 %v1240, 7
      %v1242 = vsub.s32 2, %v1241
      %v1243 = vrot.slane %v1230, %v1242
      %v1279 = vunpack.c.l.b16 %v1198
      %v1280 = vunpack.c.h.b16 %v1198
      %v1281 = vunpack.c.l.b16 %v1199
      %v1282 = vunpack.c.l.b16 %v1200
      %v1283 = vunpack.c.h.b16 %v1200
      %v1284 = vunpack.c.l.b16 %v1201
      %v1285 = vunpack.c.l.b16 %v1202
      %v1286 = vunpack.c.h.b16 %v1202
      %v1287 = vunpack.c.l.b16 %v1203
      %v1288 = vunpack.c.l.b16 %v1204
      %v1289 = vunpack.c.h.b16 %v1204
      %v1290 = vunpack.c.l.b16 %v1205
      %v1291 = vunpack.c.l.b16 %v1206
      %v1292 = vunpack.c.h.b16 %v1206
      %v1293 = vunpack.c.l.b16 %v1207
      %v1294 = vunpack.c.l.b16 %v1208
      %v1295 = vunpack.c.h.b16 %v1208
      %v1296 = vunpack.c.l.b16 %v1209
      %v1297 = vunpack.c.l.b16 %v1210
      %v1298 = vunpack.c.h.b16 %v1210
      %v1299 = vunpack.c.l.b16 %v1211
      %v1300 = vunpack.c.l.b16 %v1212
      %v1301 = vunpack.c.h.b16 %v1212
      %v1302 = vunpack.c.l.b16 %v1213
      %v1303 = vunpack.c.l.b16 %v1214
      %v1304 = vunpack.c.h.b16 %v1214
      %v1305 = vunpack.c.l.b16 %v1215
      %v1306 = vunpack.c.l.b16 %v1216
      %v1307 = vunpack.c.h.b16 %v1216
      %v1308 = vunpack.c.l.b16 %v1217
      %v1309 = vunpack.c.l.b16 %v1218
      %v1310 = vunpack.c.h.b16 %v1218
      %v1311 = vunpack.c.l.b16 %v1219
      %v1312 = vunpack.c.l.b16 %v1220
      %v1313 = vunpack.c.h.b16 %v1220
      %v1314 = vunpack.c.l.b16 %v1221
      %v1315 = vunpack.c.l.b16 %v1222
      %v1316 = vunpack.c.h.b16 %v1222
      %v1317 = vunpack.c.l.b16 %v1223
      %v1318 = vunpack.c.l.b16 %v1224
      %v1319 = vunpack.c.h.b16 %v1224
      %v1320 = vunpack.c.l.b16 %v1225
      %v1321 = vunpack.c.l.b16 %v1226
      %v1322 = vunpack.c.h.b16 %v1226
      %v1323 = vunpack.c.l.b16 %v1227
      %v1324 = vunpack.c.l.b16 %v1228
      %v1325 = vunpack.c.h.b16 %v1228
      %v1326 = vunpack.c.l.b16 %v1229
      %v1327 = vpack.c.b16 %v1282, %v1279
      %v1328 = vpack.c.b16 %v1283, %v1280
      %v1329 = vpack.c.b16 %v1284, %v1281
      %v1330 = vpack.c.b16 %v1288, %v1285
      %v1331 = vpack.c.b16 %v1289, %v1286
      %v1332 = vpack.c.b16 %v1290, %v1287
      %v1333 = vpack.c.b16 %v1294, %v1291
      %v1334 = vpack.c.b16 %v1295, %v1292
      %v1335 = vpack.c.b16 %v1296, %v1293
      %v1336 = vpack.c.b16 %v1300, %v1297
      %v1337 = vpack.c.b16 %v1301, %v1298
      %v1338 = vpack.c.b16 %v1302, %v1299
      %v1339 = vpack.c.b16 %v1306, %v1303
      %v1340 = vpack.c.b16 %v1307, %v1304
      %v1341 = vpack.c.b16 %v1308, %v1305
      %v1342 = vpack.c.b16 %v1312, %v1309
      %v1343 = vpack.c.b16 %v1313, %v1310
      %v1344 = vpack.c.b16 %v1314, %v1311
      %v1345 = vpack.c.b16 %v1318, %v1315
      %v1346 = vpack.c.b16 %v1319, %v1316
      %v1347 = vpack.c.b16 %v1320, %v1317
      %v1348 = vpack.c.b16 %v1324, %v1321
      %v1349 = vpack.c.b16 %v1325, %v1322
      %v1350 = vpack.c.b16 %v1326, %v1323
      %1375 = vmatprep.subr.bf16.mxu0 %v1328
      %1376 = vmatpush1.bf16.msra.mxu0 %v1327
      %1377 = vmatprep.subr.bf16.mxu0 %v1331
      %1378 = vmatpush1.bf16.msra.mxu0 %v1330
      %1379 = vmatprep.subr.bf16.mxu0 %v1334
      %1380 = vmatpush1.bf16.msra.mxu0 %v1333
      %1381 = vmatprep.subr.bf16.mxu0 %v1337
      %1382 = vmatpush1.bf16.msra.mxu0 %v1336
      %1383 = vmatprep.subr.bf16.mxu0 %v1340
      %1384 = vmatpush1.bf16.msra.mxu0 %v1339
      %1385 = vmatprep.subr.bf16.mxu0 %v1343
      %1386 = vmatpush1.bf16.msra.mxu0 %v1342
      %1387 = vmatprep.subr.bf16.mxu0 %v1346
      %1388 = vmatpush1.bf16.msra.mxu0 %v1345
      %1389 = vmatprep.subr.bf16.mxu0 %v1349
      %1390 = vmatpush1.bf16.msra.mxu0 %v1348
      %1391 = vmatprep.subr.bf16.mxu0 0
      %1392 = vmatpush1.bf16.msra.mxu0 0
      %1393 = vmatprep.subr.bf16.mxu0 0
      %1394 = vmatpush1.bf16.msra.mxu0 0
      %1395 = vmatprep.subr.bf16.mxu0 0
      %1396 = vmatpush1.bf16.msra.mxu0 0
      %1397 = vmatprep.subr.bf16.mxu0 0
      %1398 = vmatpush1.bf16.msra.mxu0 0
      %1399 = vmatprep.subr.bf16.mxu0 0
      %1400 = vmatpush1.bf16.msra.mxu0 0
      %1401 = vmatprep.subr.bf16.mxu0 0
      %1402 = vmatpush1.bf16.msra.mxu0 0
      %1403 = vmatprep.subr.bf16.mxu0 0
      %1404 = vmatpush1.bf16.msra.mxu0 0
      %1405 = vmatprep.subr.bf16.mxu0 0
      %1406 = vmatpush1.bf16.msra.mxu0 0
      %1407 = vmatprep.mubr.bf16.mxu0 0
      %1408 = vmatmul.mubr.bf16.gmra.mrb[0].mxu0 %v1197
      %v1409 = vpop.f32.mrb[0].mxu0
      %v1410 = vadd.f32 %v1235, %v1409
      %v1411 = vpop.f32.mrb[0].mxu0
      %v1412 = vadd.f32 %v1239, %v1411
      %v1413 = vpop.f32.mrb[0].mxu0
      %v1414 = vpop.f32.mrb[0].mxu0
      %1415 = vdwg.mxu0
      %1416 = vmatprep.subr.bf16.mxu0 0
      %1417 = vmatpush1.bf16.msra.mxu0 %v1329
      %1418 = vmatprep.subr.bf16.mxu0 0
      %1419 = vmatpush1.bf16.msra.mxu0 %v1332
      %1420 = vmatprep.subr.bf16.mxu0 0
      %1421 = vmatpush1.bf16.msra.mxu0 %v1335
      %1422 = vmatprep.subr.bf16.mxu0 0
      %1423 = vmatpush1.bf16.msra.mxu0 %v1338
      %1424 = vmatprep.subr.bf16.mxu0 0
      %1425 = vmatpush1.bf16.msra.mxu0 %v1341
      %1426 = vmatprep.subr.bf16.mxu0 0
      %1427 = vmatpush1.bf16.msra.mxu0 %v1344
      %1428 = vmatprep.subr.bf16.mxu0 0
      %1429 = vmatpush1.bf16.msra.mxu0 %v1347
      %1430 = vmatprep.subr.bf16.mxu0 0
      %1431 = vmatpush1.bf16.msra.mxu0 %v1350
      %1432 = vmatprep.subr.bf16.mxu0 0
      %1433 = vmatpush1.bf16.msra.mxu0 0
      %1434 = vmatprep.subr.bf16.mxu0 0
      %1435 = vmatpush1.bf16.msra.mxu0 0
      %1436 = vmatprep.subr.bf16.mxu0 0
      %1437 = vmatpush1.bf16.msra.mxu0 0
      %1438 = vmatprep.subr.bf16.mxu0 0
      %1439 = vmatpush1.bf16.msra.mxu0 0
      %1440 = vmatprep.subr.bf16.mxu0 0
      %1441 = vmatpush1.bf16.msra.mxu0 0
      %1442 = vmatprep.subr.bf16.mxu0 0
      %1443 = vmatpush1.bf16.msra.mxu0 0
      %1444 = vmatprep.subr.bf16.mxu0 0
      %1445 = vmatpush1.bf16.msra.mxu0 0
      %1446 = vmatprep.subr.bf16.mxu0 0
      %1447 = vmatpush1.bf16.msra.mxu0 0
      %1448 = vmatprep.mubr.bf16.mxu0 0
      %1449 = vmatmul.mubr.bf16.gmra.mrb[0].mxu0 %v1197
      %v1450 = vpop.f32.mrb[0].mxu0
      %v1451 = vadd.f32 %v1243, %v1450
      %v1452 = vpop.f32.mrb[0].mxu0
      %v1453 = vpop.f32.mrb[0].mxu0
      %v1454 = vpop.f32.mrb[0].mxu0
      %1455 = vdwg.mxu0
      %v1456 = vadd.f32 %v1194, %v1410
      %v1457 = vxor.u32 %v1456, 2147483648
      %v1458 = vmul.f32 %v1457, 1.442695
      %v1459 = vpow.pop %v1458
      %v1460 = vadd.f32 %v1459, 1.0
      %v1461 = vrcp.pop %v1460
      %v1462 = vmul.f32 1.0, %v1461
      %v1463 = vadd.f32 %v1195, %v1412
      %v1464 = vxor.u32 %v1463, 2147483648
      %v1465 = vmul.f32 %v1464, 1.442695
      %v1466 = vpow.pop %v1465
      %v1467 = vadd.f32 %v1466, 1.0
      %v1468 = vrcp.pop %v1467
      %v1469 = vmul.f32 1.0, %v1468
      %v1470 = vmul.f32 %v1462, %v1451
      %v1471 = vadd.f32 %v1196, %v1470
      %v1472 = vtanh.pop %v1471
      %v1473 = vsub.f32 1.0, %v1469
      %v1474 = vmul.f32 %v1473, %v1472
      %v1475 = vmul.f32 %v1469, %v894
      %v1476 = vadd.f32 %v1474, %v1475
      %v1477 = vld [vmem:[%s526 + $0x18] sm:$0xff]
      %1479 = vset.pattern.permute.xlu0 0
      %1480 = vperm.xlu0 %1479, %v1477
      %v1481 = vpop.permute.xlu0 %1480
      %v1483 = vmul.f32 %v1481, %v1476
      %1484 = vst [vmem:[%s540 + $0x18] sm:$0xff] %v1483
      %v1485 = vsub.f32 1.0, %v1477
      %1487 = vset.pattern.permute.xlu0 0
      %1488 = vperm.xlu0 %1487, %v1485
      %v1489 = vpop.permute.xlu0 %1488
      %v1491 = vmul.f32 %v1489, %v894
      %v1492 = vadd.f32 %v1483, %v1491
      %v1493 = vld [vmem:[#allocation2 + $0x18] sm:$0xff]
      %v1494 = vld [vmem:[#allocation2 + $0x20] sm:$0xff]
      %v1495 = vld [vmem:[#allocation2 + $0x28] sm:$0xff]
      %v1496 = vpack.c.bf16 %v1193, %v1193
      %v1497 = vld [vmem:[%s5] sm:$0xff]
      %v1498 = vld [vmem:[%s5 + $0x8] sm:$0xf]
      %v1499 = vld [vmem:[%s5 + $0xc] sm:$0xff]
      %v1500 = vld [vmem:[%s5 + $0x14] sm:$0xf]
      %v1501 = vld [vmem:[%s5 + $0x18] sm:$0xff]
      %v1502 = vld [vmem:[%s5 + $0x20] sm:$0xf]
      %v1503 = vld [vmem:[%s5 + $0x24] sm:$0xff]
      %v1504 = vld [vmem:[%s5 + $0x2c] sm:$0xf]
      %v1505 = vld [vmem:[%s5 + $0x30] sm:$0xff]
      %v1506 = vld [vmem:[%s5 + $0x38] sm:$0xf]
      %v1507 = vld [vmem:[%s5 + $0x3c] sm:$0xff]
      %v1508 = vld [vmem:[%s5 + $0x44] sm:$0xf]
      %v1509 = vld [vmem:[%s5 + $0x48] sm:$0xff]
      %v1510 = vld [vmem:[%s5 + $0x50] sm:$0xf]
      %v1511 = vld [vmem:[%s5 + $0x54] sm:$0xff]
      %v1512 = vld [vmem:[%s5 + $0x5c] sm:$0xf]
      %v1513 = vld [vmem:[%s5 + $0x60] sm:$0xff]
      %v1514 = vld [vmem:[%s5 + $0x68] sm:$0xf]
      %v1515 = vld [vmem:[%s5 + $0x6c] sm:$0xff]
      %v1516 = vld [vmem:[%s5 + $0x74] sm:$0xf]
      %v1517 = vld [vmem:[%s5 + $0x78] sm:$0xff]
      %v1518 = vld [vmem:[%s5 + $0x80] sm:$0xf]
      %v1519 = vld [vmem:[%s5 + $0x84] sm:$0xff]
      %v1520 = vld [vmem:[%s5 + $0x8c] sm:$0xf]
      %v1521 = vld [vmem:[%s5 + $0x90] sm:$0xff]
      %v1522 = vld [vmem:[%s5 + $0x98] sm:$0xf]
      %v1523 = vld [vmem:[%s5 + $0x9c] sm:$0xff]
      %v1524 = vld [vmem:[%s5 + $0xa4] sm:$0xf]
      %v1525 = vld [vmem:[%s5 + $0xa8] sm:$0xff]
      %v1526 = vld [vmem:[%s5 + $0xb0] sm:$0xf]
      %v1527 = vld [vmem:[%s5 + $0xb4] sm:$0xff]
      %v1528 = vld [vmem:[%s5 + $0xbc] sm:$0xf]
      %v1529 = vld [vmem:[%s7] sm:$0x7]
      %v1531 = vlaneseq
      %v1532 = vshrl.u32 %v1531, 7
      %v1533 = vsub.s32 0, %v1532
      %v1534 = vrot.slane %v1529, %v1533
      %v1535 = vlaneseq
      %v1536 = vshrl.u32 %v1535, 7
      %v1537 = vsub.s32 1, %v1536
      %v1538 = vrot.slane %v1529, %v1537
      %v1539 = vlaneseq
      %v1540 = vshrl.u32 %v1539, 7
      %v1541 = vsub.s32 2, %v1540
      %v1542 = vrot.slane %v1529, %v1541
      %v1578 = vunpack.c.l.b16 %v1497
      %v1579 = vunpack.c.h.b16 %v1497
      %v1580 = vunpack.c.l.b16 %v1498
      %v1581 = vunpack.c.l.b16 %v1499
      %v1582 = vunpack.c.h.b16 %v1499
      %v1583 = vunpack.c.l.b16 %v1500
      %v1584 = vunpack.c.l.b16 %v1501
      %v1585 = vunpack.c.h.b16 %v1501
      %v1586 = vunpack.c.l.b16 %v1502
      %v1587 = vunpack.c.l.b16 %v1503
      %v1588 = vunpack.c.h.b16 %v1503
      %v1589 = vunpack.c.l.b16 %v1504
      %v1590 = vunpack.c.l.b16 %v1505
      %v1591 = vunpack.c.h.b16 %v1505
      %v1592 = vunpack.c.l.b16 %v1506
      %v1593 = vunpack.c.l.b16 %v1507
      %v1594 = vunpack.c.h.b16 %v1507
      %v1595 = vunpack.c.l.b16 %v1508
      %v1596 = vunpack.c.l.b16 %v1509
      %v1597 = vunpack.c.h.b16 %v1509
      %v1598 = vunpack.c.l.b16 %v1510
      %v1599 = vunpack.c.l.b16 %v1511
      %v1600 = vunpack.c.h.b16 %v1511
      %v1601 = vunpack.c.l.b16 %v1512
      %v1602 = vunpack.c.l.b16 %v1513
      %v1603 = vunpack.c.h.b16 %v1513
      %v1604 = vunpack.c.l.b16 %v1514
      %v1605 = vunpack.c.l.b16 %v1515
      %v1606 = vunpack.c.h.b16 %v1515
      %v1607 = vunpack.c.l.b16 %v1516
      %v1608 = vunpack.c.l.b16 %v1517
      %v1609 = vunpack.c.h.b16 %v1517
      %v1610 = vunpack.c.l.b16 %v1518
      %v1611 = vunpack.c.l.b16 %v1519
      %v1612 = vunpack.c.h.b16 %v1519
      %v1613 = vunpack.c.l.b16 %v1520
      %v1614 = vunpack.c.l.b16 %v1521
      %v1615 = vunpack.c.h.b16 %v1521
      %v1616 = vunpack.c.l.b16 %v1522
      %v1617 = vunpack.c.l.b16 %v1523
      %v1618 = vunpack.c.h.b16 %v1523
      %v1619 = vunpack.c.l.b16 %v1524
      %v1620 = vunpack.c.l.b16 %v1525
      %v1621 = vunpack.c.h.b16 %v1525
      %v1622 = vunpack.c.l.b16 %v1526
      %v1623 = vunpack.c.l.b16 %v1527
      %v1624 = vunpack.c.h.b16 %v1527
      %v1625 = vunpack.c.l.b16 %v1528
      %v1626 = vpack.c.b16 %v1581, %v1578
      %v1627 = vpack.c.b16 %v1582, %v1579
      %v1628 = vpack.c.b16 %v1583, %v1580
      %v1629 = vpack.c.b16 %v1587, %v1584
      %v1630 = vpack.c.b16 %v1588, %v1585
      %v1631 = vpack.c.b16 %v1589, %v1586
      %v1632 = vpack.c.b16 %v1593, %v1590
      %v1633 = vpack.c.b16 %v1594, %v1591
      %v1634 = vpack.c.b16 %v1595, %v1592
      %v1635 = vpack.c.b16 %v1599, %v1596
      %v1636 = vpack.c.b16 %v1600, %v1597
      %v1637 = vpack.c.b16 %v1601, %v1598
      %v1638 = vpack.c.b16 %v1605, %v1602
      %v1639 = vpack.c.b16 %v1606, %v1603
      %v1640 = vpack.c.b16 %v1607, %v1604
      %v1641 = vpack.c.b16 %v1611, %v1608
      %v1642 = vpack.c.b16 %v1612, %v1609
      %v1643 = vpack.c.b16 %v1613, %v1610
      %v1644 = vpack.c.b16 %v1617, %v1614
      %v1645 = vpack.c.b16 %v1618, %v1615
      %v1646 = vpack.c.b16 %v1619, %v1616
      %v1647 = vpack.c.b16 %v1623, %v1620
      %v1648 = vpack.c.b16 %v1624, %v1621
      %v1649 = vpack.c.b16 %v1625, %v1622
      %1674 = vmatprep.subr.bf16.mxu0 %v1627
      %1675 = vmatpush1.bf16.msra.mxu0 %v1626
      %1676 = vmatprep.subr.bf16.mxu0 %v1630
      %1677 = vmatpush1.bf16.msra.mxu0 %v1629
      %1678 = vmatprep.subr.bf16.mxu0 %v1633
      %1679 = vmatpush1.bf16.msra.mxu0 %v1632
      %1680 = vmatprep.subr.bf16.mxu0 %v1636
      %1681 = vmatpush1.bf16.msra.mxu0 %v1635
      %1682 = vmatprep.subr.bf16.mxu0 %v1639
      %1683 = vmatpush1.bf16.msra.mxu0 %v1638
      %1684 = vmatprep.subr.bf16.mxu0 %v1642
      %1685 = vmatpush1.bf16.msra.mxu0 %v1641
      %1686 = vmatprep.subr.bf16.mxu0 %v1645
      %1687 = vmatpush1.bf16.msra.mxu0 %v1644
      %1688 = vmatprep.subr.bf16.mxu0 %v1648
      %1689 = vmatpush1.bf16.msra.mxu0 %v1647
      %1690 = vmatprep.subr.bf16.mxu0 0
      %1691 = vmatpush1.bf16.msra.mxu0 0
      %1692 = vmatprep.subr.bf16.mxu0 0
      %1693 = vmatpush1.bf16.msra.mxu0 0
      %1694 = vmatprep.subr.bf16.mxu0 0
      %1695 = vmatpush1.bf16.msra.mxu0 0
      %1696 = vmatprep.subr.bf16.mxu0 0
      %1697 = vmatpush1.bf16.msra.mxu0 0
      %1698 = vmatprep.subr.bf16.mxu0 0
      %1699 = vmatpush1.bf16.msra.mxu0 0
      %1700 = vmatprep.subr.bf16.mxu0 0
      %1701 = vmatpush1.bf16.msra.mxu0 0
      %1702 = vmatprep.subr.bf16.mxu0 0
      %1703 = vmatpush1.bf16.msra.mxu0 0
      %1704 = vmatprep.subr.bf16.mxu0 0
      %1705 = vmatpush1.bf16.msra.mxu0 0
      %1706 = vmatprep.mubr.bf16.mxu0 0
      %1707 = vmatmul.mubr.bf16.gmra.mrb[0].mxu0 %v1496
      %v1708 = vpop.f32.mrb[0].mxu0
      %v1709 = vadd.f32 %v1534, %v1708
      %v1710 = vpop.f32.mrb[0].mxu0
      %v1711 = vadd.f32 %v1538, %v1710
      %v1712 = vpop.f32.mrb[0].mxu0
      %v1713 = vpop.f32.mrb[0].mxu0
      %1714 = vdwg.mxu0
      %1715 = vmatprep.subr.bf16.mxu0 0
      %1716 = vmatpush1.bf16.msra.mxu0 %v1628
      %1717 = vmatprep.subr.bf16.mxu0 0
      %1718 = vmatpush1.bf16.msra.mxu0 %v1631
      %1719 = vmatprep.subr.bf16.mxu0 0
      %1720 = vmatpush1.bf16.msra.mxu0 %v1634
      %1721 = vmatprep.subr.bf16.mxu0 0
      %1722 = vmatpush1.bf16.msra.mxu0 %v1637
      %1723 = vmatprep.subr.bf16.mxu0 0
      %1724 = vmatpush1.bf16.msra.mxu0 %v1640
      %1725 = vmatprep.subr.bf16.mxu0 0
      %1726 = vmatpush1.bf16.msra.mxu0 %v1643
      %1727 = vmatprep.subr.bf16.mxu0 0
      %1728 = vmatpush1.bf16.msra.mxu0 %v1646
      %1729 = vmatprep.subr.bf16.mxu0 0
      %1730 = vmatpush1.bf16.msra.mxu0 %v1649
      %1731 = vmatprep.subr.bf16.mxu0 0
      %1732 = vmatpush1.bf16.msra.mxu0 0
      %1733 = vmatprep.subr.bf16.mxu0 0
      %1734 = vmatpush1.bf16.msra.mxu0 0
      %1735 = vmatprep.subr.bf16.mxu0 0
      %1736 = vmatpush1.bf16.msra.mxu0 0
      %1737 = vmatprep.subr.bf16.mxu0 0
      %1738 = vmatpush1.bf16.msra.mxu0 0
      %1739 = vmatprep.subr.bf16.mxu0 0
      %1740 = vmatpush1.bf16.msra.mxu0 0
      %1741 = vmatprep.subr.bf16.mxu0 0
      %1742 = vmatpush1.bf16.msra.mxu0 0
      %1743 = vmatprep.subr.bf16.mxu0 0
      %1744 = vmatpush1.bf16.msra.mxu0 0
      %1745 = vmatprep.subr.bf16.mxu0 0
      %1746 = vmatpush1.bf16.msra.mxu0 0
      %1747 = vmatprep.mubr.bf16.mxu0 0
      %1748 = vmatmul.mubr.bf16.gmra.mrb[0].mxu0 %v1496
      %v1749 = vpop.f32.mrb[0].mxu0
      %v1750 = vadd.f32 %v1542, %v1749
      %v1751 = vpop.f32.mrb[0].mxu0
      %v1752 = vpop.f32.mrb[0].mxu0
      %v1753 = vpop.f32.mrb[0].mxu0
      %1754 = vdwg.mxu0
      %v1755 = vadd.f32 %v1493, %v1709
      %v1756 = vxor.u32 %v1755, 2147483648
      %v1757 = vmul.f32 %v1756, 1.442695
      %v1758 = vpow.pop %v1757
      %v1759 = vadd.f32 %v1758, 1.0
      %v1760 = vrcp.pop %v1759
      %v1761 = vmul.f32 1.0, %v1760
      %v1762 = vadd.f32 %v1494, %v1711
      %v1763 = vxor.u32 %v1762, 2147483648
      %v1764 = vmul.f32 %v1763, 1.442695
      %v1765 = vpow.pop %v1764
      %v1766 = vadd.f32 %v1765, 1.0
      %v1767 = vrcp.pop %v1766
      %v1768 = vmul.f32 1.0, %v1767
      %v1769 = vmul.f32 %v1761, %v1750
      %v1770 = vadd.f32 %v1495, %v1769
      %v1771 = vtanh.pop %v1770
      %v1772 = vsub.f32 1.0, %v1768
      %v1773 = vmul.f32 %v1772, %v1771
      %v1774 = vmul.f32 %v1768, %v1193
      %v1775 = vadd.f32 %v1773, %v1774
      %v1776 = vld [vmem:[%s519 + $0x8] sm:$0xff]
      %1778 = vset.pattern.permute.xlu0 0
      %1779 = vperm.xlu0 %1778, %v1776
      %v1780 = vpop.permute.xlu0 %1779
      %v1782 = vmul.f32 %v1780, %v1775
      %1783 = vst [vmem:[%s533 + $0x8] sm:$0xff] %v1782
      %v1784 = vsub.f32 1.0, %v1776
      %1786 = vset.pattern.permute.xlu0 0
      %1787 = vperm.xlu0 %1786, %v1784
      %v1788 = vpop.permute.xlu0 %1787
      %v1790 = vmul.f32 %v1788, %v1193
      %v1791 = vadd.f32 %v1782, %v1790
      %v1792 = vld [vmem:[#allocation3 + $0x30] sm:$0xff]
      %v1793 = vld [vmem:[#allocation3 + $0x38] sm:$0xff]
      %v1794 = vld [vmem:[#allocation3 + $0x40] sm:$0xff]
      %v1795 = vpack.c.bf16 %v1492, %v1492
      %v1796 = vld [vmem:[%s9] sm:$0xff]
      %v1797 = vld [vmem:[%s9 + $0x8] sm:$0xf]
      %v1798 = vld [vmem:[%s9 + $0xc] sm:$0xff]
      %v1799 = vld [vmem:[%s9 + $0x14] sm:$0xf]
      %v1800 = vld [vmem:[%s9 + $0x18] sm:$0xff]
      %v1801 = vld [vmem:[%s9 + $0x20] sm:$0xf]
      %v1802 = vld [vmem:[%s9 + $0x24] sm:$0xff]
      %v1803 = vld [vmem:[%s9 + $0x2c] sm:$0xf]
      %v1804 = vld [vmem:[%s9 + $0x30] sm:$0xff]
      %v1805 = vld [vmem:[%s9 + $0x38] sm:$0xf]
      %v1806 = vld [vmem:[%s9 + $0x3c] sm:$0xff]
      %v1807 = vld [vmem:[%s9 + $0x44] sm:$0xf]
      %v1808 = vld [vmem:[%s9 + $0x48] sm:$0xff]
      %v1809 = vld [vmem:[%s9 + $0x50] sm:$0xf]
      %v1810 = vld [vmem:[%s9 + $0x54] sm:$0xff]
      %v1811 = vld [vmem:[%s9 + $0x5c] sm:$0xf]
      %v1812 = vld [vmem:[%s9 + $0x60] sm:$0xff]
      %v1813 = vld [vmem:[%s9 + $0x68] sm:$0xf]
      %v1814 = vld [vmem:[%s9 + $0x6c] sm:$0xff]
      %v1815 = vld [vmem:[%s9 + $0x74] sm:$0xf]
      %v1816 = vld [vmem:[%s9 + $0x78] sm:$0xff]
      %v1817 = vld [vmem:[%s9 + $0x80] sm:$0xf]
      %v1818 = vld [vmem:[%s9 + $0x84] sm:$0xff]
      %v1819 = vld [vmem:[%s9 + $0x8c] sm:$0xf]
      %v1820 = vld [vmem:[%s9 + $0x90] sm:$0xff]
      %v1821 = vld [vmem:[%s9 + $0x98] sm:$0xf]
      %v1822 = vld [vmem:[%s9 + $0x9c] sm:$0xff]
      %v1823 = vld [vmem:[%s9 + $0xa4] sm:$0xf]
      %v1824 = vld [vmem:[%s9 + $0xa8] sm:$0xff]
      %v1825 = vld [vmem:[%s9 + $0xb0] sm:$0xf]
      %v1826 = vld [vmem:[%s9 + $0xb4] sm:$0xff]
      %v1827 = vld [vmem:[%s9 + $0xbc] sm:$0xf]
      %v1828 = vld [vmem:[%s11] sm:$0x7]
      %v1830 = vlaneseq
      %v1831 = vshrl.u32 %v1830, 7
      %v1832 = vsub.s32 0, %v1831
      %v1833 = vrot.slane %v1828, %v1832
      %v1834 = vlaneseq
      %v1835 = vshrl.u32 %v1834, 7
      %v1836 = vsub.s32 1, %v1835
      %v1837 = vrot.slane %v1828, %v1836
      %v1838 = vlaneseq
      %v1839 = vshrl.u32 %v1838, 7
      %v1840 = vsub.s32 2, %v1839
      %v1841 = vrot.slane %v1828, %v1840
      %v1877 = vunpack.c.l.b16 %v1796
      %v1878 = vunpack.c.h.b16 %v1796
      %v1879 = vunpack.c.l.b16 %v1797
      %v1880 = vunpack.c.l.b16 %v1798
      %v1881 = vunpack.c.h.b16 %v1798
      %v1882 = vunpack.c.l.b16 %v1799
      %v1883 = vunpack.c.l.b16 %v1800
      %v1884 = vunpack.c.h.b16 %v1800
      %v1885 = vunpack.c.l.b16 %v1801
      %v1886 = vunpack.c.l.b16 %v1802
      %v1887 = vunpack.c.h.b16 %v1802
      %v1888 = vunpack.c.l.b16 %v1803
      %v1889 = vunpack.c.l.b16 %v1804
      %v1890 = vunpack.c.h.b16 %v1804
      %v1891 = vunpack.c.l.b16 %v1805
      %v1892 = vunpack.c.l.b16 %v1806
      %v1893 = vunpack.c.h.b16 %v1806
      %v1894 = vunpack.c.l.b16 %v1807
      %v1895 = vunpack.c.l.b16 %v1808
      %v1896 = vunpack.c.h.b16 %v1808
      %v1897 = vunpack.c.l.b16 %v1809
      %v1898 = vunpack.c.l.b16 %v1810
      %v1899 = vunpack.c.h.b16 %v1810
      %v1900 = vunpack.c.l.b16 %v1811
      %v1901 = vunpack.c.l.b16 %v1812
      %v1902 = vunpack.c.h.b16 %v1812
      %v1903 = vunpack.c.l.b16 %v1813
      %v1904 = vunpack.c.l.b16 %v1814
      %v1905 = vunpack.c.h.b16 %v1814
      %v1906 = vunpack.c.l.b16 %v1815
      %v1907 = vunpack.c.l.b16 %v1816
      %v1908 = vunpack.c.h.b16 %v1816
      %v1909 = vunpack.c.l.b16 %v1817
      %v1910 = vunpack.c.l.b16 %v1818
      %v1911 = vunpack.c.h.b16 %v1818
      %v1912 = vunpack.c.l.b16 %v1819
      %v1913 = vunpack.c.l.b16 %v1820
      %v1914 = vunpack.c.h.b16 %v1820
      %v1915 = vunpack.c.l.b16 %v1821
      %v1916 = vunpack.c.l.b16 %v1822
      %v1917 = vunpack.c.h.b16 %v1822
      %v1918 = vunpack.c.l.b16 %v1823
      %v1919 = vunpack.c.l.b16 %v1824
      %v1920 = vunpack.c.h.b16 %v1824
      %v1921 = vunpack.c.l.b16 %v1825
      %v1922 = vunpack.c.l.b16 %v1826
      %v1923 = vunpack.c.h.b16 %v1826
      %v1924 = vunpack.c.l.b16 %v1827
      %v1925 = vpack.c.b16 %v1880, %v1877
      %v1926 = vpack.c.b16 %v1881, %v1878
      %v1927 = vpack.c.b16 %v1882, %v1879
      %v1928 = vpack.c.b16 %v1886, %v1883
      %v1929 = vpack.c.b16 %v1887, %v1884
      %v1930 = vpack.c.b16 %v1888, %v1885
      %v1931 = vpack.c.b16 %v1892, %v1889
      %v1932 = vpack.c.b16 %v1893, %v1890
      %v1933 = vpack.c.b16 %v1894, %v1891
      %v1934 = vpack.c.b16 %v1898, %v1895
      %v1935 = vpack.c.b16 %v1899, %v1896
      %v1936 = vpack.c.b16 %v1900, %v1897
      %v1937 = vpack.c.b16 %v1904, %v1901
      %v1938 = vpack.c.b16 %v1905, %v1902
      %v1939 = vpack.c.b16 %v1906, %v1903
      %v1940 = vpack.c.b16 %v1910, %v1907
      %v1941 = vpack.c.b16 %v1911, %v1908
      %v1942 = vpack.c.b16 %v1912, %v1909
      %v1943 = vpack.c.b16 %v1916, %v1913
      %v1944 = vpack.c.b16 %v1917, %v1914
      %v1945 = vpack.c.b16 %v1918, %v1915
      %v1946 = vpack.c.b16 %v1922, %v1919
      %v1947 = vpack.c.b16 %v1923, %v1920
      %v1948 = vpack.c.b16 %v1924, %v1921
      %1973 = vmatprep.subr.bf16.mxu0 %v1926
      %1974 = vmatpush1.bf16.msra.mxu0 %v1925
      %1975 = vmatprep.subr.bf16.mxu0 %v1929
      %1976 = vmatpush1.bf16.msra.mxu0 %v1928
      %1977 = vmatprep.subr.bf16.mxu0 %v1932
      %1978 = vmatpush1.bf16.msra.mxu0 %v1931
      %1979 = vmatprep.subr.bf16.mxu0 %v1935
      %1980 = vmatpush1.bf16.msra.mxu0 %v1934
      %1981 = vmatprep.subr.bf16.mxu0 %v1938
      %1982 = vmatpush1.bf16.msra.mxu0 %v1937
      %1983 = vmatprep.subr.bf16.mxu0 %v1941
      %1984 = vmatpush1.bf16.msra.mxu0 %v1940
      %1985 = vmatprep.subr.bf16.mxu0 %v1944
      %1986 = vmatpush1.bf16.msra.mxu0 %v1943
      %1987 = vmatprep.subr.bf16.mxu0 %v1947
      %1988 = vmatpush1.bf16.msra.mxu0 %v1946
      %1989 = vmatprep.subr.bf16.mxu0 0
      %1990 = vmatpush1.bf16.msra.mxu0 0
      %1991 = vmatprep.subr.bf16.mxu0 0
      %1992 = vmatpush1.bf16.msra.mxu0 0
      %1993 = vmatprep.subr.bf16.mxu0 0
      %1994 = vmatpush1.bf16.msra.mxu0 0
      %1995 = vmatprep.subr.bf16.mxu0 0
      %1996 = vmatpush1.bf16.msra.mxu0 0
      %1997 = vmatprep.subr.bf16.mxu0 0
      %1998 = vmatpush1.bf16.msra.mxu0 0
      %1999 = vmatprep.subr.bf16.mxu0 0
      %2000 = vmatpush1.bf16.msra.mxu0 0
      %2001 = vmatprep.subr.bf16.mxu0 0
      %2002 = vmatpush1.bf16.msra.mxu0 0
      %2003 = vmatprep.subr.bf16.mxu0 0
      %2004 = vmatpush1.bf16.msra.mxu0 0
      %2005 = vmatprep.mubr.bf16.mxu0 0
      %2006 = vmatmul.mubr.bf16.gmra.mrb[0].mxu0 %v1795
      %v2007 = vpop.f32.mrb[0].mxu0
      %v2008 = vadd.f32 %v1833, %v2007
      %v2009 = vpop.f32.mrb[0].mxu0
      %v2010 = vadd.f32 %v1837, %v2009
      %v2011 = vpop.f32.mrb[0].mxu0
      %v2012 = vpop.f32.mrb[0].mxu0
      %2013 = vdwg.mxu0
      %2014 = vmatprep.subr.bf16.mxu0 0
      %2015 = vmatpush1.bf16.msra.mxu0 %v1927
      %2016 = vmatprep.subr.bf16.mxu0 0
      %2017 = vmatpush1.bf16.msra.mxu0 %v1930
      %2018 = vmatprep.subr.bf16.mxu0 0
      %2019 = vmatpush1.bf16.msra.mxu0 %v1933
      %2020 = vmatprep.subr.bf16.mxu0 0
      %2021 = vmatpush1.bf16.msra.mxu0 %v1936
      %2022 = vmatprep.subr.bf16.mxu0 0
      %2023 = vmatpush1.bf16.msra.mxu0 %v1939
      %2024 = vmatprep.subr.bf16.mxu0 0
      %2025 = vmatpush1.bf16.msra.mxu0 %v1942
      %2026 = vmatprep.subr.bf16.mxu0 0
      %2027 = vmatpush1.bf16.msra.mxu0 %v1945
      %2028 = vmatprep.subr.bf16.mxu0 0
      %2029 = vmatpush1.bf16.msra.mxu0 %v1948
      %2030 = vmatprep.subr.bf16.mxu0 0
      %2031 = vmatpush1.bf16.msra.mxu0 0
      %2032 = vmatprep.subr.bf16.mxu0 0
      %2033 = vmatpush1.bf16.msra.mxu0 0
      %2034 = vmatprep.subr.bf16.mxu0 0
      %2035 = vmatpush1.bf16.msra.mxu0 0
      %2036 = vmatprep.subr.bf16.mxu0 0
      %2037 = vmatpush1.bf16.msra.mxu0 0
      %2038 = vmatprep.subr.bf16.mxu0 0
      %2039 = vmatpush1.bf16.msra.mxu0 0
      %2040 = vmatprep.subr.bf16.mxu0 0
      %2041 = vmatpush1.bf16.msra.mxu0 0
      %2042 = vmatprep.subr.bf16.mxu0 0
      %2043 = vmatpush1.bf16.msra.mxu0 0
      %2044 = vmatprep.subr.bf16.mxu0 0
      %2045 = vmatpush1.bf16.msra.mxu0 0
      %2046 = vmatprep.mubr.bf16.mxu0 0
      %2047 = vmatmul.mubr.bf16.gmra.mrb[0].mxu0 %v1795
      %v2048 = vpop.f32.mrb[0].mxu0
      %v2049 = vadd.f32 %v1841, %v2048
      %v2050 = vpop.f32.mrb[0].mxu0
      %v2051 = vpop.f32.mrb[0].mxu0
      %v2052 = vpop.f32.mrb[0].mxu0
      %2053 = vdwg.mxu0
      %v2054 = vadd.f32 %v1792, %v2008
      %v2055 = vxor.u32 %v2054, 2147483648
      %v2056 = vmul.f32 %v2055, 1.442695
      %v2057 = vpow.pop %v2056
      %v2058 = vadd.f32 %v2057, 1.0
      %v2059 = vrcp.pop %v2058
      %v2060 = vmul.f32 1.0, %v2059
      %v2061 = vadd.f32 %v1793, %v2010
      %v2062 = vxor.u32 %v2061, 2147483648
      %v2063 = vmul.f32 %v2062, 1.442695
      %v2064 = vpow.pop %v2063
      %v2065 = vadd.f32 %v2064, 1.0
      %v2066 = vrcp.pop %v2065
      %v2067 = vmul.f32 1.0, %v2066
      %v2068 = vmul.f32 %v2060, %v2049
      %v2069 = vadd.f32 %v1794, %v2068
      %v2070 = vtanh.pop %v2069
      %v2071 = vsub.f32 1.0, %v2067
      %v2072 = vmul.f32 %v2071, %v2070
      %v2073 = vmul.f32 %v2067, %v1492
      %v2074 = vadd.f32 %v2072, %v2073
      %v2075 = vld [vmem:[%s526 + $0x10] sm:$0xff]
      %2077 = vset.pattern.permute.xlu0 0
      %2078 = vperm.xlu0 %2077, %v2075
      %v2079 = vpop.permute.xlu0 %2078
      %v2081 = vmul.f32 %v2079, %v2074
      %2082 = vst [vmem:[%s540 + $0x10] sm:$0xff] %v2081
      %v2083 = vsub.f32 1.0, %v2075
      %2085 = vset.pattern.permute.xlu0 0
      %2086 = vperm.xlu0 %2085, %v2083
      %v2087 = vpop.permute.xlu0 %2086
      %v2089 = vmul.f32 %v2087, %v1492
      %v2090 = vadd.f32 %v2081, %v2089
      %v2091 = vld [vmem:[#allocation2 + $0x30] sm:$0xff]
      %v2092 = vld [vmem:[#allocation2 + $0x38] sm:$0xff]
      %v2093 = vld [vmem:[#allocation2 + $0x40] sm:$0xff]
      %v2094 = vpack.c.bf16 %v1791, %v1791
      %v2095 = vld [vmem:[%s5] sm:$0xff]
      %v2096 = vld [vmem:[%s5 + $0x8] sm:$0xf]
      %v2097 = vld [vmem:[%s5 + $0xc] sm:$0xff]
      %v2098 = vld [vmem:[%s5 + $0x14] sm:$0xf]
      %v2099 = vld [vmem:[%s5 + $0x18] sm:$0xff]
      %v2100 = vld [vmem:[%s5 + $0x20] sm:$0xf]
      %v2101 = vld [vmem:[%s5 + $0x24] sm:$0xff]
      %v2102 = vld [vmem:[%s5 + $0x2c] sm:$0xf]
      %v2103 = vld [vmem:[%s5 + $0x30] sm:$0xff]
      %v2104 = vld [vmem:[%s5 + $0x38] sm:$0xf]
      %v2105 = vld [vmem:[%s5 + $0x3c] sm:$0xff]
      %v2106 = vld [vmem:[%s5 + $0x44] sm:$0xf]
      %v2107 = vld [vmem:[%s5 + $0x48] sm:$0xff]
      %v2108 = vld [vmem:[%s5 + $0x50] sm:$0xf]
      %v2109 = vld [vmem:[%s5 + $0x54] sm:$0xff]
      %v2110 = vld [vmem:[%s5 + $0x5c] sm:$0xf]
      %v2111 = vld [vmem:[%s5 + $0x60] sm:$0xff]
      %v2112 = vld [vmem:[%s5 + $0x68] sm:$0xf]
      %v2113 = vld [vmem:[%s5 + $0x6c] sm:$0xff]
      %v2114 = vld [vmem:[%s5 + $0x74] sm:$0xf]
      %v2115 = vld [vmem:[%s5 + $0x78] sm:$0xff]
      %v2116 = vld [vmem:[%s5 + $0x80] sm:$0xf]
      %v2117 = vld [vmem:[%s5 + $0x84] sm:$0xff]
      %v2118 = vld [vmem:[%s5 + $0x8c] sm:$0xf]
      %v2119 = vld [vmem:[%s5 + $0x90] sm:$0xff]
      %v2120 = vld [vmem:[%s5 + $0x98] sm:$0xf]
      %v2121 = vld [vmem:[%s5 + $0x9c] sm:$0xff]
      %v2122 = vld [vmem:[%s5 + $0xa4] sm:$0xf]
      %v2123 = vld [vmem:[%s5 + $0xa8] sm:$0xff]
      %v2124 = vld [vmem:[%s5 + $0xb0] sm:$0xf]
      %v2125 = vld [vmem:[%s5 + $0xb4] sm:$0xff]
      %v2126 = vld [vmem:[%s5 + $0xbc] sm:$0xf]
      %v2127 = vld [vmem:[%s7] sm:$0x7]
      %v2129 = vlaneseq
      %v2130 = vshrl.u32 %v2129, 7
      %v2131 = vsub.s32 0, %v2130
      %v2132 = vrot.slane %v2127, %v2131
      %v2133 = vlaneseq
      %v2134 = vshrl.u32 %v2133, 7
      %v2135 = vsub.s32 1, %v2134
      %v2136 = vrot.slane %v2127, %v2135
      %v2137 = vlaneseq
      %v2138 = vshrl.u32 %v2137, 7
      %v2139 = vsub.s32 2, %v2138
      %v2140 = vrot.slane %v2127, %v2139
      %v2176 = vunpack.c.l.b16 %v2095
      %v2177 = vunpack.c.h.b16 %v2095
      %v2178 = vunpack.c.l.b16 %v2096
      %v2179 = vunpack.c.l.b16 %v2097
      %v2180 = vunpack.c.h.b16 %v2097
      %v2181 = vunpack.c.l.b16 %v2098
      %v2182 = vunpack.c.l.b16 %v2099
      %v2183 = vunpack.c.h.b16 %v2099
      %v2184 = vunpack.c.l.b16 %v2100
      %v2185 = vunpack.c.l.b16 %v2101
      %v2186 = vunpack.c.h.b16 %v2101
      %v2187 = vunpack.c.l.b16 %v2102
      %v2188 = vunpack.c.l.b16 %v2103
      %v2189 = vunpack.c.h.b16 %v2103
      %v2190 = vunpack.c.l.b16 %v2104
      %v2191 = vunpack.c.l.b16 %v2105
      %v2192 = vunpack.c.h.b16 %v2105
      %v2193 = vunpack.c.l.b16 %v2106
      %v2194 = vunpack.c.l.b16 %v2107
      %v2195 = vunpack.c.h.b16 %v2107
      %v2196 = vunpack.c.l.b16 %v2108
      %v2197 = vunpack.c.l.b16 %v2109
      %v2198 = vunpack.c.h.b16 %v2109
      %v2199 = vunpack.c.l.b16 %v2110
      %v2200 = vunpack.c.l.b16 %v2111
      %v2201 = vunpack.c.h.b16 %v2111
      %v2202 = vunpack.c.l.b16 %v2112
      %v2203 = vunpack.c.l.b16 %v2113
      %v2204 = vunpack.c.h.b16 %v2113
      %v2205 = vunpack.c.l.b16 %v2114
      %v2206 = vunpack.c.l.b16 %v2115
      %v2207 = vunpack.c.h.b16 %v2115
      %v2208 = vunpack.c.l.b16 %v2116
      %v2209 = vunpack.c.l.b16 %v2117
      %v2210 = vunpack.c.h.b16 %v2117
      %v2211 = vunpack.c.l.b16 %v2118
      %v2212 = vunpack.c.l.b16 %v2119
      %v2213 = vunpack.c.h.b16 %v2119
      %v2214 = vunpack.c.l.b16 %v2120
      %v2215 = vunpack.c.l.b16 %v2121
      %v2216 = vunpack.c.h.b16 %v2121
      %v2217 = vunpack.c.l.b16 %v2122
      %v2218 = vunpack.c.l.b16 %v2123
      %v2219 = vunpack.c.h.b16 %v2123
      %v2220 = vunpack.c.l.b16 %v2124
      %v2221 = vunpack.c.l.b16 %v2125
      %v2222 = vunpack.c.h.b16 %v2125
      %v2223 = vunpack.c.l.b16 %v2126
      %v2224 = vpack.c.b16 %v2179, %v2176
      %v2225 = vpack.c.b16 %v2180, %v2177
      %v2226 = vpack.c.b16 %v2181, %v2178
      %v2227 = vpack.c.b16 %v2185, %v2182
      %v2228 = vpack.c.b16 %v2186, %v2183
      %v2229 = vpack.c.b16 %v2187, %v2184
      %v2230 = vpack.c.b16 %v2191, %v2188
      %v2231 = vpack.c.b16 %v2192, %v2189
      %v2232 = vpack.c.b16 %v2193, %v2190
      %v2233 = vpack.c.b16 %v2197, %v2194
      %v2234 = vpack.c.b16 %v2198, %v2195
      %v2235 = vpack.c.b16 %v2199, %v2196
      %v2236 = vpack.c.b16 %v2203, %v2200
      %v2237 = vpack.c.b16 %v2204, %v2201
      %v2238 = vpack.c.b16 %v2205, %v2202
      %v2239 = vpack.c.b16 %v2209, %v2206
      %v2240 = vpack.c.b16 %v2210, %v2207
      %v2241 = vpack.c.b16 %v2211, %v2208
      %v2242 = vpack.c.b16 %v2215, %v2212
      %v2243 = vpack.c.b16 %v2216, %v2213
      %v2244 = vpack.c.b16 %v2217, %v2214
      %v2245 = vpack.c.b16 %v2221, %v2218
      %v2246 = vpack.c.b16 %v2222, %v2219
      %v2247 = vpack.c.b16 %v2223, %v2220
      %2272 = vmatprep.subr.bf16.mxu0 %v2225
      %2273 = vmatpush1.bf16.msra.mxu0 %v2224
      %2274 = vmatprep.subr.bf16.mxu0 %v2228
      %2275 = vmatpush1.bf16.msra.mxu0 %v2227
      %2276 = vmatprep.subr.bf16.mxu0 %v2231
      %2277 = vmatpush1.bf16.msra.mxu0 %v2230
      %2278 = vmatprep.subr.bf16.mxu0 %v2234
      %2279 = vmatpush1.bf16.msra.mxu0 %v2233
      %2280 = vmatprep.subr.bf16.mxu0 %v2237
      %2281 = vmatpush1.bf16.msra.mxu0 %v2236
      %2282 = vmatprep.subr.bf16.mxu0 %v2240
      %2283 = vmatpush1.bf16.msra.mxu0 %v2239
      %2284 = vmatprep.subr.bf16.mxu0 %v2243
      %2285 = vmatpush1.bf16.msra.mxu0 %v2242
      %2286 = vmatprep.subr.bf16.mxu0 %v2246
      %2287 = vmatpush1.bf16.msra.mxu0 %v2245
      %2288 = vmatprep.subr.bf16.mxu0 0
      %2289 = vmatpush1.bf16.msra.mxu0 0
      %2290 = vmatprep.subr.bf16.mxu0 0
      %2291 = vmatpush1.bf16.msra.mxu0 0
      %2292 = vmatprep.subr.bf16.mxu0 0
      %2293 = vmatpush1.bf16.msra.mxu0 0
      %2294 = vmatprep.subr.bf16.mxu0 0
      %2295 = vmatpush1.bf16.msra.mxu0 0
      %2296 = vmatprep.subr.bf16.mxu0 0
      %2297 = vmatpush1.bf16.msra.mxu0 0
      %2298 = vmatprep.subr.bf16.mxu0 0
      %2299 = vmatpush1.bf16.msra.mxu0 0
      %2300 = vmatprep.subr.bf16.mxu0 0
      %2301 = vmatpush1.bf16.msra.mxu0 0
      %2302 = vmatprep.subr.bf16.mxu0 0
      %2303 = vmatpush1.bf16.msra.mxu0 0
      %2304 = vmatprep.mubr.bf16.mxu0 0
      %2305 = vmatmul.mubr.bf16.gmra.mrb[0].mxu0 %v2094
      %v2306 = vpop.f32.mrb[0].mxu0
      %v2307 = vadd.f32 %v2132, %v2306
      %v2308 = vpop.f32.mrb[0].mxu0
      %v2309 = vadd.f32 %v2136, %v2308
      %v2310 = vpop.f32.mrb[0].mxu0
      %v2311 = vpop.f32.mrb[0].mxu0
      %2312 = vdwg.mxu0
      %2313 = vmatprep.subr.bf16.mxu0 0
      %2314 = vmatpush1.bf16.msra.mxu0 %v2226
      %2315 = vmatprep.subr.bf16.mxu0 0
      %2316 = vmatpush1.bf16.msra.mxu0 %v2229
      %2317 = vmatprep.subr.bf16.mxu0 0
      %2318 = vmatpush1.bf16.msra.mxu0 %v2232
      %2319 = vmatprep.subr.bf16.mxu0 0
      %2320 = vmatpush1.bf16.msra.mxu0 %v2235
      %2321 = vmatprep.subr.bf16.mxu0 0
      %2322 = vmatpush1.bf16.msra.mxu0 %v2238
      %2323 = vmatprep.subr.bf16.mxu0 0
      %2324 = vmatpush1.bf16.msra.mxu0 %v2241
      %2325 = vmatprep.subr.bf16.mxu0 0
      %2326 = vmatpush1.bf16.msra.mxu0 %v2244
      %2327 = vmatprep.subr.bf16.mxu0 0
      %2328 = vmatpush1.bf16.msra.mxu0 %v2247
      %2329 = vmatprep.subr.bf16.mxu0 0
      %2330 = vmatpush1.bf16.msra.mxu0 0
      %2331 = vmatprep.subr.bf16.mxu0 0
      %2332 = vmatpush1.bf16.msra.mxu0 0
      %2333 = vmatprep.subr.bf16.mxu0 0
      %2334 = vmatpush1.bf16.msra.mxu0 0
      %2335 = vmatprep.subr.bf16.mxu0 0
      %2336 = vmatpush1.bf16.msra.mxu0 0
      %2337 = vmatprep.subr.bf16.mxu0 0
      %2338 = vmatpush1.bf16.msra.mxu0 0
      %2339 = vmatprep.subr.bf16.mxu0 0
      %2340 = vmatpush1.bf16.msra.mxu0 0
      %2341 = vmatprep.subr.bf16.mxu0 0
      %2342 = vmatpush1.bf16.msra.mxu0 0
      %2343 = vmatprep.subr.bf16.mxu0 0
      %2344 = vmatpush1.bf16.msra.mxu0 0
      %2345 = vmatprep.mubr.bf16.mxu0 0
      %2346 = vmatmul.mubr.bf16.gmra.mrb[0].mxu0 %v2094
      %v2347 = vpop.f32.mrb[0].mxu0
      %v2348 = vadd.f32 %v2140, %v2347
      %v2349 = vpop.f32.mrb[0].mxu0
      %v2350 = vpop.f32.mrb[0].mxu0
      %v2351 = vpop.f32.mrb[0].mxu0
      %2352 = vdwg.mxu0
      %v2353 = vadd.f32 %v2091, %v2307
      %v2354 = vxor.u32 %v2353, 2147483648
      %v2355 = vmul.f32 %v2354, 1.442695
      %v2356 = vpow.pop %v2355
      %v2357 = vadd.f32 %v2356, 1.0
      %v2358 = vrcp.pop %v2357
      %v2359 = vmul.f32 1.0, %v2358
      %v2360 = vadd.f32 %v2092, %v2309
      %v2361 = vxor.u32 %v2360, 2147483648
      %v2362 = vmul.f32 %v2361, 1.442695
      %v2363 = vpow.pop %v2362
      %v2364 = vadd.f32 %v2363, 1.0
      %v2365 = vrcp.pop %v2364
      %v2366 = vmul.f32 1.0, %v2365
      %v2367 = vmul.f32 %v2359, %v2348
      %v2368 = vadd.f32 %v2093, %v2367
      %v2369 = vtanh.pop %v2368
      %v2370 = vsub.f32 1.0, %v2366
      %v2371 = vmul.f32 %v2370, %v2369
      %v2372 = vmul.f32 %v2366, %v1791
      %v2373 = vadd.f32 %v2371, %v2372
      %v2374 = vld [vmem:[%s519 + $0x10] sm:$0xff]
      %2376 = vset.pattern.permute.xlu0 0
      %2377 = vperm.xlu0 %2376, %v2374
      %v2378 = vpop.permute.xlu0 %2377
      %v2380 = vmul.f32 %v2378, %v2373
      %2381 = vst [vmem:[%s533 + $0x10] sm:$0xff] %v2380
      %v2382 = vsub.f32 1.0, %v2374
      %2384 = vset.pattern.permute.xlu0 0
      %2385 = vperm.xlu0 %2384, %v2382
      %v2386 = vpop.permute.xlu0 %2385
      %v2388 = vmul.f32 %v2386, %v1791
      %v2389 = vadd.f32 %v2380, %v2388
      %v2390 = vld [vmem:[#allocation3 + $0x18] sm:$0xff]
      %v2391 = vld [vmem:[#allocation3 + $0x20] sm:$0xff]
      %v2392 = vld [vmem:[#allocation3 + $0x28] sm:$0xff]
      %v2393 = vpack.c.bf16 %v2090, %v2090
      %v2394 = vld [vmem:[%s9] sm:$0xff]
      %v2395 = vld [vmem:[%s9 + $0x8] sm:$0xf]
      %v2396 = vld [vmem:[%s9 + $0xc] sm:$0xff]
      %v2397 = vld [vmem:[%s9 + $0x14] sm:$0xf]
      %v2398 = vld [vmem:[%s9 + $0x18] sm:$0xff]
      %v2399 = vld [vmem:[%s9 + $0x20] sm:$0xf]
      %v2400 = vld [vmem:[%s9 + $0x24] sm:$0xff]
      %v2401 = vld [vmem:[%s9 + $0x2c] sm:$0xf]
      %v2402 = vld [vmem:[%s9 + $0x30] sm:$0xff]
      %v2403 = vld [vmem:[%s9 + $0x38] sm:$0xf]
      %v2404 = vld [vmem:[%s9 + $0x3c] sm:$0xff]
      %v2405 = vld [vmem:[%s9 + $0x44] sm:$0xf]
      %v2406 = vld [vmem:[%s9 + $0x48] sm:$0xff]
      %v2407 = vld [vmem:[%s9 + $0x50] sm:$0xf]
      %v2408 = vld [vmem:[%s9 + $0x54] sm:$0xff]
      %v2409 = vld [vmem:[%s9 + $0x5c] sm:$0xf]
      %v2410 = vld [vmem:[%s9 + $0x60] sm:$0xff]
      %v2411 = vld [vmem:[%s9 + $0x68] sm:$0xf]
      %v2412 = vld [vmem:[%s9 + $0x6c] sm:$0xff]
      %v2413 = vld [vmem:[%s9 + $0x74] sm:$0xf]
      %v2414 = vld [vmem:[%s9 + $0x78] sm:$0xff]
      %v2415 = vld [vmem:[%s9 + $0x80] sm:$0xf]
      %v2416 = vld [vmem:[%s9 + $0x84] sm:$0xff]
      %v2417 = vld [vmem:[%s9 + $0x8c] sm:$0xf]
      %v2418 = vld [vmem:[%s9 + $0x90] sm:$0xff]
      %v2419 = vld [vmem:[%s9 + $0x98] sm:$0xf]
      %v2420 = vld [vmem:[%s9 + $0x9c] sm:$0xff]
      %v2421 = vld [vmem:[%s9 + $0xa4] sm:$0xf]
      %v2422 = vld [vmem:[%s9 + $0xa8] sm:$0xff]
      %v2423 = vld [vmem:[%s9 + $0xb0] sm:$0xf]
      %v2424 = vld [vmem:[%s9 + $0xb4] sm:$0xff]
      %v2425 = vld [vmem:[%s9 + $0xbc] sm:$0xf]
      %v2426 = vld [vmem:[%s11] sm:$0x7]
      %v2428 = vlaneseq
      %v2429 = vshrl.u32 %v2428, 7
      %v2430 = vsub.s32 0, %v2429
      %v2431 = vrot.slane %v2426, %v2430
      %v2432 = vlaneseq
      %v2433 = vshrl.u32 %v2432, 7
      %v2434 = vsub.s32 1, %v2433
      %v2435 = vrot.slane %v2426, %v2434
      %v2436 = vlaneseq
      %v2437 = vshrl.u32 %v2436, 7
      %v2438 = vsub.s32 2, %v2437
      %v2439 = vrot.slane %v2426, %v2438
      %v2475 = vunpack.c.l.b16 %v2394
      %v2476 = vunpack.c.h.b16 %v2394
      %v2477 = vunpack.c.l.b16 %v2395
      %v2478 = vunpack.c.l.b16 %v2396
      %v2479 = vunpack.c.h.b16 %v2396
      %v2480 = vunpack.c.l.b16 %v2397
      %v2481 = vunpack.c.l.b16 %v2398
      %v2482 = vunpack.c.h.b16 %v2398
      %v2483 = vunpack.c.l.b16 %v2399
      %v2484 = vunpack.c.l.b16 %v2400
      %v2485 = vunpack.c.h.b16 %v2400
      %v2486 = vunpack.c.l.b16 %v2401
      %v2487 = vunpack.c.l.b16 %v2402
      %v2488 = vunpack.c.h.b16 %v2402
      %v2489 = vunpack.c.l.b16 %v2403
      %v2490 = vunpack.c.l.b16 %v2404
      %v2491 = vunpack.c.h.b16 %v2404
      %v2492 = vunpack.c.l.b16 %v2405
      %v2493 = vunpack.c.l.b16 %v2406
      %v2494 = vunpack.c.h.b16 %v2406
      %v2495 = vunpack.c.l.b16 %v2407
      %v2496 = vunpack.c.l.b16 %v2408
      %v2497 = vunpack.c.h.b16 %v2408
      %v2498 = vunpack.c.l.b16 %v2409
      %v2499 = vunpack.c.l.b16 %v2410
      %v2500 = vunpack.c.h.b16 %v2410
      %v2501 = vunpack.c.l.b16 %v2411
      %v2502 = vunpack.c.l.b16 %v2412
      %v2503 = vunpack.c.h.b16 %v2412
      %v2504 = vunpack.c.l.b16 %v2413
      %v2505 = vunpack.c.l.b16 %v2414
      %v2506 = vunpack.c.h.b16 %v2414
      %v2507 = vunpack.c.l.b16 %v2415
      %v2508 = vunpack.c.l.b16 %v2416
      %v2509 = vunpack.c.h.b16 %v2416
      %v2510 = vunpack.c.l.b16 %v2417
      %v2511 = vunpack.c.l.b16 %v2418
      %v2512 = vunpack.c.h.b16 %v2418
      %v2513 = vunpack.c.l.b16 %v2419
      %v2514 = vunpack.c.l.b16 %v2420
      %v2515 = vunpack.c.h.b16 %v2420
      %v2516 = vunpack.c.l.b16 %v2421
      %v2517 = vunpack.c.l.b16 %v2422
      %v2518 = vunpack.c.h.b16 %v2422
      %v2519 = vunpack.c.l.b16 %v2423
      %v2520 = vunpack.c.l.b16 %v2424
      %v2521 = vunpack.c.h.b16 %v2424
      %v2522 = vunpack.c.l.b16 %v2425
      %v2523 = vpack.c.b16 %v2478, %v2475
      %v2524 = vpack.c.b16 %v2479, %v2476
      %v2525 = vpack.c.b16 %v2480, %v2477
      %v2526 = vpack.c.b16 %v2484, %v2481
      %v2527 = vpack.c.b16 %v2485, %v2482
      %v2528 = vpack.c.b16 %v2486, %v2483
      %v2529 = vpack.c.b16 %v2490, %v2487
      %v2530 = vpack.c.b16 %v2491, %v2488
      %v2531 = vpack.c.b16 %v2492, %v2489
      %v2532 = vpack.c.b16 %v2496, %v2493
      %v2533 = vpack.c.b16 %v2497, %v2494
      %v2534 = vpack.c.b16 %v2498, %v2495
      %v2535 = vpack.c.b16 %v2502, %v2499
      %v2536 = vpack.c.b16 %v2503, %v2500
      %v2537 = vpack.c.b16 %v2504, %v2501
      %v2538 = vpack.c.b16 %v2508, %v2505
      %v2539 = vpack.c.b16 %v2509, %v2506
      %v2540 = vpack.c.b16 %v2510, %v2507
      %v2541 = vpack.c.b16 %v2514, %v2511
      %v2542 = vpack.c.b16 %v2515, %v2512
      %v2543 = vpack.c.b16 %v2516, %v2513
      %v2544 = vpack.c.b16 %v2520, %v2517
      %v2545 = vpack.c.b16 %v2521, %v2518
      %v2546 = vpack.c.b16 %v2522, %v2519
      %2571 = vmatprep.subr.bf16.mxu0 %v2524
      %2572 = vmatpush1.bf16.msra.mxu0 %v2523
      %2573 = vmatprep.subr.bf16.mxu0 %v2527
      %2574 = vmatpush1.bf16.msra.mxu0 %v2526
      %2575 = vmatprep.subr.bf16.mxu0 %v2530
      %2576 = vmatpush1.bf16.msra.mxu0 %v2529
      %2577 = vmatprep.subr.bf16.mxu0 %v2533
      %2578 = vmatpush1.bf16.msra.mxu0 %v2532
      %2579 = vmatprep.subr.bf16.mxu0 %v2536
      %2580 = vmatpush1.bf16.msra.mxu0 %v2535
      %2581 = vmatprep.subr.bf16.mxu0 %v2539
      %2582 = vmatpush1.bf16.msra.mxu0 %v2538
      %2583 = vmatprep.subr.bf16.mxu0 %v2542
      %2584 = vmatpush1.bf16.msra.mxu0 %v2541
      %2585 = vmatprep.subr.bf16.mxu0 %v2545
      %2586 = vmatpush1.bf16.msra.mxu0 %v2544
      %2587 = vmatprep.subr.bf16.mxu0 0
      %2588 = vmatpush1.bf16.msra.mxu0 0
      %2589 = vmatprep.subr.bf16.mxu0 0
      %2590 = vmatpush1.bf16.msra.mxu0 0
      %2591 = vmatprep.subr.bf16.mxu0 0
      %2592 = vmatpush1.bf16.msra.mxu0 0
      %2593 = vmatprep.subr.bf16.mxu0 0
      %2594 = vmatpush1.bf16.msra.mxu0 0
      %2595 = vmatprep.subr.bf16.mxu0 0
      %2596 = vmatpush1.bf16.msra.mxu0 0
      %2597 = vmatprep.subr.bf16.mxu0 0
      %2598 = vmatpush1.bf16.msra.mxu0 0
      %2599 = vmatprep.subr.bf16.mxu0 0
      %2600 = vmatpush1.bf16.msra.mxu0 0
      %2601 = vmatprep.subr.bf16.mxu0 0
      %2602 = vmatpush1.bf16.msra.mxu0 0
      %2603 = vmatprep.mubr.bf16.mxu0 0
      %2604 = vmatmul.mubr.bf16.gmra.mrb[0].mxu0 %v2393
      %v2605 = vpop.f32.mrb[0].mxu0
      %v2606 = vadd.f32 %v2431, %v2605
      %v2607 = vpop.f32.mrb[0].mxu0
      %v2608 = vadd.f32 %v2435, %v2607
      %v2609 = vpop.f32.mrb[0].mxu0
      %v2610 = vpop.f32.mrb[0].mxu0
      %2611 = vdwg.mxu0
      %2612 = vmatprep.subr.bf16.mxu0 0
      %2613 = vmatpush1.bf16.msra.mxu0 %v2525
      %2614 = vmatprep.subr.bf16.mxu0 0
      %2615 = vmatpush1.bf16.msra.mxu0 %v2528
      %2616 = vmatprep.subr.bf16.mxu0 0
      %2617 = vmatpush1.bf16.msra.mxu0 %v2531
      %2618 = vmatprep.subr.bf16.mxu0 0
      %2619 = vmatpush1.bf16.msra.mxu0 %v2534
      %2620 = vmatprep.subr.bf16.mxu0 0
      %2621 = vmatpush1.bf16.msra.mxu0 %v2537
      %2622 = vmatprep.subr.bf16.mxu0 0
      %2623 = vmatpush1.bf16.msra.mxu0 %v2540
      %2624 = vmatprep.subr.bf16.mxu0 0
      %2625 = vmatpush1.bf16.msra.mxu0 %v2543
      %2626 = vmatprep.subr.bf16.mxu0 0
      %2627 = vmatpush1.bf16.msra.mxu0 %v2546
      %2628 = vmatprep.subr.bf16.mxu0 0
      %2629 = vmatpush1.bf16.msra.mxu0 0
      %2630 = vmatprep.subr.bf16.mxu0 0
      %2631 = vmatpush1.bf16.msra.mxu0 0
      %2632 = vmatprep.subr.bf16.mxu0 0
      %2633 = vmatpush1.bf16.msra.mxu0 0
      %2634 = vmatprep.subr.bf16.mxu0 0
      %2635 = vmatpush1.bf16.msra.mxu0 0
      %2636 = vmatprep.subr.bf16.mxu0 0
      %2637 = vmatpush1.bf16.msra.mxu0 0
      %2638 = vmatprep.subr.bf16.mxu0 0
      %2639 = vmatpush1.bf16.msra.mxu0 0
      %2640 = vmatprep.subr.bf16.mxu0 0
      %2641 = vmatpush1.bf16.msra.mxu0 0
      %2642 = vmatprep.subr.bf16.mxu0 0
      %2643 = vmatpush1.bf16.msra.mxu0 0
      %2644 = vmatprep.mubr.bf16.mxu0 0
      %2645 = vmatmul.mubr.bf16.gmra.mrb[0].mxu0 %v2393
      %v2646 = vpop.f32.mrb[0].mxu0
      %v2647 = vadd.f32 %v2439, %v2646
      %v2648 = vpop.f32.mrb[0].mxu0
      %v2649 = vpop.f32.mrb[0].mxu0
      %v2650 = vpop.f32.mrb[0].mxu0
      %2651 = vdwg.mxu0
      %v2652 = vadd.f32 %v2390, %v2606
      %v2653 = vxor.u32 %v2652, 2147483648
      %v2654 = vmul.f32 %v2653, 1.442695
      %v2655 = vpow.pop %v2654
      %v2656 = vadd.f32 %v2655, 1.0
      %v2657 = vrcp.pop %v2656
      %v2658 = vmul.f32 1.0, %v2657
      %v2659 = vadd.f32 %v2391, %v2608
      %v2660 = vxor.u32 %v2659, 2147483648
      %v2661 = vmul.f32 %v2660, 1.442695
      %v2662 = vpow.pop %v2661
      %v2663 = vadd.f32 %v2662, 1.0
      %v2664 = vrcp.pop %v2663
      %v2665 = vmul.f32 1.0, %v2664
      %v2666 = vmul.f32 %v2658, %v2647
      %v2667 = vadd.f32 %v2392, %v2666
      %v2668 = vtanh.pop %v2667
      %v2669 = vsub.f32 1.0, %v2665
      %v2670 = vmul.f32 %v2669, %v2668
      %v2671 = vmul.f32 %v2665, %v2090
      %v2672 = vadd.f32 %v2670, %v2671
      %v2673 = vld [vmem:[%s526 + $0x8] sm:$0xff]
      %2675 = vset.pattern.permute.xlu0 0
      %2676 = vperm.xlu0 %2675, %v2673
      %v2677 = vpop.permute.xlu0 %2676
      %v2679 = vmul.f32 %v2677, %v2672
      %2680 = vst [vmem:[%s540 + $0x8] sm:$0xff] %v2679
      %v2681 = vsub.f32 1.0, %v2673
      %2683 = vset.pattern.permute.xlu0 0
      %2684 = vperm.xlu0 %2683, %v2681
      %v2685 = vpop.permute.xlu0 %2684
      %v2687 = vmul.f32 %v2685, %v2090
      %v2688 = vadd.f32 %v2679, %v2687
      %v2689 = vld [vmem:[#allocation2 + $0x48] sm:$0xff]
      %v2690 = vld [vmem:[#allocation2 + $0x50] sm:$0xff]
      %v2691 = vld [vmem:[#allocation2 + $0x58] sm:$0xff]
      %v2692 = vpack.c.bf16 %v2389, %v2389
      %v2693 = vld [vmem:[%s5] sm:$0xff]
      %v2694 = vld [vmem:[%s5 + $0x8] sm:$0xf]
      %v2695 = vld [vmem:[%s5 + $0xc] sm:$0xff]
      %v2696 = vld [vmem:[%s5 + $0x14] sm:$0xf]
      %v2697 = vld [vmem:[%s5 + $0x18] sm:$0xff]
      %v2698 = vld [vmem:[%s5 + $0x20] sm:$0xf]
      %v2699 = vld [vmem:[%s5 + $0x24] sm:$0xff]
      %v2700 = vld [vmem:[%s5 + $0x2c] sm:$0xf]
      %v2701 = vld [vmem:[%s5 + $0x30] sm:$0xff]
      %v2702 = vld [vmem:[%s5 + $0x38] sm:$0xf]
      %v2703 = vld [vmem:[%s5 + $0x3c] sm:$0xff]
      %v2704 = vld [vmem:[%s5 + $0x44] sm:$0xf]
      %v2705 = vld [vmem:[%s5 + $0x48] sm:$0xff]
      %v2706 = vld [vmem:[%s5 + $0x50] sm:$0xf]
      %v2707 = vld [vmem:[%s5 + $0x54] sm:$0xff]
      %v2708 = vld [vmem:[%s5 + $0x5c] sm:$0xf]
      %v2709 = vld [vmem:[%s5 + $0x60] sm:$0xff]
      %v2710 = vld [vmem:[%s5 + $0x68] sm:$0xf]
      %v2711 = vld [vmem:[%s5 + $0x6c] sm:$0xff]
      %v2712 = vld [vmem:[%s5 + $0x74] sm:$0xf]
      %v2713 = vld [vmem:[%s5 + $0x78] sm:$0xff]
      %v2714 = vld [vmem:[%s5 + $0x80] sm:$0xf]
      %v2715 = vld [vmem:[%s5 + $0x84] sm:$0xff]
      %v2716 = vld [vmem:[%s5 + $0x8c] sm:$0xf]
      %v2717 = vld [vmem:[%s5 + $0x90] sm:$0xff]
      %v2718 = vld [vmem:[%s5 + $0x98] sm:$0xf]
      %v2719 = vld [vmem:[%s5 + $0x9c] sm:$0xff]
      %v2720 = vld [vmem:[%s5 + $0xa4] sm:$0xf]
      %v2721 = vld [vmem:[%s5 + $0xa8] sm:$0xff]
      %v2722 = vld [vmem:[%s5 + $0xb0] sm:$0xf]
      %v2723 = vld [vmem:[%s5 + $0xb4] sm:$0xff]
      %v2724 = vld [vmem:[%s5 + $0xbc] sm:$0xf]
      %v2725 = vld [vmem:[%s7] sm:$0x7]
      %v2727 = vlaneseq
      %v2728 = vshrl.u32 %v2727, 7
      %v2729 = vsub.s32 0, %v2728
      %v2730 = vrot.slane %v2725, %v2729
      %v2731 = vlaneseq
      %v2732 = vshrl.u32 %v2731, 7
      %v2733 = vsub.s32 1, %v2732
      %v2734 = vrot.slane %v2725, %v2733
      %v2735 = vlaneseq
      %v2736 = vshrl.u32 %v2735, 7
      %v2737 = vsub.s32 2, %v2736
      %v2738 = vrot.slane %v2725, %v2737
      %v2774 = vunpack.c.l.b16 %v2693
      %v2775 = vunpack.c.h.b16 %v2693
      %v2776 = vunpack.c.l.b16 %v2694
      %v2777 = vunpack.c.l.b16 %v2695
      %v2778 = vunpack.c.h.b16 %v2695
      %v2779 = vunpack.c.l.b16 %v2696
      %v2780 = vunpack.c.l.b16 %v2697
      %v2781 = vunpack.c.h.b16 %v2697
      %v2782 = vunpack.c.l.b16 %v2698
      %v2783 = vunpack.c.l.b16 %v2699
      %v2784 = vunpack.c.h.b16 %v2699
      %v2785 = vunpack.c.l.b16 %v2700
      %v2786 = vunpack.c.l.b16 %v2701
      %v2787 = vunpack.c.h.b16 %v2701
      %v2788 = vunpack.c.l.b16 %v2702
      %v2789 = vunpack.c.l.b16 %v2703
      %v2790 = vunpack.c.h.b16 %v2703
      %v2791 = vunpack.c.l.b16 %v2704
      %v2792 = vunpack.c.l.b16 %v2705
      %v2793 = vunpack.c.h.b16 %v2705
      %v2794 = vunpack.c.l.b16 %v2706
      %v2795 = vunpack.c.l.b16 %v2707
      %v2796 = vunpack.c.h.b16 %v2707
      %v2797 = vunpack.c.l.b16 %v2708
      %v2798 = vunpack.c.l.b16 %v2709
      %v2799 = vunpack.c.h.b16 %v2709
      %v2800 = vunpack.c.l.b16 %v2710
      %v2801 = vunpack.c.l.b16 %v2711
      %v2802 = vunpack.c.h.b16 %v2711
      %v2803 = vunpack.c.l.b16 %v2712
      %v2804 = vunpack.c.l.b16 %v2713
      %v2805 = vunpack.c.h.b16 %v2713
      %v2806 = vunpack.c.l.b16 %v2714
      %v2807 = vunpack.c.l.b16 %v2715
      %v2808 = vunpack.c.h.b16 %v2715
      %v2809 = vunpack.c.l.b16 %v2716
      %v2810 = vunpack.c.l.b16 %v2717
      %v2811 = vunpack.c.h.b16 %v2717
      %v2812 = vunpack.c.l.b16 %v2718
      %v2813 = vunpack.c.l.b16 %v2719
      %v2814 = vunpack.c.h.b16 %v2719
      %v2815 = vunpack.c.l.b16 %v2720
      %v2816 = vunpack.c.l.b16 %v2721
      %v2817 = vunpack.c.h.b16 %v2721
      %v2818 = vunpack.c.l.b16 %v2722
      %v2819 = vunpack.c.l.b16 %v2723
      %v2820 = vunpack.c.h.b16 %v2723
      %v2821 = vunpack.c.l.b16 %v2724
      %v2822 = vpack.c.b16 %v2777, %v2774
      %v2823 = vpack.c.b16 %v2778, %v2775
      %v2824 = vpack.c.b16 %v2779, %v2776
      %v2825 = vpack.c.b16 %v2783, %v2780
      %v2826 = vpack.c.b16 %v2784, %v2781
      %v2827 = vpack.c.b16 %v2785, %v2782
      %v2828 = vpack.c.b16 %v2789, %v2786
      %v2829 = vpack.c.b16 %v2790, %v2787
      %v2830 = vpack.c.b16 %v2791, %v2788
      %v2831 = vpack.c.b16 %v2795, %v2792
      %v2832 = vpack.c.b16 %v2796, %v2793
      %v2833 = vpack.c.b16 %v2797, %v2794
      %v2834 = vpack.c.b16 %v2801, %v2798
      %v2835 = vpack.c.b16 %v2802, %v2799
      %v2836 = vpack.c.b16 %v2803, %v2800
      %v2837 = vpack.c.b16 %v2807, %v2804
      %v2838 = vpack.c.b16 %v2808, %v2805
      %v2839 = vpack.c.b16 %v2809, %v2806
      %v2840 = vpack.c.b16 %v2813, %v2810
      %v2841 = vpack.c.b16 %v2814, %v2811
      %v2842 = vpack.c.b16 %v2815, %v2812
      %v2843 = vpack.c.b16 %v2819, %v2816
      %v2844 = vpack.c.b16 %v2820, %v2817
      %v2845 = vpack.c.b16 %v2821, %v2818
      %2870 = vmatprep.subr.bf16.mxu0 %v2823
      %2871 = vmatpush1.bf16.msra.mxu0 %v2822
      %2872 = vmatprep.subr.bf16.mxu0 %v2826
      %2873 = vmatpush1.bf16.msra.mxu0 %v2825
      %2874 = vmatprep.subr.bf16.mxu0 %v2829
      %2875 = vmatpush1.bf16.msra.mxu0 %v2828
      %2876 = vmatprep.subr.bf16.mxu0 %v2832
      %2877 = vmatpush1.bf16.msra.mxu0 %v2831
      %2878 = vmatprep.subr.bf16.mxu0 %v2835
      %2879 = vmatpush1.bf16.msra.mxu0 %v2834
      %2880 = vmatprep.subr.bf16.mxu0 %v2838
      %2881 = vmatpush1.bf16.msra.mxu0 %v2837
      %2882 = vmatprep.subr.bf16.mxu0 %v2841
      %2883 = vmatpush1.bf16.msra.mxu0 %v2840
      %2884 = vmatprep.subr.bf16.mxu0 %v2844
      %2885 = vmatpush1.bf16.msra.mxu0 %v2843
      %2886 = vmatprep.subr.bf16.mxu0 0
      %2887 = vmatpush1.bf16.msra.mxu0 0
      %2888 = vmatprep.subr.bf16.mxu0 0
      %2889 = vmatpush1.bf16.msra.mxu0 0
      %2890 = vmatprep.subr.bf16.mxu0 0
      %2891 = vmatpush1.bf16.msra.mxu0 0
      %2892 = vmatprep.subr.bf16.mxu0 0
      %2893 = vmatpush1.bf16.msra.mxu0 0
      %2894 = vmatprep.subr.bf16.mxu0 0
      %2895 = vmatpush1.bf16.msra.mxu0 0
      %2896 = vmatprep.subr.bf16.mxu0 0
      %2897 = vmatpush1.bf16.msra.mxu0 0
      %2898 = vmatprep.subr.bf16.mxu0 0
      %2899 = vmatpush1.bf16.msra.mxu0 0
      %2900 = vmatprep.subr.bf16.mxu0 0
      %2901 = vmatpush1.bf16.msra.mxu0 0
      %2902 = vmatprep.mubr.bf16.mxu0 0
      %2903 = vmatmul.mubr.bf16.gmra.mrb[0].mxu0 %v2692
      %v2904 = vpop.f32.mrb[0].mxu0
      %v2905 = vadd.f32 %v2730, %v2904
      %v2906 = vpop.f32.mrb[0].mxu0
      %v2907 = vadd.f32 %v2734, %v2906
      %v2908 = vpop.f32.mrb[0].mxu0
      %v2909 = vpop.f32.mrb[0].mxu0
      %2910 = vdwg.mxu0
      %2911 = vmatprep.subr.bf16.mxu0 0
      %2912 = vmatpush1.bf16.msra.mxu0 %v2824
      %2913 = vmatprep.subr.bf16.mxu0 0
      %2914 = vmatpush1.bf16.msra.mxu0 %v2827
      %2915 = vmatprep.subr.bf16.mxu0 0
      %2916 = vmatpush1.bf16.msra.mxu0 %v2830
      %2917 = vmatprep.subr.bf16.mxu0 0
      %2918 = vmatpush1.bf16.msra.mxu0 %v2833
      %2919 = vmatprep.subr.bf16.mxu0 0
      %2920 = vmatpush1.bf16.msra.mxu0 %v2836
      %2921 = vmatprep.subr.bf16.mxu0 0
      %2922 = vmatpush1.bf16.msra.mxu0 %v2839
      %2923 = vmatprep.subr.bf16.mxu0 0
      %2924 = vmatpush1.bf16.msra.mxu0 %v2842
      %2925 = vmatprep.subr.bf16.mxu0 0
      %2926 = vmatpush1.bf16.msra.mxu0 %v2845
      %2927 = vmatprep.subr.bf16.mxu0 0
      %2928 = vmatpush1.bf16.msra.mxu0 0
      %2929 = vmatprep.subr.bf16.mxu0 0
      %2930 = vmatpush1.bf16.msra.mxu0 0
      %2931 = vmatprep.subr.bf16.mxu0 0
      %2932 = vmatpush1.bf16.msra.mxu0 0
      %2933 = vmatprep.subr.bf16.mxu0 0
      %2934 = vmatpush1.bf16.msra.mxu0 0
      %2935 = vmatprep.subr.bf16.mxu0 0
      %2936 = vmatpush1.bf16.msra.mxu0 0
      %2937 = vmatprep.subr.bf16.mxu0 0
      %2938 = vmatpush1.bf16.msra.mxu0 0
      %2939 = vmatprep.subr.bf16.mxu0 0
      %2940 = vmatpush1.bf16.msra.mxu0 0
      %2941 = vmatprep.subr.bf16.mxu0 0
      %2942 = vmatpush1.bf16.msra.mxu0 0
      %2943 = vmatprep.mubr.bf16.mxu0 0
      %2944 = vmatmul.mubr.bf16.gmra.mrb[0].mxu0 %v2692
      %v2945 = vpop.f32.mrb[0].mxu0
      %v2946 = vadd.f32 %v2738, %v2945
      %v2947 = vpop.f32.mrb[0].mxu0
      %v2948 = vpop.f32.mrb[0].mxu0
      %v2949 = vpop.f32.mrb[0].mxu0
      %2950 = vdwg.mxu0
      %v2951 = vadd.f32 %v2689, %v2905
      %v2952 = vxor.u32 %v2951, 2147483648
      %v2953 = vmul.f32 %v2952, 1.442695
      %v2954 = vpow.pop %v2953
      %v2955 = vadd.f32 %v2954, 1.0
      %v2956 = vrcp.pop %v2955
      %v2957 = vmul.f32 1.0, %v2956
      %v2958 = vadd.f32 %v2690, %v2907
      %v2959 = vxor.u32 %v2958, 2147483648
      %v2960 = vmul.f32 %v2959, 1.442695
      %v2961 = vpow.pop %v2960
      %v2962 = vadd.f32 %v2961, 1.0
      %v2963 = vrcp.pop %v2962
      %v2964 = vmul.f32 1.0, %v2963
      %v2965 = vmul.f32 %v2957, %v2946
      %v2966 = vadd.f32 %v2691, %v2965
      %v2967 = vtanh.pop %v2966
      %v2968 = vsub.f32 1.0, %v2964
      %v2969 = vmul.f32 %v2968, %v2967
      %v2970 = vmul.f32 %v2964, %v2389
      %v2971 = vadd.f32 %v2969, %v2970
      %v2972 = vld [vmem:[%s519 + $0x18] sm:$0xff]
      %2974 = vset.pattern.permute.xlu0 0
      %2975 = vperm.xlu0 %2974, %v2972
      %v2976 = vpop.permute.xlu0 %2975
      %v2978 = vmul.f32 %v2976, %v2971
      %2979 = vst [vmem:[%s533 + $0x18] sm:$0xff] %v2978
      %v2980 = vsub.f32 1.0, %v2972
      %2982 = vset.pattern.permute.xlu0 0
      %2983 = vperm.xlu0 %2982, %v2980
      %v2984 = vpop.permute.xlu0 %2983
      %v2986 = vmul.f32 %v2984, %v2389
      %v2987 = vadd.f32 %v2978, %v2986
      %v2988 = vld [vmem:[#allocation3] sm:$0xff]
      %v2989 = vld [vmem:[#allocation3 + $0x8] sm:$0xff]
      %v2990 = vld [vmem:[#allocation3 + $0x10] sm:$0xff]
      %v2991 = vpack.c.bf16 %v2688, %v2688
      %v2992 = vld [vmem:[%s9] sm:$0xff]
      %v2993 = vld [vmem:[%s9 + $0x8] sm:$0xf]
      %v2994 = vld [vmem:[%s9 + $0xc] sm:$0xff]
      %v2995 = vld [vmem:[%s9 + $0x14] sm:$0xf]
      %v2996 = vld [vmem:[%s9 + $0x18] sm:$0xff]
      %v2997 = vld [vmem:[%s9 + $0x20] sm:$0xf]
      %v2998 = vld [vmem:[%s9 + $0x24] sm:$0xff]
      %v2999 = vld [vmem:[%s9 + $0x2c] sm:$0xf]
      %v3000 = vld [vmem:[%s9 + $0x30] sm:$0xff]
      %v3001 = vld [vmem:[%s9 + $0x38] sm:$0xf]
      %v3002 = vld [vmem:[%s9 + $0x3c] sm:$0xff]
      %v3003 = vld [vmem:[%s9 + $0x44] sm:$0xf]
      %v3004 = vld [vmem:[%s9 + $0x48] sm:$0xff]
      %v3005 = vld [vmem:[%s9 + $0x50] sm:$0xf]
      %v3006 = vld [vmem:[%s9 + $0x54] sm:$0xff]
      %v3007 = vld [vmem:[%s9 + $0x5c] sm:$0xf]
      %v3008 = vld [vmem:[%s9 + $0x60] sm:$0xff]
      %v3009 = vld [vmem:[%s9 + $0x68] sm:$0xf]
      %v3010 = vld [vmem:[%s9 + $0x6c] sm:$0xff]
      %v3011 = vld [vmem:[%s9 + $0x74] sm:$0xf]
      %v3012 = vld [vmem:[%s9 + $0x78] sm:$0xff]
      %v3013 = vld [vmem:[%s9 + $0x80] sm:$0xf]
      %v3014 = vld [vmem:[%s9 + $0x84] sm:$0xff]
      %v3015 = vld [vmem:[%s9 + $0x8c] sm:$0xf]
      %v3016 = vld [vmem:[%s9 + $0x90] sm:$0xff]
      %v3017 = vld [vmem:[%s9 + $0x98] sm:$0xf]
      %v3018 = vld [vmem:[%s9 + $0x9c] sm:$0xff]
      %v3019 = vld [vmem:[%s9 + $0xa4] sm:$0xf]
      %v3020 = vld [vmem:[%s9 + $0xa8] sm:$0xff]
      %v3021 = vld [vmem:[%s9 + $0xb0] sm:$0xf]
      %v3022 = vld [vmem:[%s9 + $0xb4] sm:$0xff]
      %v3023 = vld [vmem:[%s9 + $0xbc] sm:$0xf]
      %v3024 = vld [vmem:[%s11] sm:$0x7]
      %v3026 = vlaneseq
      %v3027 = vshrl.u32 %v3026, 7
      %v3028 = vsub.s32 0, %v3027
      %v3029 = vrot.slane %v3024, %v3028
      %v3030 = vlaneseq
      %v3031 = vshrl.u32 %v3030, 7
      %v3032 = vsub.s32 1, %v3031
      %v3033 = vrot.slane %v3024, %v3032
      %v3034 = vlaneseq
      %v3035 = vshrl.u32 %v3034, 7
      %v3036 = vsub.s32 2, %v3035
      %v3037 = vrot.slane %v3024, %v3036
      %v3073 = vunpack.c.l.b16 %v2992
      %v3074 = vunpack.c.h.b16 %v2992
      %v3075 = vunpack.c.l.b16 %v2993
      %v3076 = vunpack.c.l.b16 %v2994
      %v3077 = vunpack.c.h.b16 %v2994
      %v3078 = vunpack.c.l.b16 %v2995
      %v3079 = vunpack.c.l.b16 %v2996
      %v3080 = vunpack.c.h.b16 %v2996
      %v3081 = vunpack.c.l.b16 %v2997
      %v3082 = vunpack.c.l.b16 %v2998
      %v3083 = vunpack.c.h.b16 %v2998
      %v3084 = vunpack.c.l.b16 %v2999
      %v3085 = vunpack.c.l.b16 %v3000
      %v3086 = vunpack.c.h.b16 %v3000
      %v3087 = vunpack.c.l.b16 %v3001
      %v3088 = vunpack.c.l.b16 %v3002
      %v3089 = vunpack.c.h.b16 %v3002
      %v3090 = vunpack.c.l.b16 %v3003
      %v3091 = vunpack.c.l.b16 %v3004
      %v3092 = vunpack.c.h.b16 %v3004
      %v3093 = vunpack.c.l.b16 %v3005
      %v3094 = vunpack.c.l.b16 %v3006
      %v3095 = vunpack.c.h.b16 %v3006
      %v3096 = vunpack.c.l.b16 %v3007
      %v3097 = vunpack.c.l.b16 %v3008
      %v3098 = vunpack.c.h.b16 %v3008
      %v3099 = vunpack.c.l.b16 %v3009
      %v3100 = vunpack.c.l.b16 %v3010
      %v3101 = vunpack.c.h.b16 %v3010
      %v3102 = vunpack.c.l.b16 %v3011
      %v3103 = vunpack.c.l.b16 %v3012
      %v3104 = vunpack.c.h.b16 %v3012
      %v3105 = vunpack.c.l.b16 %v3013
      %v3106 = vunpack.c.l.b16 %v3014
      %v3107 = vunpack.c.h.b16 %v3014
      %v3108 = vunpack.c.l.b16 %v3015
      %v3109 = vunpack.c.l.b16 %v3016
      %v3110 = vunpack.c.h.b16 %v3016
      %v3111 = vunpack.c.l.b16 %v3017
      %v3112 = vunpack.c.l.b16 %v3018
      %v3113 = vunpack.c.h.b16 %v3018
      %v3114 = vunpack.c.l.b16 %v3019
      %v3115 = vunpack.c.l.b16 %v3020
      %v3116 = vunpack.c.h.b16 %v3020
      %v3117 = vunpack.c.l.b16 %v3021
      %v3118 = vunpack.c.l.b16 %v3022
      %v3119 = vunpack.c.h.b16 %v3022
      %v3120 = vunpack.c.l.b16 %v3023
      %v3121 = vpack.c.b16 %v3076, %v3073
      %v3122 = vpack.c.b16 %v3077, %v3074
      %v3123 = vpack.c.b16 %v3078, %v3075
      %v3124 = vpack.c.b16 %v3082, %v3079
      %v3125 = vpack.c.b16 %v3083, %v3080
      %v3126 = vpack.c.b16 %v3084, %v3081
      %v3127 = vpack.c.b16 %v3088, %v3085
      %v3128 = vpack.c.b16 %v3089, %v3086
      %v3129 = vpack.c.b16 %v3090, %v3087
      %v3130 = vpack.c.b16 %v3094, %v3091
      %v3131 = vpack.c.b16 %v3095, %v3092
      %v3132 = vpack.c.b16 %v3096, %v3093
      %v3133 = vpack.c.b16 %v3100, %v3097
      %v3134 = vpack.c.b16 %v3101, %v3098
      %v3135 = vpack.c.b16 %v3102, %v3099
      %v3136 = vpack.c.b16 %v3106, %v3103
      %v3137 = vpack.c.b16 %v3107, %v3104
      %v3138 = vpack.c.b16 %v3108, %v3105
      %v3139 = vpack.c.b16 %v3112, %v3109
      %v3140 = vpack.c.b16 %v3113, %v3110
      %v3141 = vpack.c.b16 %v3114, %v3111
      %v3142 = vpack.c.b16 %v3118, %v3115
      %v3143 = vpack.c.b16 %v3119, %v3116
      %v3144 = vpack.c.b16 %v3120, %v3117
      %3169 = vmatprep.subr.bf16.mxu0 %v3122
      %3170 = vmatpush1.bf16.msra.mxu0 %v3121
      %3171 = vmatprep.subr.bf16.mxu0 %v3125
      %3172 = vmatpush1.bf16.msra.mxu0 %v3124
      %3173 = vmatprep.subr.bf16.mxu0 %v3128
      %3174 = vmatpush1.bf16.msra.mxu0 %v3127
      %3175 = vmatprep.subr.bf16.mxu0 %v3131
      %3176 = vmatpush1.bf16.msra.mxu0 %v3130
      %3177 = vmatprep.subr.bf16.mxu0 %v3134
      %3178 = vmatpush1.bf16.msra.mxu0 %v3133
      %3179 = vmatprep.subr.bf16.mxu0 %v3137
      %3180 = vmatpush1.bf16.msra.mxu0 %v3136
      %3181 = vmatprep.subr.bf16.mxu0 %v3140
      %3182 = vmatpush1.bf16.msra.mxu0 %v3139
      %3183 = vmatprep.subr.bf16.mxu0 %v3143
      %3184 = vmatpush1.bf16.msra.mxu0 %v3142
      %3185 = vmatprep.subr.bf16.mxu0 0
      %3186 = vmatpush1.bf16.msra.mxu0 0
      %3187 = vmatprep.subr.bf16.mxu0 0
      %3188 = vmatpush1.bf16.msra.mxu0 0
      %3189 = vmatprep.subr.bf16.mxu0 0
      %3190 = vmatpush1.bf16.msra.mxu0 0
      %3191 = vmatprep.subr.bf16.mxu0 0
      %3192 = vmatpush1.bf16.msra.mxu0 0
      %3193 = vmatprep.subr.bf16.mxu0 0
      %3194 = vmatpush1.bf16.msra.mxu0 0
      %3195 = vmatprep.subr.bf16.mxu0 0
      %3196 = vmatpush1.bf16.msra.mxu0 0
      %3197 = vmatprep.subr.bf16.mxu0 0
      %3198 = vmatpush1.bf16.msra.mxu0 0
      %3199 = vmatprep.subr.bf16.mxu0 0
      %3200 = vmatpush1.bf16.msra.mxu0 0
      %3201 = vmatprep.mubr.bf16.mxu0 0
      %3202 = vmatmul.mubr.bf16.gmra.mrb[0].mxu0 %v2991
      %v3203 = vpop.f32.mrb[0].mxu0
      %v3204 = vadd.f32 %v3029, %v3203
      %v3205 = vpop.f32.mrb[0].mxu0
      %v3206 = vadd.f32 %v3033, %v3205
      %v3207 = vpop.f32.mrb[0].mxu0
      %v3208 = vpop.f32.mrb[0].mxu0
      %3209 = vdwg.mxu0
      %3210 = vmatprep.subr.bf16.mxu0 0
      %3211 = vmatpush1.bf16.msra.mxu0 %v3123
      %3212 = vmatprep.subr.bf16.mxu0 0
      %3213 = vmatpush1.bf16.msra.mxu0 %v3126
      %3214 = vmatprep.subr.bf16.mxu0 0
      %3215 = vmatpush1.bf16.msra.mxu0 %v3129
      %3216 = vmatprep.subr.bf16.mxu0 0
      %3217 = vmatpush1.bf16.msra.mxu0 %v3132
      %3218 = vmatprep.subr.bf16.mxu0 0
      %3219 = vmatpush1.bf16.msra.mxu0 %v3135
      %3220 = vmatprep.subr.bf16.mxu0 0
      %3221 = vmatpush1.bf16.msra.mxu0 %v3138
      %3222 = vmatprep.subr.bf16.mxu0 0
      %3223 = vmatpush1.bf16.msra.mxu0 %v3141
      %3224 = vmatprep.subr.bf16.mxu0 0
      %3225 = vmatpush1.bf16.msra.mxu0 %v3144
      %3226 = vmatprep.subr.bf16.mxu0 0
      %3227 = vmatpush1.bf16.msra.mxu0 0
      %3228 = vmatprep.subr.bf16.mxu0 0
      %3229 = vmatpush1.bf16.msra.mxu0 0
      %3230 = vmatprep.subr.bf16.mxu0 0
      %3231 = vmatpush1.bf16.msra.mxu0 0
      %3232 = vmatprep.subr.bf16.mxu0 0
      %3233 = vmatpush1.bf16.msra.mxu0 0
      %3234 = vmatprep.subr.bf16.mxu0 0
      %3235 = vmatpush1.bf16.msra.mxu0 0
      %3236 = vmatprep.subr.bf16.mxu0 0
      %3237 = vmatpush1.bf16.msra.mxu0 0
      %3238 = vmatprep.subr.bf16.mxu0 0
      %3239 = vmatpush1.bf16.msra.mxu0 0
      %3240 = vmatprep.subr.bf16.mxu0 0
      %3241 = vmatpush1.bf16.msra.mxu0 0
      %3242 = vmatprep.mubr.bf16.mxu0 0
      %3243 = vmatmul.mubr.bf16.gmra.mrb[0].mxu0 %v2991
      %v3244 = vpop.f32.mrb[0].mxu0
      %v3245 = vadd.f32 %v3037, %v3244
      %v3246 = vpop.f32.mrb[0].mxu0
      %v3247 = vpop.f32.mrb[0].mxu0
      %v3248 = vpop.f32.mrb[0].mxu0
      %3249 = vdwg.mxu0
      %v3250 = vadd.f32 %v2988, %v3204
      %v3251 = vxor.u32 %v3250, 2147483648
      %v3252 = vmul.f32 %v3251, 1.442695
      %v3253 = vpow.pop %v3252
      %v3254 = vadd.f32 %v3253, 1.0
      %v3255 = vrcp.pop %v3254
      %v3256 = vmul.f32 1.0, %v3255
      %v3257 = vadd.f32 %v2989, %v3206
      %v3258 = vxor.u32 %v3257, 2147483648
      %v3259 = vmul.f32 %v3258, 1.442695
      %v3260 = vpow.pop %v3259
      %v3261 = vadd.f32 %v3260, 1.0
      %v3262 = vrcp.pop %v3261
      %v3263 = vmul.f32 1.0, %v3262
      %v3264 = vmul.f32 %v3256, %v3245
      %v3265 = vadd.f32 %v2990, %v3264
      %v3266 = vtanh.pop %v3265
      %v3267 = vsub.f32 1.0, %v3263
      %v3268 = vmul.f32 %v3267, %v3266
      %v3269 = vmul.f32 %v3263, %v2688
      %v3270 = vadd.f32 %v3268, %v3269
      %v3271 = vld [vmem:[%s526] sm:$0xff]
      %3273 = vset.pattern.permute.xlu0 0
      %3274 = vperm.xlu0 %3273, %v3271
      %v3275 = vpop.permute.xlu0 %3274
      %v3277 = vmul.f32 %v3275, %v3270
      %3278 = vst [vmem:[%s540] sm:$0xff] %v3277
      %v3279 = vsub.f32 1.0, %v3271
      %3281 = vset.pattern.permute.xlu0 0
      %3282 = vperm.xlu0 %3281, %v3279
      %v3283 = vpop.permute.xlu0 %3282
      %v3285 = vmul.f32 %v3283, %v2688
      %v3286 = vadd.f32 %v3277, %v3285
      %3287 = vst [vmem:[#allocation4] sm:$0xff] %v2987
      %3288 = vst [vmem:[#allocation5] sm:$0xff] %v3286
      %s3289 = smul.u32 4, %s25
      %p3290 = scmp.lt.s32.totalorder %s3289, 7
      %s3291 = scalar_select %p3290, %s3289, 7
      %s3292 = smul.addr %s3291, 8
      %s3293 = scalar_lea.vmem %s12, %s3292
      %s3294 = ssub.s32 1, %s25
      %s3295 = smul.u32 4, %s3294
      %p3296 = scmp.lt.s32.totalorder %s3295, 7
      %s3297 = scalar_select %p3296, %s3295, 7
      %s3298 = smul.addr %s3297, 8
      %s3299 = scalar_lea.vmem %s13, %s3298
      // Predicated region
      $region73: #{encoder_forward.1} parent=67 // pred_check
        %p3300 = pneg %p319
      $region74: #{encoder_forward.1} parent=67 // pred_check_branch
        %3302 = sbr.rel (%p3300) target = $region76
      $region75: #{encoder_forward.1} parent=67 // pred_region
        %s3303 = smul.u32 4, %s25
      $region76: #{encoder_forward.1} parent=67 // pred_fallthru
        _
      // Predicated region
      $region77: #{encoder_forward.1} parent=67 // pred_check
        %p3304 = pneg %p347
      $region78: #{encoder_forward.1} parent=67 // pred_check_branch
        %3306 = sbr.rel (%p3304) target = $region80
      $region79: #{encoder_forward.1} parent=67 // pred_region
        %s3307 = ssub.s32 1, %s25
        %s3308 = smul.u32 4, %s3307
      $region80: #{encoder_forward.1} parent=67 // pred_fallthru
        _
    $region68: #{encoder_forward.1} parent=5 // pred_fallthru
      _
    %p3309 = scmp.le.s32.totalorder 2, %s20
    // Predicated region
    $region81: #{encoder_forward.1} parent=5 // pred_check
      %p3310 = pneg %p3309
    $region82: #{encoder_forward.1} parent=5 // pred_check_branch
      %3312 = sbr.rel (%p3310) target = $region84
    $region83: #{encoder_forward.1} parent=5 // pred_region
      %s3313 = ssub.s32 %s20, 2
      // Predicated region
      $region85: #{encoder_forward.1} parent=83 // pred_check
        %p3314 = pneg %p325
      $region86: #{encoder_forward.1} parent=83 // pred_check_branch
        %3316 = sbr.rel (%p3314) target = $region88
      $region87: #{encoder_forward.1} parent=83 // pred_region
        %s3317 = smul.u32 4, %s26
        %p3318 = scmp.lt.s32.totalorder %s3317, 7
        %s3319 = scalar_select %p3318, %s3317, 7
        %s3320 = smul.addr %s3319, 8
        %s3321 = scalar_lea.vmem %s12, %s3320
      $region88: #{encoder_forward.1} parent=83 // pred_fallthru
        _
      // Predicated region
      $region89: #{encoder_forward.1} parent=83 // pred_check
        %p3322 = pneg %p353
      $region90: #{encoder_forward.1} parent=83 // pred_check_branch
        %3324 = sbr.rel (%p3322) target = $region92
      $region91: #{encoder_forward.1} parent=83 // pred_region
        %s3325 = ssub.s32 1, %s26
        %s3326 = smul.u32 4, %s3325
        %p3327 = scmp.lt.s32.totalorder %s3326, 7
        %s3328 = scalar_select %p3327, %s3326, 7
        %s3329 = smul.addr %s3328, 8
        %s3330 = scalar_lea.vmem %s13, %s3329
      $region92: #{encoder_forward.1} parent=83 // pred_fallthru
        _
    $region84: #{encoder_forward.1} parent=5 // pred_fallthru
      _
  $region6: #{encoder_forward.1} parent=0 // loop_footer
    %s24 = sadd.s32 1, %s20
  $region7: #{encoder_forward.1} parent=0 // loop_footer_branch
    %19 = sbr.rel target = $region3
  $region8: #{encoder_forward.1} parent=0 // loop_exit
    _

</llo_original>
